<compile_context>
chip_gen: v7x
topology: tpu7x:2x2x1
jax: 0.10.0
libtpu: 0.0.40
codegen_flags: <defaults>
</compile_context>

<pallas_src>
import functools
import math

import jax
import jax.numpy as jnp
from jax.experimental import pallas as pl
from jax.experimental.pallas import tpu as pltpu  # noqa: F401  (TPU backend)

# ----------------------------- model sizes ---------------------------------
D_MODEL = 32
N_HEAD = 4
DIM_FF = 64
NUM_LAYERS = 2
SEQ = 8
BATCH = 2
LN_EPS = 1e-5
QKV_W = 128            # fused [Q|K|V] output width: 3*D = 96, lane-padded to 128


def _layernorm(x, gamma, beta):
    mu = jnp.mean(x, axis=-1, keepdims=True)
    var = jnp.mean((x - mu) ** 2, axis=-1, keepdims=True)
    return (x - mu) * jax.lax.rsqrt(var + LN_EPS) * gamma + beta


# ------------------------- fused Pallas kernel body --------------------------
def fused_encoder_kernel(x_ref, pos_ref,
                         wqkv_ref, bqkv_ref,
                         wo_ref, bo_ref,
                         w1_ref, b1_ref, w2_ref, b2_ref,
                         g1_ref, be1_ref, g2_ref, be2_ref,
                         gn_ref, bn_ref,
                         o_ref, *, num_layers, batch, apply_final_norm):
    # x_ref / pos_ref: [BS, D] slab; row r = (seq s, batch b) with r = s*batch + b.
    x = x_ref[...]
    pos = pos_ref[...]
    bs, d = x.shape
    dh = d // N_HEAD

    # Same-batch additive mask, computed ONCE and reused by every layer/head:
    # row r of the flattened [S*B, D] slab belongs to batch (r % batch).
    ri = jax.lax.broadcasted_iota(jnp.int32, (bs, bs), 0)
    ci = jax.lax.broadcasted_iota(jnp.int32, (bs, bs), 1)
    attn_bias = jnp.where((ri % batch) == (ci % batch),
                          jnp.float32(0.0), jnp.float32(-1e30))

    # Hoist the (1, n) -> (bs, n) bias / LayerNorm-param broadcasts once
    # (re-used by both unrolled layers).  Weight MATRICES are intentionally
    # NOT hoisted — each is re-read from its VMEM ref at point of use so its
    # live range is only the matmul that consumes it (vreg-pressure fix).
    bqkv = jnp.broadcast_to(bqkv_ref[...], (bs, QKV_W))
    bo = jnp.broadcast_to(bo_ref[...], (bs, d))
    b1 = jnp.broadcast_to(b1_ref[...], (bs, DIM_FF))
    b2 = jnp.broadcast_to(b2_ref[...], (bs, d))
    g1 = jnp.broadcast_to(g1_ref[...], (bs, d))
    be1 = jnp.broadcast_to(be1_ref[...], (bs, d))
    g2 = jnp.broadcast_to(g2_ref[...], (bs, d))
    be2 = jnp.broadcast_to(be2_ref[...], (bs, d))

    for _ in range(num_layers):           # unrolled; layers share weights (deepcopy)
        # Fused QKV: [x | pos] @ [[Wq*s, Wk, Wv], [Wq*s, Wk, 0]] + [bq*s|bk|bv]
        #   -> [ (x+pos)@Wq*s | (x+pos)@Wk | x@Wv ]   in ONE MXU push.
        xp = jnp.concatenate([x, pos], axis=-1)                          # [BS, 2D]
        qkv = jnp.dot(xp, wqkv_ref[...],
                      preferred_element_type=jnp.float32) + bqkv         # [BS, 128]
        q = qkv[:, 0:d]             # 1/sqrt(dh) already folded into Wq / bq
        k = qkv[:, d:2 * d]
        v = qkv[:, 2 * d:3 * d]

        # Transpose K once per layer; per-head slices of K^T are sublane-aligned.
        k_t = jnp.transpose(k)                                           # [D, BS]

        heads = []
        for h in range(N_HEAD):           # static head loop (H = 4)
            sl = slice(h * dh, (h + 1) * dh)
            s = jnp.dot(q[:, sl], k_t[sl, :],
                        preferred_element_type=jnp.float32)              # [BS, BS]
            s = s + attn_bias
            s = s - jnp.max(s, axis=-1, keepdims=True)
            p = jnp.exp(s)
            p = p / jnp.sum(p, axis=-1, keepdims=True)   # exact divide (16 rows)
            heads.append(jnp.dot(p, v[:, sl],
                                 preferred_element_type=jnp.float32))    # [BS, dh]

        # TODO(synk): on v7x, replace the lane-concat + single Wo matmul with 4
        # MRB-accumulating per-head projections; on v5e/v6e (MRF FIFO) the
        # concat + one matmul below is the right form.
        ctx = jnp.concatenate(heads, axis=-1)                            # [BS, D]
        attn = jnp.dot(ctx, wo_ref[...],
                       preferred_element_type=jnp.float32) + bo

        # Residual + norm1 (post-norm; dropout == identity in eval).
        x1 = _layernorm(x + attn, g1, be1)

        # Feed-forward: linear1 -> ReLU -> linear2, full slab at once.
        hdn = jnp.dot(x1, w1_ref[...], preferred_element_type=jnp.float32) + b1
        hdn = jnp.maximum(hdn, 0.0)
        ff = jnp.dot(hdn, w2_ref[...], preferred_element_type=jnp.float32) + b2

        # Residual + norm2.
        x = _layernorm(x1 + ff, g2, be2)

    if apply_final_norm:
        x = _layernorm(x, gn_ref[...], bn_ref[...])
    o_ref[...] = x


# ------------------------------ wrapper --------------------------------------
@jax.jit
def transformer_encoder(src_sbd, pos_sbd, layer_params, norm_params):
    # src_sbd / pos_sbd: [S, B, D] (PyTorch nn.MultiheadAttention layout).
    # Row-major collapse [S, B, D] -> [S*B, D] is a free reshape (no transpose,
    # no HBM data movement); batch identity is recovered in-kernel via r % B.
    S, B, D = src_sbd.shape
    bs = S * B
    x2 = src_sbd.reshape(bs, D)
    p2 = pos_sbd.reshape(bs, D)

    (wq, wk, wv, bq, bk, bv, wo, bo,
     w1, b1, w2, b2, g1, be1, g2, be2) = layer_params

    # Build the fused QKV weight/bias once in the wrapper (tiny XLA ops):
    # fold the 1/sqrt(dh) score scale into Wq / bq and lane-pad 3*D -> 128 so
    # the fused matmul output tile is unmasked.
    scale = 1.0 / math.sqrt(D // N_HEAD)
    wq_s, bq_s = wq * scale, bq * scale
    wqkv = jnp.concatenate(
        [jnp.concatenate([wq_s, wk, wv], axis=1),
         jnp.concatenate([wq_s, wk, jnp.zeros_like(wv)], axis=1)], axis=0)  # [2D, 3D]
    wqkv = jnp.pad(wqkv, ((0, 0), (0, QKV_W - 3 * D)))                      # [2D, 128]
    bqkv = jnp.pad(jnp.concatenate([bq_s, bk, bv], axis=1),
                   ((0, 0), (0, QKV_W - 3 * D)))                            # [1, 128]

    apply_norm = norm_params is not None
    if apply_norm:
        gn, bn = norm_params
    else:
        gn = jnp.ones((1, D), jnp.float32)
        bn = jnp.zeros((1, D), jnp.float32)

    # Advisory cost estimate for the XLA scheduler.
    dh = D // N_HEAD
    mm_flops = (2 * bs * (2 * D) * QKV_W                 # fused QKV projection
                + N_HEAD * 2 * 2 * bs * bs * dh          # scores + p@v
                + 2 * bs * D * D                         # out projection
                + 2 * 2 * bs * D * DIM_FF)               # linear1 + linear2
    flops = NUM_LAYERS * mm_flops
    transcendentals = NUM_LAYERS * (N_HEAD * bs * bs + 2 * bs) + bs

    kernel = functools.partial(fused_encoder_kernel,
                               num_layers=NUM_LAYERS,
                               batch=B,
                               apply_final_norm=apply_norm)

    args = (x2, p2, wqkv, bqkv, wo, bo, w1, b1, w2, b2,
            g1, be1, g2, be2, gn, bn)
    bytes_accessed = 4 * (sum(int(a.size) for a in args) + bs * D)

    # TODO(synk): if S*B (or D) grows, add a leading "parallel" row-block grid
    # axis with row-blocked BlockSpecs (lane-dense, multiple-of-128 output last
    # dim) so v7x's second TensorCore gets work, and size tiles via
    # pltpu.CompilerParams(vmem_limit_bytes=...) against v7x's 64 MiB VMEM
    # (vs 128 MiB on v5e/v6e).  At S=8/B=2 (~60 KB resident) one grid-less
    # launch with everything VMEM-resident is optimal — do not split now.
    out2 = pl.pallas_call(
        kernel,
        out_shape=jax.ShapeDtypeStruct((bs, D), jnp.float32),
        cost_estimate=pl.CostEstimate(flops=flops,
                                      transcendentals=transcendentals,
                                      bytes_accessed=bytes_accessed),
    )(*args)
    return out2.reshape(S, B, D)


# -------------------------- deterministic params ----------------------------
def init_params(key):
    D, F = D_MODEL, DIM_FF
    ks = jax.random.split(key, 8)
    scale = 0.1

    def w(k, shape):
        return scale * jax.random.normal(k, shape, jnp.float32)

    # Weights stored pre-transposed so the kernel computes x @ W + b
    # (PyTorch Linear computes x @ W^T + b).
    layer_params = (
        w(ks[0], (D, D)),                      # Wq^T
        w(ks[1], (D, D)),                      # Wk^T
        w(ks[2], (D, D)),                      # Wv^T
        jnp.zeros((1, D), jnp.float32),        # bq
        jnp.zeros((1, D), jnp.float32),        # bk
        jnp.zeros((1, D), jnp.float32),        # bv
        w(ks[3], (D, D)),                      # Wo^T  (out_proj)
        jnp.zeros((1, D), jnp.float32),        # bo
        w(ks[4], (D, F)),                      # W1^T  (linear1)
        jnp.zeros((1, F), jnp.float32),        # b1
        w(ks[5], (F, D)),                      # W2^T  (linear2)
        jnp.zeros((1, D), jnp.float32),        # b2
        jnp.ones((1, D), jnp.float32),         # norm1 gamma
        jnp.zeros((1, D), jnp.float32),        # norm1 beta
        jnp.ones((1, D), jnp.float32),         # norm2 gamma
        jnp.zeros((1, D), jnp.float32),        # norm2 beta
    )
    norm_params = (jnp.ones((1, D), jnp.float32),
                   jnp.zeros((1, D), jnp.float32))   # optional final self.norm
    return layer_params, norm_params


# ----------------------------- plain-JAX reference --------------------------
def reference(src_sbd, pos_sbd, layer_params, norm_params):
    (wq, wk, wv, bq, bk, bv, wo, bo,
     w1, b1, w2, b2, g1, be1, g2, be2) = layer_params
    dh = D_MODEL // N_HEAD
    hp = jax.lax.Precision.HIGHEST

    def layer(x, pos):
        qk = x + pos
        Q = jnp.dot(qk, wq, precision=hp) + bq
        K = jnp.dot(qk, wk, precision=hp) + bk
        V = jnp.dot(x, wv, precision=hp) + bv
        S_len = x.shape[0]
        Qh = Q.reshape(S_len, N_HEAD, dh).transpose(1, 0, 2) / dh ** 0.5
        Kh = K.reshape(S_len, N_HEAD, dh).transpose(1, 0, 2)
        Vh = V.reshape(S_len, N_HEAD, dh).transpose(1, 0, 2)
        s = jnp.einsum('hsd,htd->hst', Qh, Kh, precision=hp)
        p = jax.nn.softmax(s, axis=-1)
        o = jnp.einsum('hst,htd->hsd', p, Vh, precision=hp)
        attn = o.transpose(1, 0, 2).reshape(S_len, D_MODEL)
        attn = jnp.dot(attn, wo, precision=hp) + bo
        x1 = _layernorm(x + attn, g1, be1)
        h = jnp.maximum(jnp.dot(x1, w1, precision=hp) + b1, 0.0)
        h = jnp.dot(h, w2, precision=hp) + b2
        return _layernorm(x1 + h, g2, be2)

    x = jnp.transpose(src_sbd, (1, 0, 2))
    pos = jnp.transpose(pos_sbd, (1, 0, 2))
    out = []
    for b in range(x.shape[0]):
        xb = x[b]
        for _ in range(NUM_LAYERS):
            xb = layer(xb, pos[b])
        if norm_params is not None:
            xb = _layernorm(xb, *norm_params)
        out.append(xb)
    return jnp.transpose(jnp.stack(out, 0), (1, 0, 2))


# --------------------------------- main --------------------------------------
if __name__ == "__main__":
    key = jax.random.PRNGKey(0)
    k_src, k_pos, k_par = jax.random.split(key, 3)
    src = jax.random.normal(k_src, (SEQ, BATCH, D_MODEL), jnp.float32)
    pos = jax.random.normal(k_pos, (SEQ, BATCH, D_MODEL), jnp.float32)
    layer_params, norm_params = init_params(k_par)

    out = transformer_encoder(src, pos, layer_params, norm_params)
    out = jax.block_until_ready(out)

    ref = reference(src, pos, layer_params, norm_params)
    assert out.shape == (SEQ, BATCH, D_MODEL)
    err = jnp.max(jnp.abs(out - ref))
    # Exact softmax division + f32 matmul accumulation leave comfortable
    # headroom at this tolerance.
    assert jnp.allclose(out, ref, atol=1e-3, rtol=1e-3), f"max abs diff {err}"
    print("KERNEL_OK")
</pallas_src>

<mosaic_0001>
module attributes {stable_mosaic.version = 11 : i64} {
  func.func @fused_encoder_kernel(%arg0: memref<16x32xf32, #tpu.memory_space<vmem>>, %arg1: memref<16x32xf32, #tpu.memory_space<vmem>>, %arg2: memref<64x128xf32, #tpu.memory_space<vmem>>, %arg3: memref<1x128xf32, #tpu.memory_space<vmem>>, %arg4: memref<32x32xf32, #tpu.memory_space<vmem>>, %arg5: memref<1x32xf32, #tpu.memory_space<vmem>>, %arg6: memref<32x64xf32, #tpu.memory_space<vmem>>, %arg7: memref<1x64xf32, #tpu.memory_space<vmem>>, %arg8: memref<64x32xf32, #tpu.memory_space<vmem>>, %arg9: memref<1x32xf32, #tpu.memory_space<vmem>>, %arg10: memref<1x32xf32, #tpu.memory_space<vmem>>, %arg11: memref<1x32xf32, #tpu.memory_space<vmem>>, %arg12: memref<1x32xf32, #tpu.memory_space<vmem>>, %arg13: memref<1x32xf32, #tpu.memory_space<vmem>>, %arg14: memref<1x32xf32, #tpu.memory_space<vmem>>, %arg15: memref<1x32xf32, #tpu.memory_space<vmem>>, %arg16: memref<16x32xf32, #tpu.memory_space<vmem>>) attributes {dimension_semantics = [], scalar_prefetch = 0 : i64, scratch_operands = 0 : i64, tpu.core_type = #tpu.core_type<tc>} {
    %c0 = arith.constant 0 : index
    %c0_0 = arith.constant 0 : index
    %0 = vector.load %arg0[%c0, %c0_0] : memref<16x32xf32, #tpu.memory_space<vmem>>, vector<16x32xf32>
    %c0_1 = arith.constant 0 : index
    %c0_2 = arith.constant 0 : index
    %1 = vector.load %arg1[%c0_1, %c0_2] : memref<16x32xf32, #tpu.memory_space<vmem>>, vector<16x32xf32>
    %2 = tpu.iota {dimensions = array<i32: 0>} : vector<16x16xi32>
    %3 = tpu.iota {dimensions = array<i32: 1>} : vector<16x16xi32>
    %c2_i32 = arith.constant 2 : i32
    %c0_i32 = arith.constant 0 : i32
    %4 = arith.cmpi eq, %c2_i32, %c0_i32 : i32
    %c1_i32 = arith.constant 1 : i32
    %5 = arith.select %4, %c1_i32, %c2_i32 : i32
    %6 = vector.broadcast %5 : i32 to vector<16x16xi32>
    %7 = arith.remsi %2, %6 : vector<16x16xi32>
    %c0_i32_3 = arith.constant 0 : i32
    %8 = vector.broadcast %c0_i32_3 : i32 to vector<16x16xi32>
    %9 = arith.cmpi ne, %7, %8 : vector<16x16xi32>
    %c0_i32_4 = arith.constant 0 : i32
    %10 = vector.broadcast %c0_i32_4 : i32 to vector<16x16xi32>
    %11 = arith.cmpi slt, %7, %10 : vector<16x16xi32>
    %c0_i32_5 = arith.constant 0 : i32
    %12 = arith.cmpi slt, %5, %c0_i32_5 : i32
    %13 = vector.broadcast %12 : i1 to vector<16x16xi1>
    %14 = vector.broadcast %13 : vector<16x16xi1> to vector<16x16xi1>
    %15 = arith.xori %11, %14 : vector<16x16xi1>
    %16 = arith.andi %15, %9 : vector<16x16xi1>
    %17 = vector.broadcast %5 : i32 to vector<16x16xi32>
    %18 = arith.addi %7, %17 : vector<16x16xi32>
    %19 = arith.select %16, %18, %7 : vector<16x16xi1>, vector<16x16xi32>
    %c2_i32_6 = arith.constant 2 : i32
    %c0_i32_7 = arith.constant 0 : i32
    %20 = arith.cmpi eq, %c2_i32_6, %c0_i32_7 : i32
    %c1_i32_8 = arith.constant 1 : i32
    %21 = arith.select %20, %c1_i32_8, %c2_i32_6 : i32
    %22 = vector.broadcast %21 : i32 to vector<16x16xi32>
    %23 = arith.remsi %3, %22 : vector<16x16xi32>
    %c0_i32_9 = arith.constant 0 : i32
    %24 = vector.broadcast %c0_i32_9 : i32 to vector<16x16xi32>
    %25 = arith.cmpi ne, %23, %24 : vector<16x16xi32>
    %c0_i32_10 = arith.constant 0 : i32
    %26 = vector.broadcast %c0_i32_10 : i32 to vector<16x16xi32>
    %27 = arith.cmpi slt, %23, %26 : vector<16x16xi32>
    %c0_i32_11 = arith.constant 0 : i32
    %28 = arith.cmpi slt, %21, %c0_i32_11 : i32
    %29 = vector.broadcast %28 : i1 to vector<16x16xi1>
    %30 = vector.broadcast %29 : vector<16x16xi1> to vector<16x16xi1>
    %31 = arith.xori %27, %30 : vector<16x16xi1>
    %32 = arith.andi %31, %25 : vector<16x16xi1>
    %33 = vector.broadcast %21 : i32 to vector<16x16xi32>
    %34 = arith.addi %23, %33 : vector<16x16xi32>
    %35 = arith.select %32, %34, %23 : vector<16x16xi1>, vector<16x16xi32>
    %36 = arith.cmpi eq, %19, %35 : vector<16x16xi32>
    %cst = arith.constant 0.000000e+00 : f32
    %cst_12 = arith.constant -1.000000e+30 : f32
    %37 = vector.broadcast %cst : f32 to vector<16x16xf32>
    %38 = vector.broadcast %cst_12 : f32 to vector<16x16xf32>
    %39 = arith.select %36, %37, %38 : vector<16x16xi1>, vector<16x16xf32>
    %c0_13 = arith.constant 0 : index
    %c0_14 = arith.constant 0 : index
    %40 = vector.load %arg3[%c0_13, %c0_14] : memref<1x128xf32, #tpu.memory_space<vmem>>, vector<1x128xf32>
    %41 = vector.shape_cast %40 : vector<1x128xf32> to vector<1x128xf32>
    %42 = vector.broadcast %41 : vector<1x128xf32> to vector<16x128xf32>
    %c0_15 = arith.constant 0 : index
    %c0_16 = arith.constant 0 : index
    %43 = vector.load %arg5[%c0_15, %c0_16] : memref<1x32xf32, #tpu.memory_space<vmem>>, vector<1x32xf32>
    %44 = vector.shape_cast %43 : vector<1x32xf32> to vector<1x32xf32>
    %45 = vector.broadcast %44 : vector<1x32xf32> to vector<16x32xf32>
    %c0_17 = arith.constant 0 : index
    %c0_18 = arith.constant 0 : index
    %46 = vector.load %arg7[%c0_17, %c0_18] : memref<1x64xf32, #tpu.memory_space<vmem>>, vector<1x64xf32>
    %47 = vector.shape_cast %46 : vector<1x64xf32> to vector<1x64xf32>
    %48 = vector.broadcast %47 : vector<1x64xf32> to vector<16x64xf32>
    %c0_19 = arith.constant 0 : index
    %c0_20 = arith.constant 0 : index
    %49 = vector.load %arg9[%c0_19, %c0_20] : memref<1x32xf32, #tpu.memory_space<vmem>>, vector<1x32xf32>
    %50 = vector.shape_cast %49 : vector<1x32xf32> to vector<1x32xf32>
    %51 = vector.broadcast %50 : vector<1x32xf32> to vector<16x32xf32>
    %c0_21 = arith.constant 0 : index
    %c0_22 = arith.constant 0 : index
    %52 = vector.load %arg10[%c0_21, %c0_22] : memref<1x32xf32, #tpu.memory_space<vmem>>, vector<1x32xf32>
    %53 = vector.shape_cast %52 : vector<1x32xf32> to vector<1x32xf32>
    %54 = vector.broadcast %53 : vector<1x32xf32> to vector<16x32xf32>
    %c0_23 = arith.constant 0 : index
    %c0_24 = arith.constant 0 : index
    %55 = vector.load %arg11[%c0_23, %c0_24] : memref<1x32xf32, #tpu.memory_space<vmem>>, vector<1x32xf32>
    %56 = vector.shape_cast %55 : vector<1x32xf32> to vector<1x32xf32>
    %57 = vector.broadcast %56 : vector<1x32xf32> to vector<16x32xf32>
    %c0_25 = arith.constant 0 : index
    %c0_26 = arith.constant 0 : index
    %58 = vector.load %arg12[%c0_25, %c0_26] : memref<1x32xf32, #tpu.memory_space<vmem>>, vector<1x32xf32>
    %59 = vector.shape_cast %58 : vector<1x32xf32> to vector<1x32xf32>
    %60 = vector.broadcast %59 : vector<1x32xf32> to vector<16x32xf32>
    %c0_27 = arith.constant 0 : index
    %c0_28 = arith.constant 0 : index
    %61 = vector.load %arg13[%c0_27, %c0_28] : memref<1x32xf32, #tpu.memory_space<vmem>>, vector<1x32xf32>
    %62 = vector.shape_cast %61 : vector<1x32xf32> to vector<1x32xf32>
    %63 = vector.broadcast %62 : vector<1x32xf32> to vector<16x32xf32>
    %64 = tpu.concatenate %0, %1 in 1 : vector<16x32xf32>, vector<16x32xf32> -> vector<16x64xf32>
    %c0_29 = arith.constant 0 : index
    %c0_30 = arith.constant 0 : index
    %65 = vector.load %arg2[%c0_29, %c0_30] : memref<64x128xf32, #tpu.memory_space<vmem>>, vector<64x128xf32>
    %cst_31 = arith.constant dense<0.000000e+00> : vector<16x128xf32>
    %66 = tpu.matmul %64, %65, %cst_31 {dimension_numbers = #tpu.dot_dimension_numbers<[1], [0], [0], [1], [0, 0, 1, 1], [], []>} : vector<16x64xf32>, vector<64x128xf32>, vector<16x128xf32> -> vector<16x128xf32>
    %67 = arith.addf %66, %42 : vector<16x128xf32>
    %68 = vector.extract_strided_slice %67 {offsets = [0, 0], sizes = [16, 32], strides = [1, 1]} : vector<16x128xf32> to vector<16x32xf32>
    %69 = vector.extract_strided_slice %67 {offsets = [0, 32], sizes = [16, 32], strides = [1, 1]} : vector<16x128xf32> to vector<16x32xf32>
    %70 = vector.extract_strided_slice %67 {offsets = [0, 64], sizes = [16, 32], strides = [1, 1]} : vector<16x128xf32> to vector<16x32xf32>
    %71 = tpu.transpose %69, [1, 0] : vector<16x32xf32> -> vector<32x16xf32>
    %72 = vector.extract_strided_slice %68 {offsets = [0, 0], sizes = [16, 8], strides = [1, 1]} : vector<16x32xf32> to vector<16x8xf32>
    %73 = vector.extract_strided_slice %71 {offsets = [0, 0], sizes = [8, 16], strides = [1, 1]} : vector<32x16xf32> to vector<8x16xf32>
    %cst_32 = arith.constant dense<0.000000e+00> : vector<16x16xf32>
    %74 = tpu.matmul %72, %73, %cst_32 {dimension_numbers = #tpu.dot_dimension_numbers<[1], [0], [0], [1], [0, 0, 1, 1], [], []>} : vector<16x8xf32>, vector<8x16xf32>, vector<16x16xf32> -> vector<16x16xf32>
    %75 = arith.addf %74, %39 : vector<16x16xf32>
    %cst_33 = arith.constant dense<0xFF800000> : vector<16xf32>
    %76 = vector.multi_reduction <maximumf>, %75, %cst_33 [1] : vector<16x16xf32> to vector<16xf32>
    %77 = vector.shape_cast %76 : vector<16xf32> to vector<16x1xf32>
    %78 = vector.broadcast %77 : vector<16x1xf32> to vector<16x16xf32>
    %79 = arith.subf %75, %78 : vector<16x16xf32>
    %80 = math.exp %79 : vector<16x16xf32>
    %cst_34 = arith.constant dense<0.000000e+00> : vector<16xf32>
    %81 = vector.multi_reduction <add>, %80, %cst_34 [1] : vector<16x16xf32> to vector<16xf32>
    %82 = vector.shape_cast %81 : vector<16xf32> to vector<16x1xf32>
    %83 = vector.broadcast %82 : vector<16x1xf32> to vector<16x16xf32>
    %84 = arith.divf %80, %83 : vector<16x16xf32>
    %85 = vector.extract_strided_slice %70 {offsets = [0, 0], sizes = [16, 8], strides = [1, 1]} : vector<16x32xf32> to vector<16x8xf32>
    %cst_35 = arith.constant dense<0.000000e+00> : vector<16x8xf32>
    %86 = tpu.matmul %84, %85, %cst_35 {dimension_numbers = #tpu.dot_dimension_numbers<[1], [0], [0], [1], [0, 0, 1, 1], [], []>} : vector<16x16xf32>, vector<16x8xf32>, vector<16x8xf32> -> vector<16x8xf32>
    %87 = vector.extract_strided_slice %68 {offsets = [0, 8], sizes = [16, 8], strides = [1, 1]} : vector<16x32xf32> to vector<16x8xf32>
    %88 = vector.extract_strided_slice %71 {offsets = [8, 0], sizes = [8, 16], strides = [1, 1]} : vector<32x16xf32> to vector<8x16xf32>
    %cst_36 = arith.constant dense<0.000000e+00> : vector<16x16xf32>
    %89 = tpu.matmul %87, %88, %cst_36 {dimension_numbers = #tpu.dot_dimension_numbers<[1], [0], [0], [1], [0, 0, 1, 1], [], []>} : vector<16x8xf32>, vector<8x16xf32>, vector<16x16xf32> -> vector<16x16xf32>
    %90 = arith.addf %89, %39 : vector<16x16xf32>
    %cst_37 = arith.constant dense<0xFF800000> : vector<16xf32>
    %91 = vector.multi_reduction <maximumf>, %90, %cst_37 [1] : vector<16x16xf32> to vector<16xf32>
    %92 = vector.shape_cast %91 : vector<16xf32> to vector<16x1xf32>
    %93 = vector.broadcast %92 : vector<16x1xf32> to vector<16x16xf32>
    %94 = arith.subf %90, %93 : vector<16x16xf32>
    %95 = math.exp %94 : vector<16x16xf32>
    %cst_38 = arith.constant dense<0.000000e+00> : vector<16xf32>
    %96 = vector.multi_reduction <add>, %95, %cst_38 [1] : vector<16x16xf32> to vector<16xf32>
    %97 = vector.shape_cast %96 : vector<16xf32> to vector<16x1xf32>
    %98 = vector.broadcast %97 : vector<16x1xf32> to vector<16x16xf32>
    %99 = arith.divf %95, %98 : vector<16x16xf32>
    %100 = vector.extract_strided_slice %70 {offsets = [0, 8], sizes = [16, 8], strides = [1, 1]} : vector<16x32xf32> to vector<16x8xf32>
    %cst_39 = arith.constant dense<0.000000e+00> : vector<16x8xf32>
    %101 = tpu.matmul %99, %100, %cst_39 {dimension_numbers = #tpu.dot_dimension_numbers<[1], [0], [0], [1], [0, 0, 1, 1], [], []>} : vector<16x16xf32>, vector<16x8xf32>, vector<16x8xf32> -> vector<16x8xf32>
    %102 = vector.extract_strided_slice %68 {offsets = [0, 16], sizes = [16, 8], strides = [1, 1]} : vector<16x32xf32> to vector<16x8xf32>
    %103 = vector.extract_strided_slice %71 {offsets = [16, 0], sizes = [8, 16], strides = [1, 1]} : vector<32x16xf32> to vector<8x16xf32>
    %cst_40 = arith.constant dense<0.000000e+00> : vector<16x16xf32>
    %104 = tpu.matmul %102, %103, %cst_40 {dimension_numbers = #tpu.dot_dimension_numbers<[1], [0], [0], [1], [0, 0, 1, 1], [], []>} : vector<16x8xf32>, vector<8x16xf32>, vector<16x16xf32> -> vector<16x16xf32>
    %105 = arith.addf %104, %39 : vector<16x16xf32>
    %cst_41 = arith.constant dense<0xFF800000> : vector<16xf32>
    %106 = vector.multi_reduction <maximumf>, %105, %cst_41 [1] : vector<16x16xf32> to vector<16xf32>
    %107 = vector.shape_cast %106 : vector<16xf32> to vector<16x1xf32>
    %108 = vector.broadcast %107 : vector<16x1xf32> to vector<16x16xf32>
    %109 = arith.subf %105, %108 : vector<16x16xf32>
    %110 = math.exp %109 : vector<16x16xf32>
    %cst_42 = arith.constant dense<0.000000e+00> : vector<16xf32>
    %111 = vector.multi_reduction <add>, %110, %cst_42 [1] : vector<16x16xf32> to vector<16xf32>
    %112 = vector.shape_cast %111 : vector<16xf32> to vector<16x1xf32>
    %113 = vector.broadcast %112 : vector<16x1xf32> to vector<16x16xf32>
    %114 = arith.divf %110, %113 : vector<16x16xf32>
    %115 = vector.extract_strided_slice %70 {offsets = [0, 16], sizes = [16, 8], strides = [1, 1]} : vector<16x32xf32> to vector<16x8xf32>
    %cst_43 = arith.constant dense<0.000000e+00> : vector<16x8xf32>
    %116 = tpu.matmul %114, %115, %cst_43 {dimension_numbers = #tpu.dot_dimension_numbers<[1], [0], [0], [1], [0, 0, 1, 1], [], []>} : vector<16x16xf32>, vector<16x8xf32>, vector<16x8xf32> -> vector<16x8xf32>
    %117 = vector.extract_strided_slice %68 {offsets = [0, 24], sizes = [16, 8], strides = [1, 1]} : vector<16x32xf32> to vector<16x8xf32>
    %118 = vector.extract_strided_slice %71 {offsets = [24, 0], sizes = [8, 16], strides = [1, 1]} : vector<32x16xf32> to vector<8x16xf32>
    %cst_44 = arith.constant dense<0.000000e+00> : vector<16x16xf32>
    %119 = tpu.matmul %117, %118, %cst_44 {dimension_numbers = #tpu.dot_dimension_numbers<[1], [0], [0], [1], [0, 0, 1, 1], [], []>} : vector<16x8xf32>, vector<8x16xf32>, vector<16x16xf32> -> vector<16x16xf32>
    %120 = arith.addf %119, %39 : vector<16x16xf32>
    %cst_45 = arith.constant dense<0xFF800000> : vector<16xf32>
    %121 = vector.multi_reduction <maximumf>, %120, %cst_45 [1] : vector<16x16xf32> to vector<16xf32>
    %122 = vector.shape_cast %121 : vector<16xf32> to vector<16x1xf32>
    %123 = vector.broadcast %122 : vector<16x1xf32> to vector<16x16xf32>
    %124 = arith.subf %120, %123 : vector<16x16xf32>
    %125 = math.exp %124 : vector<16x16xf32>
    %cst_46 = arith.constant dense<0.000000e+00> : vector<16xf32>
    %126 = vector.multi_reduction <add>, %125, %cst_46 [1] : vector<16x16xf32> to vector<16xf32>
    %127 = vector.shape_cast %126 : vector<16xf32> to vector<16x1xf32>
    %128 = vector.broadcast %127 : vector<16x1xf32> to vector<16x16xf32>
    %129 = arith.divf %125, %128 : vector<16x16xf32>
    %130 = vector.extract_strided_slice %70 {offsets = [0, 24], sizes = [16, 8], strides = [1, 1]} : vector<16x32xf32> to vector<16x8xf32>
    %cst_47 = arith.constant dense<0.000000e+00> : vector<16x8xf32>
    %131 = tpu.matmul %129, %130, %cst_47 {dimension_numbers = #tpu.dot_dimension_numbers<[1], [0], [0], [1], [0, 0, 1, 1], [], []>} : vector<16x16xf32>, vector<16x8xf32>, vector<16x8xf32> -> vector<16x8xf32>
    %132 = tpu.concatenate %86, %101, %116, %131 in 1 : vector<16x8xf32>, vector<16x8xf32>, vector<16x8xf32>, vector<16x8xf32> -> vector<16x32xf32>
    %c0_48 = arith.constant 0 : index
    %c0_49 = arith.constant 0 : index
    %133 = vector.load %arg4[%c0_48, %c0_49] : memref<32x32xf32, #tpu.memory_space<vmem>>, vector<32x32xf32>
    %cst_50 = arith.constant dense<0.000000e+00> : vector<16x32xf32>
    %134 = tpu.matmul %132, %133, %cst_50 {dimension_numbers = #tpu.dot_dimension_numbers<[1], [0], [0], [1], [0, 0, 1, 1], [], []>} : vector<16x32xf32>, vector<32x32xf32>, vector<16x32xf32> -> vector<16x32xf32>
    %135 = arith.addf %134, %45 : vector<16x32xf32>
    %136 = arith.addf %0, %135 : vector<16x32xf32>
    %cst_51 = arith.constant dense<0.000000e+00> : vector<16xf32>
    %137 = vector.multi_reduction <add>, %136, %cst_51 [1] : vector<16x32xf32> to vector<16xf32>
    %138 = vector.shape_cast %137 : vector<16xf32> to vector<16x1xf32>
    %cst_52 = arith.constant 3.200000e+01 : f32
    %139 = vector.broadcast %cst_52 : f32 to vector<16x1xf32>
    %140 = arith.divf %138, %139 : vector<16x1xf32>
    %141 = vector.broadcast %140 : vector<16x1xf32> to vector<16x32xf32>
    %142 = arith.subf %136, %141 : vector<16x32xf32>
    %143 = arith.mulf %142, %142 : vector<16x32xf32>
    %cst_53 = arith.constant dense<0.000000e+00> : vector<16xf32>
    %144 = vector.multi_reduction <add>, %143, %cst_53 [1] : vector<16x32xf32> to vector<16xf32>
    %145 = vector.shape_cast %144 : vector<16xf32> to vector<16x1xf32>
    %cst_54 = arith.constant 3.200000e+01 : f32
    %146 = vector.broadcast %cst_54 : f32 to vector<16x1xf32>
    %147 = arith.divf %145, %146 : vector<16x1xf32>
    %148 = vector.broadcast %140 : vector<16x1xf32> to vector<16x32xf32>
    %149 = arith.subf %136, %148 : vector<16x32xf32>
    %cst_55 = arith.constant 9.99999974E-6 : f32
    %150 = vector.broadcast %cst_55 : f32 to vector<16x1xf32>
    %151 = arith.addf %147, %150 : vector<16x1xf32>
    %152 = math.rsqrt %151 : vector<16x1xf32>
    %153 = vector.broadcast %152 : vector<16x1xf32> to vector<16x32xf32>
    %154 = arith.mulf %149, %153 : vector<16x32xf32>
    %155 = arith.mulf %154, %54 : vector<16x32xf32>
    %156 = arith.addf %155, %57 : vector<16x32xf32>
    %c0_56 = arith.constant 0 : index
    %c0_57 = arith.constant 0 : index
    %157 = vector.load %arg6[%c0_56, %c0_57] : memref<32x64xf32, #tpu.memory_space<vmem>>, vector<32x64xf32>
    %cst_58 = arith.constant dense<0.000000e+00> : vector<16x64xf32>
    %158 = tpu.matmul %156, %157, %cst_58 {dimension_numbers = #tpu.dot_dimension_numbers<[1], [0], [0], [1], [0, 0, 1, 1], [], []>} : vector<16x32xf32>, vector<32x64xf32>, vector<16x64xf32> -> vector<16x64xf32>
    %159 = arith.addf %158, %48 : vector<16x64xf32>
    %cst_59 = arith.constant 0.000000e+00 : f32
    %160 = vector.broadcast %cst_59 : f32 to vector<16x64xf32>
    %161 = arith.maximumf %159, %160 : vector<16x64xf32>
    %c0_60 = arith.constant 0 : index
    %c0_61 = arith.constant 0 : index
    %162 = vector.load %arg8[%c0_60, %c0_61] : memref<64x32xf32, #tpu.memory_space<vmem>>, vector<64x32xf32>
    %cst_62 = arith.constant dense<0.000000e+00> : vector<16x32xf32>
    %163 = tpu.matmul %161, %162, %cst_62 {dimension_numbers = #tpu.dot_dimension_numbers<[1], [0], [0], [1], [0, 0, 1, 1], [], []>} : vector<16x64xf32>, vector<64x32xf32>, vector<16x32xf32> -> vector<16x32xf32>
    %164 = arith.addf %163, %51 : vector<16x32xf32>
    %165 = arith.addf %156, %164 : vector<16x32xf32>
    %cst_63 = arith.constant dense<0.000000e+00> : vector<16xf32>
    %166 = vector.multi_reduction <add>, %165, %cst_63 [1] : vector<16x32xf32> to vector<16xf32>
    %167 = vector.shape_cast %166 : vector<16xf32> to vector<16x1xf32>
    %cst_64 = arith.constant 3.200000e+01 : f32
    %168 = vector.broadcast %cst_64 : f32 to vector<16x1xf32>
    %169 = arith.divf %167, %168 : vector<16x1xf32>
    %170 = vector.broadcast %169 : vector<16x1xf32> to vector<16x32xf32>
    %171 = arith.subf %165, %170 : vector<16x32xf32>
    %172 = arith.mulf %171, %171 : vector<16x32xf32>
    %cst_65 = arith.constant dense<0.000000e+00> : vector<16xf32>
    %173 = vector.multi_reduction <add>, %172, %cst_65 [1] : vector<16x32xf32> to vector<16xf32>
    %174 = vector.shape_cast %173 : vector<16xf32> to vector<16x1xf32>
    %cst_66 = arith.constant 3.200000e+01 : f32
    %175 = vector.broadcast %cst_66 : f32 to vector<16x1xf32>
    %176 = arith.divf %174, %175 : vector<16x1xf32>
    %177 = vector.broadcast %169 : vector<16x1xf32> to vector<16x32xf32>
    %178 = arith.subf %165, %177 : vector<16x32xf32>
    %cst_67 = arith.constant 9.99999974E-6 : f32
    %179 = vector.broadcast %cst_67 : f32 to vector<16x1xf32>
    %180 = arith.addf %176, %179 : vector<16x1xf32>
    %181 = math.rsqrt %180 : vector<16x1xf32>
    %182 = vector.broadcast %181 : vector<16x1xf32> to vector<16x32xf32>
    %183 = arith.mulf %178, %182 : vector<16x32xf32>
    %184 = arith.mulf %183, %60 : vector<16x32xf32>
    %185 = arith.addf %184, %63 : vector<16x32xf32>
    %186 = tpu.concatenate %185, %1 in 1 : vector<16x32xf32>, vector<16x32xf32> -> vector<16x64xf32>
    %c0_68 = arith.constant 0 : index
    %c0_69 = arith.constant 0 : index
    %187 = vector.load %arg2[%c0_68, %c0_69] : memref<64x128xf32, #tpu.memory_space<vmem>>, vector<64x128xf32>
    %cst_70 = arith.constant dense<0.000000e+00> : vector<16x128xf32>
    %188 = tpu.matmul %186, %187, %cst_70 {dimension_numbers = #tpu.dot_dimension_numbers<[1], [0], [0], [1], [0, 0, 1, 1], [], []>} : vector<16x64xf32>, vector<64x128xf32>, vector<16x128xf32> -> vector<16x128xf32>
    %189 = arith.addf %188, %42 : vector<16x128xf32>
    %190 = vector.extract_strided_slice %189 {offsets = [0, 0], sizes = [16, 32], strides = [1, 1]} : vector<16x128xf32> to vector<16x32xf32>
    %191 = vector.extract_strided_slice %189 {offsets = [0, 32], sizes = [16, 32], strides = [1, 1]} : vector<16x128xf32> to vector<16x32xf32>
    %192 = vector.extract_strided_slice %189 {offsets = [0, 64], sizes = [16, 32], strides = [1, 1]} : vector<16x128xf32> to vector<16x32xf32>
    %193 = tpu.transpose %191, [1, 0] : vector<16x32xf32> -> vector<32x16xf32>
    %194 = vector.extract_strided_slice %190 {offsets = [0, 0], sizes = [16, 8], strides = [1, 1]} : vector<16x32xf32> to vector<16x8xf32>
    %195 = vector.extract_strided_slice %193 {offsets = [0, 0], sizes = [8, 16], strides = [1, 1]} : vector<32x16xf32> to vector<8x16xf32>
    %cst_71 = arith.constant dense<0.000000e+00> : vector<16x16xf32>
    %196 = tpu.matmul %194, %195, %cst_71 {dimension_numbers = #tpu.dot_dimension_numbers<[1], [0], [0], [1], [0, 0, 1, 1], [], []>} : vector<16x8xf32>, vector<8x16xf32>, vector<16x16xf32> -> vector<16x16xf32>
    %197 = arith.addf %196, %39 : vector<16x16xf32>
    %cst_72 = arith.constant dense<0xFF800000> : vector<16xf32>
    %198 = vector.multi_reduction <maximumf>, %197, %cst_72 [1] : vector<16x16xf32> to vector<16xf32>
    %199 = vector.shape_cast %198 : vector<16xf32> to vector<16x1xf32>
    %200 = vector.broadcast %199 : vector<16x1xf32> to vector<16x16xf32>
    %201 = arith.subf %197, %200 : vector<16x16xf32>
    %202 = math.exp %201 : vector<16x16xf32>
    %cst_73 = arith.constant dense<0.000000e+00> : vector<16xf32>
    %203 = vector.multi_reduction <add>, %202, %cst_73 [1] : vector<16x16xf32> to vector<16xf32>
    %204 = vector.shape_cast %203 : vector<16xf32> to vector<16x1xf32>
    %205 = vector.broadcast %204 : vector<16x1xf32> to vector<16x16xf32>
    %206 = arith.divf %202, %205 : vector<16x16xf32>
    %207 = vector.extract_strided_slice %192 {offsets = [0, 0], sizes = [16, 8], strides = [1, 1]} : vector<16x32xf32> to vector<16x8xf32>
    %cst_74 = arith.constant dense<0.000000e+00> : vector<16x8xf32>
    %208 = tpu.matmul %206, %207, %cst_74 {dimension_numbers = #tpu.dot_dimension_numbers<[1], [0], [0], [1], [0, 0, 1, 1], [], []>} : vector<16x16xf32>, vector<16x8xf32>, vector<16x8xf32> -> vector<16x8xf32>
    %209 = vector.extract_strided_slice %190 {offsets = [0, 8], sizes = [16, 8], strides = [1, 1]} : vector<16x32xf32> to vector<16x8xf32>
    %210 = vector.extract_strided_slice %193 {offsets = [8, 0], sizes = [8, 16], strides = [1, 1]} : vector<32x16xf32> to vector<8x16xf32>
    %cst_75 = arith.constant dense<0.000000e+00> : vector<16x16xf32>
    %211 = tpu.matmul %209, %210, %cst_75 {dimension_numbers = #tpu.dot_dimension_numbers<[1], [0], [0], [1], [0, 0, 1, 1], [], []>} : vector<16x8xf32>, vector<8x16xf32>, vector<16x16xf32> -> vector<16x16xf32>
    %212 = arith.addf %211, %39 : vector<16x16xf32>
    %cst_76 = arith.constant dense<0xFF800000> : vector<16xf32>
    %213 = vector.multi_reduction <maximumf>, %212, %cst_76 [1] : vector<16x16xf32> to vector<16xf32>
    %214 = vector.shape_cast %213 : vector<16xf32> to vector<16x1xf32>
    %215 = vector.broadcast %214 : vector<16x1xf32> to vector<16x16xf32>
    %216 = arith.subf %212, %215 : vector<16x16xf32>
    %217 = math.exp %216 : vector<16x16xf32>
    %cst_77 = arith.constant dense<0.000000e+00> : vector<16xf32>
    %218 = vector.multi_reduction <add>, %217, %cst_77 [1] : vector<16x16xf32> to vector<16xf32>
    %219 = vector.shape_cast %218 : vector<16xf32> to vector<16x1xf32>
    %220 = vector.broadcast %219 : vector<16x1xf32> to vector<16x16xf32>
    %221 = arith.divf %217, %220 : vector<16x16xf32>
    %222 = vector.extract_strided_slice %192 {offsets = [0, 8], sizes = [16, 8], strides = [1, 1]} : vector<16x32xf32> to vector<16x8xf32>
    %cst_78 = arith.constant dense<0.000000e+00> : vector<16x8xf32>
    %223 = tpu.matmul %221, %222, %cst_78 {dimension_numbers = #tpu.dot_dimension_numbers<[1], [0], [0], [1], [0, 0, 1, 1], [], []>} : vector<16x16xf32>, vector<16x8xf32>, vector<16x8xf32> -> vector<16x8xf32>
    %224 = vector.extract_strided_slice %190 {offsets = [0, 16], sizes = [16, 8], strides = [1, 1]} : vector<16x32xf32> to vector<16x8xf32>
    %225 = vector.extract_strided_slice %193 {offsets = [16, 0], sizes = [8, 16], strides = [1, 1]} : vector<32x16xf32> to vector<8x16xf32>
    %cst_79 = arith.constant dense<0.000000e+00> : vector<16x16xf32>
    %226 = tpu.matmul %224, %225, %cst_79 {dimension_numbers = #tpu.dot_dimension_numbers<[1], [0], [0], [1], [0, 0, 1, 1], [], []>} : vector<16x8xf32>, vector<8x16xf32>, vector<16x16xf32> -> vector<16x16xf32>
    %227 = arith.addf %226, %39 : vector<16x16xf32>
    %cst_80 = arith.constant dense<0xFF800000> : vector<16xf32>
    %228 = vector.multi_reduction <maximumf>, %227, %cst_80 [1] : vector<16x16xf32> to vector<16xf32>
    %229 = vector.shape_cast %228 : vector<16xf32> to vector<16x1xf32>
    %230 = vector.broadcast %229 : vector<16x1xf32> to vector<16x16xf32>
    %231 = arith.subf %227, %230 : vector<16x16xf32>
    %232 = math.exp %231 : vector<16x16xf32>
    %cst_81 = arith.constant dense<0.000000e+00> : vector<16xf32>
    %233 = vector.multi_reduction <add>, %232, %cst_81 [1] : vector<16x16xf32> to vector<16xf32>
    %234 = vector.shape_cast %233 : vector<16xf32> to vector<16x1xf32>
    %235 = vector.broadcast %234 : vector<16x1xf32> to vector<16x16xf32>
    %236 = arith.divf %232, %235 : vector<16x16xf32>
    %237 = vector.extract_strided_slice %192 {offsets = [0, 16], sizes = [16, 8], strides = [1, 1]} : vector<16x32xf32> to vector<16x8xf32>
    %cst_82 = arith.constant dense<0.000000e+00> : vector<16x8xf32>
    %238 = tpu.matmul %236, %237, %cst_82 {dimension_numbers = #tpu.dot_dimension_numbers<[1], [0], [0], [1], [0, 0, 1, 1], [], []>} : vector<16x16xf32>, vector<16x8xf32>, vector<16x8xf32> -> vector<16x8xf32>
    %239 = vector.extract_strided_slice %190 {offsets = [0, 24], sizes = [16, 8], strides = [1, 1]} : vector<16x32xf32> to vector<16x8xf32>
    %240 = vector.extract_strided_slice %193 {offsets = [24, 0], sizes = [8, 16], strides = [1, 1]} : vector<32x16xf32> to vector<8x16xf32>
    %cst_83 = arith.constant dense<0.000000e+00> : vector<16x16xf32>
    %241 = tpu.matmul %239, %240, %cst_83 {dimension_numbers = #tpu.dot_dimension_numbers<[1], [0], [0], [1], [0, 0, 1, 1], [], []>} : vector<16x8xf32>, vector<8x16xf32>, vector<16x16xf32> -> vector<16x16xf32>
    %242 = arith.addf %241, %39 : vector<16x16xf32>
    %cst_84 = arith.constant dense<0xFF800000> : vector<16xf32>
    %243 = vector.multi_reduction <maximumf>, %242, %cst_84 [1] : vector<16x16xf32> to vector<16xf32>
    %244 = vector.shape_cast %243 : vector<16xf32> to vector<16x1xf32>
    %245 = vector.broadcast %244 : vector<16x1xf32> to vector<16x16xf32>
    %246 = arith.subf %242, %245 : vector<16x16xf32>
    %247 = math.exp %246 : vector<16x16xf32>
    %cst_85 = arith.constant dense<0.000000e+00> : vector<16xf32>
    %248 = vector.multi_reduction <add>, %247, %cst_85 [1] : vector<16x16xf32> to vector<16xf32>
    %249 = vector.shape_cast %248 : vector<16xf32> to vector<16x1xf32>
    %250 = vector.broadcast %249 : vector<16x1xf32> to vector<16x16xf32>
    %251 = arith.divf %247, %250 : vector<16x16xf32>
    %252 = vector.extract_strided_slice %192 {offsets = [0, 24], sizes = [16, 8], strides = [1, 1]} : vector<16x32xf32> to vector<16x8xf32>
    %cst_86 = arith.constant dense<0.000000e+00> : vector<16x8xf32>
    %253 = tpu.matmul %251, %252, %cst_86 {dimension_numbers = #tpu.dot_dimension_numbers<[1], [0], [0], [1], [0, 0, 1, 1], [], []>} : vector<16x16xf32>, vector<16x8xf32>, vector<16x8xf32> -> vector<16x8xf32>
    %254 = tpu.concatenate %208, %223, %238, %253 in 1 : vector<16x8xf32>, vector<16x8xf32>, vector<16x8xf32>, vector<16x8xf32> -> vector<16x32xf32>
    %c0_87 = arith.constant 0 : index
    %c0_88 = arith.constant 0 : index
    %255 = vector.load %arg4[%c0_87, %c0_88] : memref<32x32xf32, #tpu.memory_space<vmem>>, vector<32x32xf32>
    %cst_89 = arith.constant dense<0.000000e+00> : vector<16x32xf32>
    %256 = tpu.matmul %254, %255, %cst_89 {dimension_numbers = #tpu.dot_dimension_numbers<[1], [0], [0], [1], [0, 0, 1, 1], [], []>} : vector<16x32xf32>, vector<32x32xf32>, vector<16x32xf32> -> vector<16x32xf32>
    %257 = arith.addf %256, %45 : vector<16x32xf32>
    %258 = arith.addf %185, %257 : vector<16x32xf32>
    %cst_90 = arith.constant dense<0.000000e+00> : vector<16xf32>
    %259 = vector.multi_reduction <add>, %258, %cst_90 [1] : vector<16x32xf32> to vector<16xf32>
    %260 = vector.shape_cast %259 : vector<16xf32> to vector<16x1xf32>
    %cst_91 = arith.constant 3.200000e+01 : f32
    %261 = vector.broadcast %cst_91 : f32 to vector<16x1xf32>
    %262 = arith.divf %260, %261 : vector<16x1xf32>
    %263 = vector.broadcast %262 : vector<16x1xf32> to vector<16x32xf32>
    %264 = arith.subf %258, %263 : vector<16x32xf32>
    %265 = arith.mulf %264, %264 : vector<16x32xf32>
    %cst_92 = arith.constant dense<0.000000e+00> : vector<16xf32>
    %266 = vector.multi_reduction <add>, %265, %cst_92 [1] : vector<16x32xf32> to vector<16xf32>
    %267 = vector.shape_cast %266 : vector<16xf32> to vector<16x1xf32>
    %cst_93 = arith.constant 3.200000e+01 : f32
    %268 = vector.broadcast %cst_93 : f32 to vector<16x1xf32>
    %269 = arith.divf %267, %268 : vector<16x1xf32>
    %270 = vector.broadcast %262 : vector<16x1xf32> to vector<16x32xf32>
    %271 = arith.subf %258, %270 : vector<16x32xf32>
    %cst_94 = arith.constant 9.99999974E-6 : f32
    %272 = vector.broadcast %cst_94 : f32 to vector<16x1xf32>
    %273 = arith.addf %269, %272 : vector<16x1xf32>
    %274 = math.rsqrt %273 : vector<16x1xf32>
    %275 = vector.broadcast %274 : vector<16x1xf32> to vector<16x32xf32>
    %276 = arith.mulf %271, %275 : vector<16x32xf32>
    %277 = arith.mulf %276, %54 : vector<16x32xf32>
    %278 = arith.addf %277, %57 : vector<16x32xf32>
    %c0_95 = arith.constant 0 : index
    %c0_96 = arith.constant 0 : index
    %279 = vector.load %arg6[%c0_95, %c0_96] : memref<32x64xf32, #tpu.memory_space<vmem>>, vector<32x64xf32>
    %cst_97 = arith.constant dense<0.000000e+00> : vector<16x64xf32>
    %280 = tpu.matmul %278, %279, %cst_97 {dimension_numbers = #tpu.dot_dimension_numbers<[1], [0], [0], [1], [0, 0, 1, 1], [], []>} : vector<16x32xf32>, vector<32x64xf32>, vector<16x64xf32> -> vector<16x64xf32>
    %281 = arith.addf %280, %48 : vector<16x64xf32>
    %cst_98 = arith.constant 0.000000e+00 : f32
    %282 = vector.broadcast %cst_98 : f32 to vector<16x64xf32>
    %283 = arith.maximumf %281, %282 : vector<16x64xf32>
    %c0_99 = arith.constant 0 : index
    %c0_100 = arith.constant 0 : index
    %284 = vector.load %arg8[%c0_99, %c0_100] : memref<64x32xf32, #tpu.memory_space<vmem>>, vector<64x32xf32>
    %cst_101 = arith.constant dense<0.000000e+00> : vector<16x32xf32>
    %285 = tpu.matmul %283, %284, %cst_101 {dimension_numbers = #tpu.dot_dimension_numbers<[1], [0], [0], [1], [0, 0, 1, 1], [], []>} : vector<16x64xf32>, vector<64x32xf32>, vector<16x32xf32> -> vector<16x32xf32>
    %286 = arith.addf %285, %51 : vector<16x32xf32>
    %287 = arith.addf %278, %286 : vector<16x32xf32>
    %cst_102 = arith.constant dense<0.000000e+00> : vector<16xf32>
    %288 = vector.multi_reduction <add>, %287, %cst_102 [1] : vector<16x32xf32> to vector<16xf32>
    %289 = vector.shape_cast %288 : vector<16xf32> to vector<16x1xf32>
    %cst_103 = arith.constant 3.200000e+01 : f32
    %290 = vector.broadcast %cst_103 : f32 to vector<16x1xf32>
    %291 = arith.divf %289, %290 : vector<16x1xf32>
    %292 = vector.broadcast %291 : vector<16x1xf32> to vector<16x32xf32>
    %293 = arith.subf %287, %292 : vector<16x32xf32>
    %294 = arith.mulf %293, %293 : vector<16x32xf32>
    %cst_104 = arith.constant dense<0.000000e+00> : vector<16xf32>
    %295 = vector.multi_reduction <add>, %294, %cst_104 [1] : vector<16x32xf32> to vector<16xf32>
    %296 = vector.shape_cast %295 : vector<16xf32> to vector<16x1xf32>
    %cst_105 = arith.constant 3.200000e+01 : f32
    %297 = vector.broadcast %cst_105 : f32 to vector<16x1xf32>
    %298 = arith.divf %296, %297 : vector<16x1xf32>
    %299 = vector.broadcast %291 : vector<16x1xf32> to vector<16x32xf32>
    %300 = arith.subf %287, %299 : vector<16x32xf32>
    %cst_106 = arith.constant 9.99999974E-6 : f32
    %301 = vector.broadcast %cst_106 : f32 to vector<16x1xf32>
    %302 = arith.addf %298, %301 : vector<16x1xf32>
    %303 = math.rsqrt %302 : vector<16x1xf32>
    %304 = vector.broadcast %303 : vector<16x1xf32> to vector<16x32xf32>
    %305 = arith.mulf %300, %304 : vector<16x32xf32>
    %306 = arith.mulf %305, %60 : vector<16x32xf32>
    %307 = arith.addf %306, %63 : vector<16x32xf32>
    %c0_107 = arith.constant 0 : index
    %c0_108 = arith.constant 0 : index
    %308 = vector.load %arg14[%c0_107, %c0_108] : memref<1x32xf32, #tpu.memory_space<vmem>>, vector<1x32xf32>
    %c0_109 = arith.constant 0 : index
    %c0_110 = arith.constant 0 : index
    %309 = vector.load %arg15[%c0_109, %c0_110] : memref<1x32xf32, #tpu.memory_space<vmem>>, vector<1x32xf32>
    %cst_111 = arith.constant dense<0.000000e+00> : vector<16xf32>
    %310 = vector.multi_reduction <add>, %307, %cst_111 [1] : vector<16x32xf32> to vector<16xf32>
    %311 = vector.shape_cast %310 : vector<16xf32> to vector<16x1xf32>
    %cst_112 = arith.constant 3.200000e+01 : f32
    %312 = vector.broadcast %cst_112 : f32 to vector<16x1xf32>
    %313 = arith.divf %311, %312 : vector<16x1xf32>
    %314 = vector.broadcast %313 : vector<16x1xf32> to vector<16x32xf32>
    %315 = arith.subf %307, %314 : vector<16x32xf32>
    %316 = arith.mulf %315, %315 : vector<16x32xf32>
    %cst_113 = arith.constant dense<0.000000e+00> : vector<16xf32>
    %317 = vector.multi_reduction <add>, %316, %cst_113 [1] : vector<16x32xf32> to vector<16xf32>
    %318 = vector.shape_cast %317 : vector<16xf32> to vector<16x1xf32>
    %cst_114 = arith.constant 3.200000e+01 : f32
    %319 = vector.broadcast %cst_114 : f32 to vector<16x1xf32>
    %320 = arith.divf %318, %319 : vector<16x1xf32>
    %321 = vector.broadcast %313 : vector<16x1xf32> to vector<16x32xf32>
    %322 = arith.subf %307, %321 : vector<16x32xf32>
    %cst_115 = arith.constant 9.99999974E-6 : f32
    %323 = vector.broadcast %cst_115 : f32 to vector<16x1xf32>
    %324 = arith.addf %320, %323 : vector<16x1xf32>
    %325 = math.rsqrt %324 : vector<16x1xf32>
    %326 = vector.broadcast %325 : vector<16x1xf32> to vector<16x32xf32>
    %327 = arith.mulf %322, %326 : vector<16x32xf32>
    %328 = vector.broadcast %308 : vector<1x32xf32> to vector<16x32xf32>
    %329 = arith.mulf %327, %328 : vector<16x32xf32>
    %330 = vector.broadcast %309 : vector<1x32xf32> to vector<16x32xf32>
    %331 = arith.addf %329, %330 : vector<16x32xf32>
    %c0_116 = arith.constant 0 : index
    %c0_117 = arith.constant 0 : index
    %332 = vector.load %arg16[%c0_116, %c0_117] : memref<16x32xf32, #tpu.memory_space<vmem>>, vector<16x32xf32>
    tpu.vector_store %arg16[%c0_116, %c0_117], %331 {strides = array<i32>} : memref<16x32xf32, #tpu.memory_space<vmem>>, vector<16x32xf32>,
    return
  }
}

</mosaic_0001>

<llo_original>
// kernel: transformer_encoder.1
$region0: #{transformer_encoder.1}
  #allocation0 [shape = 'u32[]', space=smem, size = 0x4, offset = 0x4, fixed_abs, tag = 'smem constant byte address 0x4 - core index']
  #allocation1 [shape = 'u32[144,128]{1,0:T(1,128)}', space=vmem, size = 0x12000, scoped, tag = 'internal scratch']
  %s0 = inlined_call_operand.vmem [shape: f32[16,32], index: 0, kind: input, shape index: {}]
  %s1 = inlined_call_operand.vmem [shape: f32[16,32], index: 1, kind: input, shape index: {}]
  %s2 = inlined_call_operand.vmem [shape: f32[64,128], index: 2, kind: input, shape index: {}]
  %s3 = inlined_call_operand.vmem [shape: f32[1,128], index: 3, kind: input, shape index: {}]
  %s4 = inlined_call_operand.vmem [shape: f32[32,32], index: 4, kind: input, shape index: {}]
  %s5 = inlined_call_operand.vmem [shape: f32[1,32], index: 5, kind: input, shape index: {}]
  %s6 = inlined_call_operand.vmem [shape: f32[32,64], index: 6, kind: input, shape index: {}]
  %s7 = inlined_call_operand.vmem [shape: f32[1,64], index: 7, kind: input, shape index: {}]
  %s8 = inlined_call_operand.vmem [shape: f32[64,32], index: 8, kind: input, shape index: {}]
  %s9 = inlined_call_operand.vmem [shape: f32[1,32], index: 9, kind: input, shape index: {}]
  %s10 = inlined_call_operand.vmem [shape: f32[1,32], index: 10, kind: input, shape index: {}]
  %s11 = inlined_call_operand.vmem [shape: f32[1,32], index: 11, kind: input, shape index: {}]
  %s12 = inlined_call_operand.vmem [shape: f32[1,32], index: 12, kind: input, shape index: {}]
  %s13 = inlined_call_operand.vmem [shape: f32[1,32], index: 13, kind: input, shape index: {}]
  %s14 = inlined_call_operand.vmem [shape: f32[1,32], index: 14, kind: input, shape index: {}]
  %s15 = inlined_call_operand.vmem [shape: f32[1,32], index: 15, kind: input, shape index: {}]
  %s16 = inlined_call_operand.hbm [shape: f32[16,32], index: 16, kind: output, shape index: {}]
  %s17 = sld [smem:[#allocation0]]
  $region74: #{transformer_encoder.1} parent=0
    _
  %s19 = ssub.s32 1, %s17
  %s20 = scalar_select 0, %s19, %s17
  $region1: #{transformer_encoder.1} parent=0
    #allocation2 [shape = 'u8[8192]{0}', space=vmem, size = 0x2000, scoped, tag = 'output window, operand 0, single buffered']
    #allocation3 [shape = 's32[1]{0}', space=sflag, size = 0x4, scoped, tag = 'scoped memory for transformer_encoder.1']
    %21 = vsyncpa [#allocation3], 0
    // Predicated region
    $region2: #{transformer_encoder.1} parent=1 // pred_check
      _
    $region3: #{transformer_encoder.1} parent=1 // pred_check_branch
      %23 = sbr.rel (0) target = $region5
    $region4: #{transformer_encoder.1} parent=1 // pred_region
      _
    $region5: #{transformer_encoder.1} parent=1 // pred_fallthru
      _
    // Predicated region
    $region6: #{transformer_encoder.1} parent=1 // pred_check
      _
    $region7: #{transformer_encoder.1} parent=1 // pred_check_branch
      %25 = sbr.rel (0) target = $region9
    $region8: #{transformer_encoder.1} parent=1 // pred_region
      _
    $region9: #{transformer_encoder.1} parent=1 // pred_fallthru
      _
    // Predicated region
    $region10: #{transformer_encoder.1} parent=1 // pred_check
      _
    $region11: #{transformer_encoder.1} parent=1 // pred_check_branch
      %27 = sbr.rel (0) target = $region13
    $region12: #{transformer_encoder.1} parent=1 // pred_region
      _
    $region13: #{transformer_encoder.1} parent=1 // pred_fallthru
      _
    // Predicated region
    $region14: #{transformer_encoder.1} parent=1 // pred_check
      _
    $region15: #{transformer_encoder.1} parent=1 // pred_check_branch
      %29 = sbr.rel (0) target = $region17
    $region16: #{transformer_encoder.1} parent=1 // pred_region
      _
    $region17: #{transformer_encoder.1} parent=1 // pred_fallthru
      _
    // Predicated region
    $region18: #{transformer_encoder.1} parent=1 // pred_check
      _
    $region19: #{transformer_encoder.1} parent=1 // pred_check_branch
      %31 = sbr.rel (0) target = $region21
    $region20: #{transformer_encoder.1} parent=1 // pred_region
      _
    $region21: #{transformer_encoder.1} parent=1 // pred_fallthru
      _
    // Predicated region
    $region22: #{transformer_encoder.1} parent=1 // pred_check
      _
    $region23: #{transformer_encoder.1} parent=1 // pred_check_branch
      %33 = sbr.rel (0) target = $region25
    $region24: #{transformer_encoder.1} parent=1 // pred_region
      _
    $region25: #{transformer_encoder.1} parent=1 // pred_fallthru
      _
    // Predicated region
    $region26: #{transformer_encoder.1} parent=1 // pred_check
      _
    $region27: #{transformer_encoder.1} parent=1 // pred_check_branch
      %35 = sbr.rel (0) target = $region29
    $region28: #{transformer_encoder.1} parent=1 // pred_region
      _
    $region29: #{transformer_encoder.1} parent=1 // pred_fallthru
      _
    // Predicated region
    $region30: #{transformer_encoder.1} parent=1 // pred_check
      _
    $region31: #{transformer_encoder.1} parent=1 // pred_check_branch
      %37 = sbr.rel (0) target = $region33
    $region32: #{transformer_encoder.1} parent=1 // pred_region
      _
    $region33: #{transformer_encoder.1} parent=1 // pred_fallthru
      _
    // Predicated region
    $region34: #{transformer_encoder.1} parent=1 // pred_check
      _
    $region35: #{transformer_encoder.1} parent=1 // pred_check_branch
      %39 = sbr.rel (0) target = $region37
    $region36: #{transformer_encoder.1} parent=1 // pred_region
      _
    $region37: #{transformer_encoder.1} parent=1 // pred_fallthru
      _
    // Predicated region
    $region38: #{transformer_encoder.1} parent=1 // pred_check
      _
    $region39: #{transformer_encoder.1} parent=1 // pred_check_branch
      %41 = sbr.rel (0) target = $region41
    $region40: #{transformer_encoder.1} parent=1 // pred_region
      _
    $region41: #{transformer_encoder.1} parent=1 // pred_fallthru
      _
    // Predicated region
    $region42: #{transformer_encoder.1} parent=1 // pred_check
      _
    $region43: #{transformer_encoder.1} parent=1 // pred_check_branch
      %43 = sbr.rel (0) target = $region45
    $region44: #{transformer_encoder.1} parent=1 // pred_region
      _
    $region45: #{transformer_encoder.1} parent=1 // pred_fallthru
      _
    // Predicated region
    $region46: #{transformer_encoder.1} parent=1 // pred_check
      _
    $region47: #{transformer_encoder.1} parent=1 // pred_check_branch
      %45 = sbr.rel (0) target = $region49
    $region48: #{transformer_encoder.1} parent=1 // pred_region
      _
    $region49: #{transformer_encoder.1} parent=1 // pred_fallthru
      _
    // Predicated region
    $region50: #{transformer_encoder.1} parent=1 // pred_check
      _
    $region51: #{transformer_encoder.1} parent=1 // pred_check_branch
      %47 = sbr.rel (0) target = $region53
    $region52: #{transformer_encoder.1} parent=1 // pred_region
      _
    $region53: #{transformer_encoder.1} parent=1 // pred_fallthru
      _
    // Predicated region
    $region54: #{transformer_encoder.1} parent=1 // pred_check
      _
    $region55: #{transformer_encoder.1} parent=1 // pred_check_branch
      %49 = sbr.rel (0) target = $region57
    $region56: #{transformer_encoder.1} parent=1 // pred_region
      _
    $region57: #{transformer_encoder.1} parent=1 // pred_fallthru
      _
    // Predicated region
    $region58: #{transformer_encoder.1} parent=1 // pred_check
      _
    $region59: #{transformer_encoder.1} parent=1 // pred_check_branch
      %51 = sbr.rel (0) target = $region61
    $region60: #{transformer_encoder.1} parent=1 // pred_region
      _
    $region61: #{transformer_encoder.1} parent=1 // pred_fallthru
      _
    // Predicated region
    $region62: #{transformer_encoder.1} parent=1 // pred_check
      _
    $region63: #{transformer_encoder.1} parent=1 // pred_check_branch
      %53 = sbr.rel (0) target = $region65
    $region64: #{transformer_encoder.1} parent=1 // pred_region
      _
    $region65: #{transformer_encoder.1} parent=1 // pred_fallthru
      _
    %v54 = vld [vmem:[%s0] sm:$0xff]
    %v55 = vld [vmem:[%s0 + $0x8] sm:$0xff]
    %v56 = vld [vmem:[%s1] sm:$0xff]
    %v57 = vld [vmem:[%s1 + $0x8] sm:$0xff]
    %v58 = vlaneseq
    %v59 = vshrl.u32 %v58, 7
    %v60 = vadd.s32 %v59, 8
    %v61 = vlaneseq
    %v62 = vand.u32 %v61, 127
    %vm63 = vcmp.lt.s32.totalorder %v59, 0
    %v64 = vsub.s32 0, %v59
    %v65 = vsel %vm63, %v64, %v59
    %v66 = vshrl.u32 %v65, 1
    %v67 = vand.u32 %v65, 1
    %v68 = vsub.s32 0, %v67
    %v69 = vsel %vm63, %v68, %v67
    %vm70 = vcmp.lt.s32.totalorder %v60, 0
    %v71 = vsub.s32 0, %v60
    %v72 = vsel %vm70, %v71, %v60
    %v73 = vshrl.u32 %v72, 1
    %v74 = vand.u32 %v72, 1
    %v75 = vsub.s32 0, %v74
    %v76 = vsel %vm70, %v75, %v74
    %vm77 = vcmp.ne.s32.totalorder %v69, 0
    %vm78 = vcmp.ne.s32.totalorder %v76, 0
    %vm79 = vcmp.lt.s32.totalorder %v69, 0
    %vm80 = vcmp.lt.s32.totalorder %v76, 0
    %vm81 = vmand %vm79, %vm77
    %vm82 = vmand %vm80, %vm78
    %v83 = vadd.s32 %v69, 2
    %v84 = vadd.s32 %v76, 2
    %v85 = vsel %vm81, %v83, %v69
    %v86 = vsel %vm82, %v84, %v76
    %vm87 = vcmp.lt.s32.totalorder %v62, 0
    %v88 = vsub.s32 0, %v62
    %v89 = vsel %vm87, %v88, %v62
    %v90 = vshrl.u32 %v89, 1
    %v91 = vand.u32 %v89, 1
    %v92 = vsub.s32 0, %v91
    %v93 = vsel %vm87, %v92, %v91
    %vm94 = vcmp.ne.s32.totalorder %v93, 0
    %vm95 = vcmp.lt.s32.totalorder %v93, 0
    %vm96 = vmand %vm95, %vm94
    %v97 = vadd.s32 %v93, 2
    %v98 = vsel %vm96, %v97, %v93
    %vm99 = vcmp.eq.s32.totalorder %v85, %v98
    %vm100 = vcmp.eq.s32.totalorder %v86, %v98
    %v101 = vsel %vm99, 0.0, -1e+30
    %v102 = vsel %vm100, 0.0, -1e+30
    %v103 = vld [vmem:[%s3] sm:$0x1]
    %v105 = vlaneseq
    %v106 = vshrl.u32 %v105, 7
    %v107 = vsub.s32 0, %v106
    %v108 = vrot.slane %v103, %v107
    %v110 = vld [vmem:[%s5] sm:$0x1]
    %v112 = vlaneseq
    %v113 = vshrl.u32 %v112, 7
    %v114 = vsub.s32 0, %v113
    %v115 = vrot.slane %v110, %v114
    %v117 = vld [vmem:[%s7] sm:$0x1]
    %v119 = vlaneseq
    %v120 = vshrl.u32 %v119, 7
    %v121 = vsub.s32 0, %v120
    %v122 = vrot.slane %v117, %v121
    %v124 = vld [vmem:[%s9] sm:$0x1]
    %v126 = vlaneseq
    %v127 = vshrl.u32 %v126, 7
    %v128 = vsub.s32 0, %v127
    %v129 = vrot.slane %v124, %v128
    %v131 = vld [vmem:[%s10] sm:$0x1]
    %v133 = vlaneseq
    %v134 = vshrl.u32 %v133, 7
    %v135 = vsub.s32 0, %v134
    %v136 = vrot.slane %v131, %v135
    %v138 = vld [vmem:[%s11] sm:$0x1]
    %v140 = vlaneseq
    %v141 = vshrl.u32 %v140, 7
    %v142 = vsub.s32 0, %v141
    %v143 = vrot.slane %v138, %v142
    %v145 = vld [vmem:[%s12] sm:$0x1]
    %v147 = vlaneseq
    %v148 = vshrl.u32 %v147, 7
    %v149 = vsub.s32 0, %v148
    %v150 = vrot.slane %v145, %v149
    %v152 = vld [vmem:[%s13] sm:$0x1]
    %v154 = vlaneseq
    %v155 = vshrl.u32 %v154, 7
    %v156 = vsub.s32 0, %v155
    %v157 = vrot.slane %v152, %v156
    %161 = vrot.lane.b32.xlu0 %v56, 32
    %v162 = vpop.permute.xlu0 %161
    %163 = vrot.lane.b32.xlu0 %v57, 32
    %v164 = vpop.permute.xlu0 %163
    %vm167 = vcmask 261120
    %v168 = vsel %vm167, %v54, %v162
    %v169 = vsel %vm167, %v55, %v164
    %v170 = vld [vmem:[%s2] sm:$0xff]
    %v171 = vld [vmem:[%s2 + $0x8] sm:$0xff]
    %v172 = vld [vmem:[%s2 + $0x10] sm:$0xff]
    %v173 = vld [vmem:[%s2 + $0x18] sm:$0xff]
    %v174 = vld [vmem:[%s2 + $0x20] sm:$0xff]
    %v175 = vld [vmem:[%s2 + $0x28] sm:$0xff]
    %v176 = vld [vmem:[%s2 + $0x30] sm:$0xff]
    %v177 = vld [vmem:[%s2 + $0x38] sm:$0xff]
    %vm178 = vcmask 523264
    %v180 = vsel %vm178, %v168, 0
    %v183 = vsel %vm178, %v169, 0
    %185 = vmatprep.subr.mxu0 0.0
    %186 = vmatpush1.msra.mxu0 %v170
    %187 = vmatprep.subr.mxu0 0.0
    %188 = vmatpush1.msra.mxu0 %v171
    %189 = vmatprep.subr.mxu0 0.0
    %190 = vmatpush1.msra.mxu0 %v172
    %191 = vmatprep.subr.mxu0 0.0
    %192 = vmatpush1.msra.mxu0 %v173
    %193 = vmatprep.subr.mxu0 0.0
    %194 = vmatpush1.msra.mxu0 %v174
    %195 = vmatprep.subr.mxu0 0.0
    %196 = vmatpush1.msra.mxu0 %v175
    %197 = vmatprep.subr.mxu0 0.0
    %198 = vmatpush1.msra.mxu0 %v176
    %199 = vmatprep.subr.mxu0 0.0
    %200 = vmatpush1.msra.mxu0 %v177
    %201 = vmatprep.subr.mxu0 0.0
    %202 = vmatpush1.msra.mxu0 0.0
    %203 = vmatprep.subr.mxu0 0.0
    %204 = vmatpush1.msra.mxu0 0.0
    %205 = vmatprep.subr.mxu0 0.0
    %206 = vmatpush1.msra.mxu0 0.0
    %207 = vmatprep.subr.mxu0 0.0
    %208 = vmatpush1.msra.mxu0 0.0
    %209 = vmatprep.subr.mxu0 0.0
    %210 = vmatpush1.msra.mxu0 0.0
    %211 = vmatprep.subr.mxu0 0.0
    %212 = vmatpush1.msra.mxu0 0.0
    %213 = vmatprep.subr.mxu0 0.0
    %214 = vmatpush1.msra.mxu0 0.0
    %215 = vmatprep.subr.mxu0 0.0
    %216 = vmatpush1.msra.mxu0 0.0
    %217 = vmatprep.subr.mxu0 0.0
    %218 = vmatpush1.msra.mxu0 0.0
    %219 = vmatprep.subr.mxu0 0.0
    %220 = vmatpush1.msra.mxu0 0.0
    %221 = vmatprep.subr.mxu0 0.0
    %222 = vmatpush1.msra.mxu0 0.0
    %223 = vmatprep.subr.mxu0 0.0
    %224 = vmatpush1.msra.mxu0 0.0
    %225 = vmatprep.subr.mxu0 0.0
    %226 = vmatpush1.msra.mxu0 0.0
    %227 = vmatprep.subr.mxu0 0.0
    %228 = vmatpush1.msra.mxu0 0.0
    %229 = vmatprep.subr.mxu0 0.0
    %230 = vmatpush1.msra.mxu0 0.0
    %231 = vmatprep.subr.mxu0 0.0
    %232 = vmatpush1.msra.mxu0 0.0
    %233 = vmatprep.subr.mxu0 0.0
    %234 = vmatpush1.msra.mxu0 0.0
    %235 = vmatprep.subr.mxu0 0.0
    %236 = vmatpush1.msra.mxu0 0.0
    %237 = vmatprep.subr.mxu0 0.0
    %238 = vmatpush1.msra.mxu0 0.0
    %239 = vmatprep.subr.mxu0 0.0
    %240 = vmatpush1.msra.mxu0 0.0
    %241 = vmatprep.subr.mxu0 0.0
    %242 = vmatpush1.msra.mxu0 0.0
    %243 = vmatprep.subr.mxu0 0.0
    %244 = vmatpush1.msra.mxu0 0.0
    %245 = vmatprep.subr.mxu0 0.0
    %246 = vmatpush1.msra.mxu0 0.0
    %247 = vmatprep.subr.mxu0 0.0
    %248 = vmatpush1.msra.mxu0 0.0
    %249 = vmatprep.mubr.f32.mxu0 0.0
    %250 = vmatmul.mubr.f32.gmra.mrb[0].mxu0 %v180
    %v251 = vpop.f32.mrb[0].mxu0
    %v252 = vadd.f32 %v108, %v251
    %v253 = vpop.f32.mrb[0].mxu0
    %254 = vmatprep.mubr.f32.mxu0 0.0
    %255 = vmatmul.mubr.f32.gmra.mrb[0].mxu0 %v183
    %v256 = vpop.f32.mrb[0].mxu0
    %v257 = vadd.f32 %v108, %v256
    %v258 = vpop.f32.mrb[0].mxu0
    %259 = vdwg.mxu0
    %262 = vrot.lane.b32.xlu0 %v252, 96
    %v263 = vpop.permute.xlu0 %262
    %264 = vrot.lane.b32.xlu0 %v257, 96
    %v265 = vpop.permute.xlu0 %264
    %vm266 = vcmask 64512
    %v267 = vsel %vm266, %v252, 0
    %v269 = vsel %vm266, %v257, 0
    %v271 = vsel %vm266, %v263, 0
    %v273 = vsel %vm266, %v265, 0
    %275 = vmatprep.subr.mxu0 0.0
    %276 = vmatpush1.xpose.msra.mxu0 %v271
    %277 = vmatprep.subr.mxu0 0.0
    %278 = vmatpush1.xpose.msra.mxu0 %v273
    %279 = vmatprep.subr.mxu0 0.0
    %280 = vmatpush1.xpose.msra.mxu0 0.0
    %281 = vmatprep.subr.mxu0 0.0
    %282 = vmatpush1.xpose.msra.mxu0 0.0
    %283 = vmatprep.subr.mxu0 0.0
    %284 = vmatpush1.xpose.msra.mxu0 0.0
    %285 = vmatprep.subr.mxu0 0.0
    %286 = vmatpush1.xpose.msra.mxu0 0.0
    %287 = vmatprep.subr.mxu0 0.0
    %288 = vmatpush1.xpose.msra.mxu0 0.0
    %289 = vmatprep.subr.mxu0 0.0
    %290 = vmatpush1.xpose.msra.mxu0 0.0
    %291 = vmatprep.subr.mxu0 0.0
    %292 = vmatpush1.xpose.msra.mxu0 0.0
    %293 = vmatprep.subr.mxu0 0.0
    %294 = vmatpush1.xpose.msra.mxu0 0.0
    %295 = vmatprep.subr.mxu0 0.0
    %296 = vmatpush1.xpose.msra.mxu0 0.0
    %297 = vmatprep.subr.mxu0 0.0
    %298 = vmatpush1.xpose.msra.mxu0 0.0
    %299 = vmatprep.subr.mxu0 0.0
    %300 = vmatpush1.xpose.msra.mxu0 0.0
    %301 = vmatprep.subr.mxu0 0.0
    %302 = vmatpush1.xpose.msra.mxu0 0.0
    %303 = vmatprep.subr.mxu0 0.0
    %304 = vmatpush1.xpose.msra.mxu0 0.0
    %305 = vmatprep.subr.mxu0 0.0
    %306 = vmatpush1.xpose.msra.mxu0 0.0
    %307 = vmatprep.subr.mxu0 0.0
    %308 = vmatpush1.xpose.msra.mxu0 0.0
    %309 = vmatprep.subr.mxu0 0.0
    %310 = vmatpush1.xpose.msra.mxu0 0.0
    %311 = vmatprep.subr.mxu0 0.0
    %312 = vmatpush1.xpose.msra.mxu0 0.0
    %313 = vmatprep.subr.mxu0 0.0
    %314 = vmatpush1.xpose.msra.mxu0 0.0
    %315 = vmatprep.subr.mxu0 0.0
    %316 = vmatpush1.xpose.msra.mxu0 0.0
    %317 = vmatprep.subr.mxu0 0.0
    %318 = vmatpush1.xpose.msra.mxu0 0.0
    %319 = vmatprep.subr.mxu0 0.0
    %320 = vmatpush1.xpose.msra.mxu0 0.0
    %321 = vmatprep.subr.mxu0 0.0
    %322 = vmatpush1.xpose.msra.mxu0 0.0
    %323 = vmatprep.subr.mxu0 0.0
    %324 = vmatpush1.xpose.msra.mxu0 0.0
    %325 = vmatprep.subr.mxu0 0.0
    %326 = vmatpush1.xpose.msra.mxu0 0.0
    %327 = vmatprep.subr.mxu0 0.0
    %328 = vmatpush1.xpose.msra.mxu0 0.0
    %329 = vmatprep.subr.mxu0 0.0
    %330 = vmatpush1.xpose.msra.mxu0 0.0
    %331 = vmatprep.subr.mxu0 0.0
    %332 = vmatpush1.xpose.msra.mxu0 0.0
    %333 = vmatprep.subr.mxu0 0.0
    %334 = vmatpush1.xpose.msra.mxu0 0.0
    %335 = vmatprep.subr.mxu0 0.0
    %336 = vmatpush1.xpose.msra.mxu0 0.0
    %337 = vmatprep.subr.mxu0 0.0
    %338 = vmatpush1.xpose.msra.mxu0 0.0
    %339 = vmatprep.mubr.f32.mxu0 0.0
    %340 = vmatmul.mubr.f32.gmra.mrb[0].mxu0 %v267
    %v341 = vpop.f32.mrb[0].mxu0
    %v342 = vadd.f32 %v101, %v341
    %v343 = vpop.f32.mrb[0].mxu0
    %344 = vmatprep.mubr.f32.mxu0 0.0
    %345 = vmatmul.mubr.f32.gmra.mrb[0].mxu0 %v269
    %v346 = vpop.f32.mrb[0].mxu0
    %v347 = vadd.f32 %v102, %v346
    %v348 = vpop.f32.mrb[0].mxu0
    %349 = vdwg.mxu0
    %vm350 = vcmask 130048
    %v351 = vsel %vm350, %v342, -inf
    %352 = vmax.xlane.f32.xlu0 %v351
    %v353 = vpop.xlane.xlu0 %352
    %v354 = vsel %vm350, %v347, -inf
    %355 = vmax.xlane.f32.xlu0 %v354
    %v356 = vpop.xlane.xlu0 %355
    %v357 = vsub.f32 %v342, %v353
    %v358 = vsub.f32 %v347, %v356
    %v359 = vmul.f32 %v357, 1.442695
    %v360 = vpow.pop %v359
    %v361 = vmul.f32 %v358, 1.442695
    %v362 = vpow.pop %v361
    %v363 = vsel %vm350, %v360, 0.0
    %364 = vadd.xlane.f32.xlu0 %v363
    %v365 = vpop.xlane.xlu0 %364
    %v366 = vsel %vm350, %v362, 0.0
    %367 = vadd.xlane.f32.xlu0 %v366
    %v368 = vpop.xlane.xlu0 %367
    %v369 = vrcp.pop %v365
    %v370 = vmul.f32 %v360, %v369
    %v371 = vrcp.pop %v368
    %v372 = vmul.f32 %v362, %v371
    %373 = vrot.lane.b32.xlu0 %v252, 64
    %v374 = vpop.permute.xlu0 %373
    %375 = vrot.lane.b32.xlu0 %v257, 64
    %v376 = vpop.permute.xlu0 %375
    %v380 = vsel %vm350, %v370, 0
    %v383 = vsel %vm350, %v372, 0
    %385 = vmatprep.subr.mxu0 0.0
    %386 = vmatpush1.msra.mxu0 %v374
    %387 = vmatprep.subr.mxu0 0.0
    %388 = vmatpush1.msra.mxu0 %v376
    %389 = vmatprep.subr.mxu0 0.0
    %390 = vmatpush1.msra.mxu0 0.0
    %391 = vmatprep.subr.mxu0 0.0
    %392 = vmatpush1.msra.mxu0 0.0
    %393 = vmatprep.subr.mxu0 0.0
    %394 = vmatpush1.msra.mxu0 0.0
    %395 = vmatprep.subr.mxu0 0.0
    %396 = vmatpush1.msra.mxu0 0.0
    %397 = vmatprep.subr.mxu0 0.0
    %398 = vmatpush1.msra.mxu0 0.0
    %399 = vmatprep.subr.mxu0 0.0
    %400 = vmatpush1.msra.mxu0 0.0
    %401 = vmatprep.subr.mxu0 0.0
    %402 = vmatpush1.msra.mxu0 0.0
    %403 = vmatprep.subr.mxu0 0.0
    %404 = vmatpush1.msra.mxu0 0.0
    %405 = vmatprep.subr.mxu0 0.0
    %406 = vmatpush1.msra.mxu0 0.0
    %407 = vmatprep.subr.mxu0 0.0
    %408 = vmatpush1.msra.mxu0 0.0
    %409 = vmatprep.subr.mxu0 0.0
    %410 = vmatpush1.msra.mxu0 0.0
    %411 = vmatprep.subr.mxu0 0.0
    %412 = vmatpush1.msra.mxu0 0.0
    %413 = vmatprep.subr.mxu0 0.0
    %414 = vmatpush1.msra.mxu0 0.0
    %415 = vmatprep.subr.mxu0 0.0
    %416 = vmatpush1.msra.mxu0 0.0
    %417 = vmatprep.subr.mxu0 0.0
    %418 = vmatpush1.msra.mxu0 0.0
    %419 = vmatprep.subr.mxu0 0.0
    %420 = vmatpush1.msra.mxu0 0.0
    %421 = vmatprep.subr.mxu0 0.0
    %422 = vmatpush1.msra.mxu0 0.0
    %423 = vmatprep.subr.mxu0 0.0
    %424 = vmatpush1.msra.mxu0 0.0
    %425 = vmatprep.subr.mxu0 0.0
    %426 = vmatpush1.msra.mxu0 0.0
    %427 = vmatprep.subr.mxu0 0.0
    %428 = vmatpush1.msra.mxu0 0.0
    %429 = vmatprep.subr.mxu0 0.0
    %430 = vmatpush1.msra.mxu0 0.0
    %431 = vmatprep.subr.mxu0 0.0
    %432 = vmatpush1.msra.mxu0 0.0
    %433 = vmatprep.subr.mxu0 0.0
    %434 = vmatpush1.msra.mxu0 0.0
    %435 = vmatprep.subr.mxu0 0.0
    %436 = vmatpush1.msra.mxu0 0.0
    %437 = vmatprep.subr.mxu0 0.0
    %438 = vmatpush1.msra.mxu0 0.0
    %439 = vmatprep.subr.mxu0 0.0
    %440 = vmatpush1.msra.mxu0 0.0
    %441 = vmatprep.subr.mxu0 0.0
    %442 = vmatpush1.msra.mxu0 0.0
    %443 = vmatprep.subr.mxu0 0.0
    %444 = vmatpush1.msra.mxu0 0.0
    %445 = vmatprep.subr.mxu0 0.0
    %446 = vmatpush1.msra.mxu0 0.0
    %447 = vmatprep.subr.mxu0 0.0
    %448 = vmatpush1.msra.mxu0 0.0
    %449 = vmatprep.mubr.f32.mxu0 0.0
    %450 = vmatmul.mubr.f32.gmra.mrb[0].mxu0 %v380
    %v451 = vpop.f32.mrb[0].mxu0
    %v452 = vadd.f32 0.0, %v451
    %v453 = vpop.f32.mrb[0].mxu0
    %454 = vmatprep.mubr.f32.mxu0 0.0
    %455 = vmatmul.mubr.f32.gmra.mrb[0].mxu0 %v383
    %v456 = vpop.f32.mrb[0].mxu0
    %v457 = vadd.f32 0.0, %v456
    %v458 = vpop.f32.mrb[0].mxu0
    %459 = vdwg.mxu0
    %460 = vrot.lane.b32.xlu0 %v252, 120
    %v461 = vpop.permute.xlu0 %460
    %462 = vrot.lane.b32.xlu0 %v257, 120
    %v463 = vpop.permute.xlu0 %462
    %464 = vrot.lane.b32.xlu0 %v252, 88
    %v465 = vpop.permute.xlu0 %464
    %466 = vrot.lane.b32.xlu0 %v257, 88
    %v467 = vpop.permute.xlu0 %466
    %v468 = vsel %vm266, %v461, 0
    %v470 = vsel %vm266, %v463, 0
    %v472 = vsel %vm266, %v465, 0
    %v474 = vsel %vm266, %v467, 0
    %476 = vmatprep.subr.mxu0 0.0
    %477 = vmatpush1.xpose.msra.mxu0 %v472
    %478 = vmatprep.subr.mxu0 0.0
    %479 = vmatpush1.xpose.msra.mxu0 %v474
    %480 = vmatprep.subr.mxu0 0.0
    %481 = vmatpush1.xpose.msra.mxu0 0.0
    %482 = vmatprep.subr.mxu0 0.0
    %483 = vmatpush1.xpose.msra.mxu0 0.0
    %484 = vmatprep.subr.mxu0 0.0
    %485 = vmatpush1.xpose.msra.mxu0 0.0
    %486 = vmatprep.subr.mxu0 0.0
    %487 = vmatpush1.xpose.msra.mxu0 0.0
    %488 = vmatprep.subr.mxu0 0.0
    %489 = vmatpush1.xpose.msra.mxu0 0.0
    %490 = vmatprep.subr.mxu0 0.0
    %491 = vmatpush1.xpose.msra.mxu0 0.0
    %492 = vmatprep.subr.mxu0 0.0
    %493 = vmatpush1.xpose.msra.mxu0 0.0
    %494 = vmatprep.subr.mxu0 0.0
    %495 = vmatpush1.xpose.msra.mxu0 0.0
    %496 = vmatprep.subr.mxu0 0.0
    %497 = vmatpush1.xpose.msra.mxu0 0.0
    %498 = vmatprep.subr.mxu0 0.0
    %499 = vmatpush1.xpose.msra.mxu0 0.0
    %500 = vmatprep.subr.mxu0 0.0
    %501 = vmatpush1.xpose.msra.mxu0 0.0
    %502 = vmatprep.subr.mxu0 0.0
    %503 = vmatpush1.xpose.msra.mxu0 0.0
    %504 = vmatprep.subr.mxu0 0.0
    %505 = vmatpush1.xpose.msra.mxu0 0.0
    %506 = vmatprep.subr.mxu0 0.0
    %507 = vmatpush1.xpose.msra.mxu0 0.0
    %508 = vmatprep.subr.mxu0 0.0
    %509 = vmatpush1.xpose.msra.mxu0 0.0
    %510 = vmatprep.subr.mxu0 0.0
    %511 = vmatpush1.xpose.msra.mxu0 0.0
    %512 = vmatprep.subr.mxu0 0.0
    %513 = vmatpush1.xpose.msra.mxu0 0.0
    %514 = vmatprep.subr.mxu0 0.0
    %515 = vmatpush1.xpose.msra.mxu0 0.0
    %516 = vmatprep.subr.mxu0 0.0
    %517 = vmatpush1.xpose.msra.mxu0 0.0
    %518 = vmatprep.subr.mxu0 0.0
    %519 = vmatpush1.xpose.msra.mxu0 0.0
    %520 = vmatprep.subr.mxu0 0.0
    %521 = vmatpush1.xpose.msra.mxu0 0.0
    %522 = vmatprep.subr.mxu0 0.0
    %523 = vmatpush1.xpose.msra.mxu0 0.0
    %524 = vmatprep.subr.mxu0 0.0
    %525 = vmatpush1.xpose.msra.mxu0 0.0
    %526 = vmatprep.subr.mxu0 0.0
    %527 = vmatpush1.xpose.msra.mxu0 0.0
    %528 = vmatprep.subr.mxu0 0.0
    %529 = vmatpush1.xpose.msra.mxu0 0.0
    %530 = vmatprep.subr.mxu0 0.0
    %531 = vmatpush1.xpose.msra.mxu0 0.0
    %532 = vmatprep.subr.mxu0 0.0
    %533 = vmatpush1.xpose.msra.mxu0 0.0
    %534 = vmatprep.subr.mxu0 0.0
    %535 = vmatpush1.xpose.msra.mxu0 0.0
    %536 = vmatprep.subr.mxu0 0.0
    %537 = vmatpush1.xpose.msra.mxu0 0.0
    %538 = vmatprep.subr.mxu0 0.0
    %539 = vmatpush1.xpose.msra.mxu0 0.0
    %540 = vmatprep.mubr.f32.mxu0 0.0
    %541 = vmatmul.mubr.f32.gmra.mrb[0].mxu0 %v468
    %v542 = vpop.f32.mrb[0].mxu0
    %v543 = vadd.f32 %v101, %v542
    %v544 = vpop.f32.mrb[0].mxu0
    %545 = vmatprep.mubr.f32.mxu0 0.0
    %546 = vmatmul.mubr.f32.gmra.mrb[0].mxu0 %v470
    %v547 = vpop.f32.mrb[0].mxu0
    %v548 = vadd.f32 %v102, %v547
    %v549 = vpop.f32.mrb[0].mxu0
    %550 = vdwg.mxu0
    %v551 = vsel %vm350, %v543, -inf
    %552 = vmax.xlane.f32.xlu0 %v551
    %v553 = vpop.xlane.xlu0 %552
    %v554 = vsel %vm350, %v548, -inf
    %555 = vmax.xlane.f32.xlu0 %v554
    %v556 = vpop.xlane.xlu0 %555
    %v557 = vsub.f32 %v543, %v553
    %v558 = vsub.f32 %v548, %v556
    %v559 = vmul.f32 %v557, 1.442695
    %v560 = vpow.pop %v559
    %v561 = vmul.f32 %v558, 1.442695
    %v562 = vpow.pop %v561
    %v563 = vsel %vm350, %v560, 0.0
    %564 = vadd.xlane.f32.xlu0 %v563
    %v565 = vpop.xlane.xlu0 %564
    %v566 = vsel %vm350, %v562, 0.0
    %567 = vadd.xlane.f32.xlu0 %v566
    %v568 = vpop.xlane.xlu0 %567
    %v569 = vrcp.pop %v565
    %v570 = vmul.f32 %v560, %v569
    %v571 = vrcp.pop %v568
    %v572 = vmul.f32 %v562, %v571
    %573 = vrot.lane.b32.xlu0 %v252, 56
    %v574 = vpop.permute.xlu0 %573
    %575 = vrot.lane.b32.xlu0 %v257, 56
    %v576 = vpop.permute.xlu0 %575
    %v580 = vsel %vm350, %v570, 0
    %v583 = vsel %vm350, %v572, 0
    %585 = vmatprep.subr.mxu0 0.0
    %586 = vmatpush1.msra.mxu0 %v574
    %587 = vmatprep.subr.mxu0 0.0
    %588 = vmatpush1.msra.mxu0 %v576
    %589 = vmatprep.subr.mxu0 0.0
    %590 = vmatpush1.msra.mxu0 0.0
    %591 = vmatprep.subr.mxu0 0.0
    %592 = vmatpush1.msra.mxu0 0.0
    %593 = vmatprep.subr.mxu0 0.0
    %594 = vmatpush1.msra.mxu0 0.0
    %595 = vmatprep.subr.mxu0 0.0
    %596 = vmatpush1.msra.mxu0 0.0
    %597 = vmatprep.subr.mxu0 0.0
    %598 = vmatpush1.msra.mxu0 0.0
    %599 = vmatprep.subr.mxu0 0.0
    %600 = vmatpush1.msra.mxu0 0.0
    %601 = vmatprep.subr.mxu0 0.0
    %602 = vmatpush1.msra.mxu0 0.0
    %603 = vmatprep.subr.mxu0 0.0
    %604 = vmatpush1.msra.mxu0 0.0
    %605 = vmatprep.subr.mxu0 0.0
    %606 = vmatpush1.msra.mxu0 0.0
    %607 = vmatprep.subr.mxu0 0.0
    %608 = vmatpush1.msra.mxu0 0.0
    %609 = vmatprep.subr.mxu0 0.0
    %610 = vmatpush1.msra.mxu0 0.0
    %611 = vmatprep.subr.mxu0 0.0
    %612 = vmatpush1.msra.mxu0 0.0
    %613 = vmatprep.subr.mxu0 0.0
    %614 = vmatpush1.msra.mxu0 0.0
    %615 = vmatprep.subr.mxu0 0.0
    %616 = vmatpush1.msra.mxu0 0.0
    %617 = vmatprep.subr.mxu0 0.0
    %618 = vmatpush1.msra.mxu0 0.0
    %619 = vmatprep.subr.mxu0 0.0
    %620 = vmatpush1.msra.mxu0 0.0
    %621 = vmatprep.subr.mxu0 0.0
    %622 = vmatpush1.msra.mxu0 0.0
    %623 = vmatprep.subr.mxu0 0.0
    %624 = vmatpush1.msra.mxu0 0.0
    %625 = vmatprep.subr.mxu0 0.0
    %626 = vmatpush1.msra.mxu0 0.0
    %627 = vmatprep.subr.mxu0 0.0
    %628 = vmatpush1.msra.mxu0 0.0
    %629 = vmatprep.subr.mxu0 0.0
    %630 = vmatpush1.msra.mxu0 0.0
    %631 = vmatprep.subr.mxu0 0.0
    %632 = vmatpush1.msra.mxu0 0.0
    %633 = vmatprep.subr.mxu0 0.0
    %634 = vmatpush1.msra.mxu0 0.0
    %635 = vmatprep.subr.mxu0 0.0
    %636 = vmatpush1.msra.mxu0 0.0
    %637 = vmatprep.subr.mxu0 0.0
    %638 = vmatpush1.msra.mxu0 0.0
    %639 = vmatprep.subr.mxu0 0.0
    %640 = vmatpush1.msra.mxu0 0.0
    %641 = vmatprep.subr.mxu0 0.0
    %642 = vmatpush1.msra.mxu0 0.0
    %643 = vmatprep.subr.mxu0 0.0
    %644 = vmatpush1.msra.mxu0 0.0
    %645 = vmatprep.subr.mxu0 0.0
    %646 = vmatpush1.msra.mxu0 0.0
    %647 = vmatprep.subr.mxu0 0.0
    %648 = vmatpush1.msra.mxu0 0.0
    %649 = vmatprep.mubr.f32.mxu0 0.0
    %650 = vmatmul.mubr.f32.gmra.mrb[0].mxu0 %v580
    %v651 = vpop.f32.mrb[0].mxu0
    %v652 = vadd.f32 0.0, %v651
    %v653 = vpop.f32.mrb[0].mxu0
    %654 = vmatprep.mubr.f32.mxu0 0.0
    %655 = vmatmul.mubr.f32.gmra.mrb[0].mxu0 %v583
    %v656 = vpop.f32.mrb[0].mxu0
    %v657 = vadd.f32 0.0, %v656
    %v658 = vpop.f32.mrb[0].mxu0
    %659 = vdwg.mxu0
    %660 = vrot.lane.b32.xlu0 %v252, 112
    %v661 = vpop.permute.xlu0 %660
    %662 = vrot.lane.b32.xlu0 %v257, 112
    %v663 = vpop.permute.xlu0 %662
    %664 = vrot.lane.b32.xlu0 %v252, 80
    %v665 = vpop.permute.xlu0 %664
    %666 = vrot.lane.b32.xlu0 %v257, 80
    %v667 = vpop.permute.xlu0 %666
    %v668 = vsel %vm266, %v661, 0
    %v670 = vsel %vm266, %v663, 0
    %v672 = vsel %vm266, %v665, 0
    %v674 = vsel %vm266, %v667, 0
    %676 = vmatprep.subr.mxu0 0.0
    %677 = vmatpush1.xpose.msra.mxu0 %v672
    %678 = vmatprep.subr.mxu0 0.0
    %679 = vmatpush1.xpose.msra.mxu0 %v674
    %680 = vmatprep.subr.mxu0 0.0
    %681 = vmatpush1.xpose.msra.mxu0 0.0
    %682 = vmatprep.subr.mxu0 0.0
    %683 = vmatpush1.xpose.msra.mxu0 0.0
    %684 = vmatprep.subr.mxu0 0.0
    %685 = vmatpush1.xpose.msra.mxu0 0.0
    %686 = vmatprep.subr.mxu0 0.0
    %687 = vmatpush1.xpose.msra.mxu0 0.0
    %688 = vmatprep.subr.mxu0 0.0
    %689 = vmatpush1.xpose.msra.mxu0 0.0
    %690 = vmatprep.subr.mxu0 0.0
    %691 = vmatpush1.xpose.msra.mxu0 0.0
    %692 = vmatprep.subr.mxu0 0.0
    %693 = vmatpush1.xpose.msra.mxu0 0.0
    %694 = vmatprep.subr.mxu0 0.0
    %695 = vmatpush1.xpose.msra.mxu0 0.0
    %696 = vmatprep.subr.mxu0 0.0
    %697 = vmatpush1.xpose.msra.mxu0 0.0
    %698 = vmatprep.subr.mxu0 0.0
    %699 = vmatpush1.xpose.msra.mxu0 0.0
    %700 = vmatprep.subr.mxu0 0.0
    %701 = vmatpush1.xpose.msra.mxu0 0.0
    %702 = vmatprep.subr.mxu0 0.0
    %703 = vmatpush1.xpose.msra.mxu0 0.0
    %704 = vmatprep.subr.mxu0 0.0
    %705 = vmatpush1.xpose.msra.mxu0 0.0
    %706 = vmatprep.subr.mxu0 0.0
    %707 = vmatpush1.xpose.msra.mxu0 0.0
    %708 = vmatprep.subr.mxu0 0.0
    %709 = vmatpush1.xpose.msra.mxu0 0.0
    %710 = vmatprep.subr.mxu0 0.0
    %711 = vmatpush1.xpose.msra.mxu0 0.0
    %712 = vmatprep.subr.mxu0 0.0
    %713 = vmatpush1.xpose.msra.mxu0 0.0
    %714 = vmatprep.subr.mxu0 0.0
    %715 = vmatpush1.xpose.msra.mxu0 0.0
    %716 = vmatprep.subr.mxu0 0.0
    %717 = vmatpush1.xpose.msra.mxu0 0.0
    %718 = vmatprep.subr.mxu0 0.0
    %719 = vmatpush1.xpose.msra.mxu0 0.0
    %720 = vmatprep.subr.mxu0 0.0
    %721 = vmatpush1.xpose.msra.mxu0 0.0
    %722 = vmatprep.subr.mxu0 0.0
    %723 = vmatpush1.xpose.msra.mxu0 0.0
    %724 = vmatprep.subr.mxu0 0.0
    %725 = vmatpush1.xpose.msra.mxu0 0.0
    %726 = vmatprep.subr.mxu0 0.0
    %727 = vmatpush1.xpose.msra.mxu0 0.0
    %728 = vmatprep.subr.mxu0 0.0
    %729 = vmatpush1.xpose.msra.mxu0 0.0
    %730 = vmatprep.subr.mxu0 0.0
    %731 = vmatpush1.xpose.msra.mxu0 0.0
    %732 = vmatprep.subr.mxu0 0.0
    %733 = vmatpush1.xpose.msra.mxu0 0.0
    %734 = vmatprep.subr.mxu0 0.0
    %735 = vmatpush1.xpose.msra.mxu0 0.0
    %736 = vmatprep.subr.mxu0 0.0
    %737 = vmatpush1.xpose.msra.mxu0 0.0
    %738 = vmatprep.subr.mxu0 0.0
    %739 = vmatpush1.xpose.msra.mxu0 0.0
    %740 = vmatprep.mubr.f32.mxu0 0.0
    %741 = vmatmul.mubr.f32.gmra.mrb[0].mxu0 %v668
    %v742 = vpop.f32.mrb[0].mxu0
    %v743 = vadd.f32 %v101, %v742
    %v744 = vpop.f32.mrb[0].mxu0
    %745 = vmatprep.mubr.f32.mxu0 0.0
    %746 = vmatmul.mubr.f32.gmra.mrb[0].mxu0 %v670
    %v747 = vpop.f32.mrb[0].mxu0
    %v748 = vadd.f32 %v102, %v747
    %v749 = vpop.f32.mrb[0].mxu0
    %750 = vdwg.mxu0
    %v751 = vsel %vm350, %v743, -inf
    %752 = vmax.xlane.f32.xlu0 %v751
    %v753 = vpop.xlane.xlu0 %752
    %v754 = vsel %vm350, %v748, -inf
    %755 = vmax.xlane.f32.xlu0 %v754
    %v756 = vpop.xlane.xlu0 %755
    %v757 = vsub.f32 %v743, %v753
    %v758 = vsub.f32 %v748, %v756
    %v759 = vmul.f32 %v757, 1.442695
    %v760 = vpow.pop %v759
    %v761 = vmul.f32 %v758, 1.442695
    %v762 = vpow.pop %v761
    %v763 = vsel %vm350, %v760, 0.0
    %764 = vadd.xlane.f32.xlu0 %v763
    %v765 = vpop.xlane.xlu0 %764
    %v766 = vsel %vm350, %v762, 0.0
    %767 = vadd.xlane.f32.xlu0 %v766
    %v768 = vpop.xlane.xlu0 %767
    %v769 = vrcp.pop %v765
    %v770 = vmul.f32 %v760, %v769
    %v771 = vrcp.pop %v768
    %v772 = vmul.f32 %v762, %v771
    %773 = vrot.lane.b32.xlu0 %v252, 48
    %v774 = vpop.permute.xlu0 %773
    %775 = vrot.lane.b32.xlu0 %v257, 48
    %v776 = vpop.permute.xlu0 %775
    %v780 = vsel %vm350, %v770, 0
    %v783 = vsel %vm350, %v772, 0
    %785 = vmatprep.subr.mxu0 0.0
    %786 = vmatpush1.msra.mxu0 %v774
    %787 = vmatprep.subr.mxu0 0.0
    %788 = vmatpush1.msra.mxu0 %v776
    %789 = vmatprep.subr.mxu0 0.0
    %790 = vmatpush1.msra.mxu0 0.0
    %791 = vmatprep.subr.mxu0 0.0
    %792 = vmatpush1.msra.mxu0 0.0
    %793 = vmatprep.subr.mxu0 0.0
    %794 = vmatpush1.msra.mxu0 0.0
    %795 = vmatprep.subr.mxu0 0.0
    %796 = vmatpush1.msra.mxu0 0.0
    %797 = vmatprep.subr.mxu0 0.0
    %798 = vmatpush1.msra.mxu0 0.0
    %799 = vmatprep.subr.mxu0 0.0
    %800 = vmatpush1.msra.mxu0 0.0
    %801 = vmatprep.subr.mxu0 0.0
    %802 = vmatpush1.msra.mxu0 0.0
    %803 = vmatprep.subr.mxu0 0.0
    %804 = vmatpush1.msra.mxu0 0.0
    %805 = vmatprep.subr.mxu0 0.0
    %806 = vmatpush1.msra.mxu0 0.0
    %807 = vmatprep.subr.mxu0 0.0
    %808 = vmatpush1.msra.mxu0 0.0
    %809 = vmatprep.subr.mxu0 0.0
    %810 = vmatpush1.msra.mxu0 0.0
    %811 = vmatprep.subr.mxu0 0.0
    %812 = vmatpush1.msra.mxu0 0.0
    %813 = vmatprep.subr.mxu0 0.0
    %814 = vmatpush1.msra.mxu0 0.0
    %815 = vmatprep.subr.mxu0 0.0
    %816 = vmatpush1.msra.mxu0 0.0
    %817 = vmatprep.subr.mxu0 0.0
    %818 = vmatpush1.msra.mxu0 0.0
    %819 = vmatprep.subr.mxu0 0.0
    %820 = vmatpush1.msra.mxu0 0.0
    %821 = vmatprep.subr.mxu0 0.0
    %822 = vmatpush1.msra.mxu0 0.0
    %823 = vmatprep.subr.mxu0 0.0
    %824 = vmatpush1.msra.mxu0 0.0
    %825 = vmatprep.subr.mxu0 0.0
    %826 = vmatpush1.msra.mxu0 0.0
    %827 = vmatprep.subr.mxu0 0.0
    %828 = vmatpush1.msra.mxu0 0.0
    %829 = vmatprep.subr.mxu0 0.0
    %830 = vmatpush1.msra.mxu0 0.0
    %831 = vmatprep.subr.mxu0 0.0
    %832 = vmatpush1.msra.mxu0 0.0
    %833 = vmatprep.subr.mxu0 0.0
    %834 = vmatpush1.msra.mxu0 0.0
    %835 = vmatprep.subr.mxu0 0.0
    %836 = vmatpush1.msra.mxu0 0.0
    %837 = vmatprep.subr.mxu0 0.0
    %838 = vmatpush1.msra.mxu0 0.0
    %839 = vmatprep.subr.mxu0 0.0
    %840 = vmatpush1.msra.mxu0 0.0
    %841 = vmatprep.subr.mxu0 0.0
    %842 = vmatpush1.msra.mxu0 0.0
    %843 = vmatprep.subr.mxu0 0.0
    %844 = vmatpush1.msra.mxu0 0.0
    %845 = vmatprep.subr.mxu0 0.0
    %846 = vmatpush1.msra.mxu0 0.0
    %847 = vmatprep.subr.mxu0 0.0
    %848 = vmatpush1.msra.mxu0 0.0
    %849 = vmatprep.mubr.f32.mxu0 0.0
    %850 = vmatmul.mubr.f32.gmra.mrb[0].mxu0 %v780
    %v851 = vpop.f32.mrb[0].mxu0
    %v852 = vadd.f32 0.0, %v851
    %v853 = vpop.f32.mrb[0].mxu0
    %854 = vmatprep.mubr.f32.mxu0 0.0
    %855 = vmatmul.mubr.f32.gmra.mrb[0].mxu0 %v783
    %v856 = vpop.f32.mrb[0].mxu0
    %v857 = vadd.f32 0.0, %v856
    %v858 = vpop.f32.mrb[0].mxu0
    %859 = vdwg.mxu0
    %860 = vrot.lane.b32.xlu0 %v252, 104
    %v861 = vpop.permute.xlu0 %860
    %862 = vrot.lane.b32.xlu0 %v257, 104
    %v863 = vpop.permute.xlu0 %862
    %864 = vrot.lane.b32.xlu0 %v252, 72
    %v865 = vpop.permute.xlu0 %864
    %866 = vrot.lane.b32.xlu0 %v257, 72
    %v867 = vpop.permute.xlu0 %866
    %v868 = vsel %vm266, %v861, 0
    %v870 = vsel %vm266, %v863, 0
    %v872 = vsel %vm266, %v865, 0
    %v874 = vsel %vm266, %v867, 0
    %876 = vmatprep.subr.mxu0 0.0
    %877 = vmatpush1.xpose.msra.mxu0 %v872
    %878 = vmatprep.subr.mxu0 0.0
    %879 = vmatpush1.xpose.msra.mxu0 %v874
    %880 = vmatprep.subr.mxu0 0.0
    %881 = vmatpush1.xpose.msra.mxu0 0.0
    %882 = vmatprep.subr.mxu0 0.0
    %883 = vmatpush1.xpose.msra.mxu0 0.0
    %884 = vmatprep.subr.mxu0 0.0
    %885 = vmatpush1.xpose.msra.mxu0 0.0
    %886 = vmatprep.subr.mxu0 0.0
    %887 = vmatpush1.xpose.msra.mxu0 0.0
    %888 = vmatprep.subr.mxu0 0.0
    %889 = vmatpush1.xpose.msra.mxu0 0.0
    %890 = vmatprep.subr.mxu0 0.0
    %891 = vmatpush1.xpose.msra.mxu0 0.0
    %892 = vmatprep.subr.mxu0 0.0
    %893 = vmatpush1.xpose.msra.mxu0 0.0
    %894 = vmatprep.subr.mxu0 0.0
    %895 = vmatpush1.xpose.msra.mxu0 0.0
    %896 = vmatprep.subr.mxu0 0.0
    %897 = vmatpush1.xpose.msra.mxu0 0.0
    %898 = vmatprep.subr.mxu0 0.0
    %899 = vmatpush1.xpose.msra.mxu0 0.0
    %900 = vmatprep.subr.mxu0 0.0
    %901 = vmatpush1.xpose.msra.mxu0 0.0
    %902 = vmatprep.subr.mxu0 0.0
    %903 = vmatpush1.xpose.msra.mxu0 0.0
    %904 = vmatprep.subr.mxu0 0.0
    %905 = vmatpush1.xpose.msra.mxu0 0.0
    %906 = vmatprep.subr.mxu0 0.0
    %907 = vmatpush1.xpose.msra.mxu0 0.0
    %908 = vmatprep.subr.mxu0 0.0
    %909 = vmatpush1.xpose.msra.mxu0 0.0
    %910 = vmatprep.subr.mxu0 0.0
    %911 = vmatpush1.xpose.msra.mxu0 0.0
    %912 = vmatprep.subr.mxu0 0.0
    %913 = vmatpush1.xpose.msra.mxu0 0.0
    %914 = vmatprep.subr.mxu0 0.0
    %915 = vmatpush1.xpose.msra.mxu0 0.0
    %916 = vmatprep.subr.mxu0 0.0
    %917 = vmatpush1.xpose.msra.mxu0 0.0
    %918 = vmatprep.subr.mxu0 0.0
    %919 = vmatpush1.xpose.msra.mxu0 0.0
    %920 = vmatprep.subr.mxu0 0.0
    %921 = vmatpush1.xpose.msra.mxu0 0.0
    %922 = vmatprep.subr.mxu0 0.0
    %923 = vmatpush1.xpose.msra.mxu0 0.0
    %924 = vmatprep.subr.mxu0 0.0
    %925 = vmatpush1.xpose.msra.mxu0 0.0
    %926 = vmatprep.subr.mxu0 0.0
    %927 = vmatpush1.xpose.msra.mxu0 0.0
    %928 = vmatprep.subr.mxu0 0.0
    %929 = vmatpush1.xpose.msra.mxu0 0.0
    %930 = vmatprep.subr.mxu0 0.0
    %931 = vmatpush1.xpose.msra.mxu0 0.0
    %932 = vmatprep.subr.mxu0 0.0
    %933 = vmatpush1.xpose.msra.mxu0 0.0
    %934 = vmatprep.subr.mxu0 0.0
    %935 = vmatpush1.xpose.msra.mxu0 0.0
    %936 = vmatprep.subr.mxu0 0.0
    %937 = vmatpush1.xpose.msra.mxu0 0.0
    %938 = vmatprep.subr.mxu0 0.0
    %939 = vmatpush1.xpose.msra.mxu0 0.0
    %940 = vmatprep.mubr.f32.mxu0 0.0
    %941 = vmatmul.mubr.f32.gmra.mrb[0].mxu0 %v868
    %v942 = vpop.f32.mrb[0].mxu0
    %v943 = vadd.f32 %v101, %v942
    %v944 = vpop.f32.mrb[0].mxu0
    %945 = vmatprep.mubr.f32.mxu0 0.0
    %946 = vmatmul.mubr.f32.gmra.mrb[0].mxu0 %v870
    %v947 = vpop.f32.mrb[0].mxu0
    %v948 = vadd.f32 %v102, %v947
    %v949 = vpop.f32.mrb[0].mxu0
    %950 = vdwg.mxu0
    %v951 = vsel %vm350, %v943, -inf
    %952 = vmax.xlane.f32.xlu0 %v951
    %v953 = vpop.xlane.xlu0 %952
    %v954 = vsel %vm350, %v948, -inf
    %955 = vmax.xlane.f32.xlu0 %v954
    %v956 = vpop.xlane.xlu0 %955
    %v957 = vsub.f32 %v943, %v953
    %v958 = vsub.f32 %v948, %v956
    %v959 = vmul.f32 %v957, 1.442695
    %v960 = vpow.pop %v959
    %v961 = vmul.f32 %v958, 1.442695
    %v962 = vpow.pop %v961
    %v963 = vsel %vm350, %v960, 0.0
    %964 = vadd.xlane.f32.xlu0 %v963
    %v965 = vpop.xlane.xlu0 %964
    %v966 = vsel %vm350, %v962, 0.0
    %967 = vadd.xlane.f32.xlu0 %v966
    %v968 = vpop.xlane.xlu0 %967
    %v969 = vrcp.pop %v965
    %v970 = vmul.f32 %v960, %v969
    %v971 = vrcp.pop %v968
    %v972 = vmul.f32 %v962, %v971
    %973 = vrot.lane.b32.xlu0 %v252, 40
    %v974 = vpop.permute.xlu0 %973
    %975 = vrot.lane.b32.xlu0 %v257, 40
    %v976 = vpop.permute.xlu0 %975
    %v980 = vsel %vm350, %v970, 0
    %v983 = vsel %vm350, %v972, 0
    %985 = vmatprep.subr.mxu0 0.0
    %986 = vmatpush1.msra.mxu0 %v974
    %987 = vmatprep.subr.mxu0 0.0
    %988 = vmatpush1.msra.mxu0 %v976
    %989 = vmatprep.subr.mxu0 0.0
    %990 = vmatpush1.msra.mxu0 0.0
    %991 = vmatprep.subr.mxu0 0.0
    %992 = vmatpush1.msra.mxu0 0.0
    %993 = vmatprep.subr.mxu0 0.0
    %994 = vmatpush1.msra.mxu0 0.0
    %995 = vmatprep.subr.mxu0 0.0
    %996 = vmatpush1.msra.mxu0 0.0
    %997 = vmatprep.subr.mxu0 0.0
    %998 = vmatpush1.msra.mxu0 0.0
    %999 = vmatprep.subr.mxu0 0.0
    %1000 = vmatpush1.msra.mxu0 0.0
    %1001 = vmatprep.subr.mxu0 0.0
    %1002 = vmatpush1.msra.mxu0 0.0
    %1003 = vmatprep.subr.mxu0 0.0
    %1004 = vmatpush1.msra.mxu0 0.0
    %1005 = vmatprep.subr.mxu0 0.0
    %1006 = vmatpush1.msra.mxu0 0.0
    %1007 = vmatprep.subr.mxu0 0.0
    %1008 = vmatpush1.msra.mxu0 0.0
    %1009 = vmatprep.subr.mxu0 0.0
    %1010 = vmatpush1.msra.mxu0 0.0
    %1011 = vmatprep.subr.mxu0 0.0
    %1012 = vmatpush1.msra.mxu0 0.0
    %1013 = vmatprep.subr.mxu0 0.0
    %1014 = vmatpush1.msra.mxu0 0.0
    %1015 = vmatprep.subr.mxu0 0.0
    %1016 = vmatpush1.msra.mxu0 0.0
    %1017 = vmatprep.subr.mxu0 0.0
    %1018 = vmatpush1.msra.mxu0 0.0
    %1019 = vmatprep.subr.mxu0 0.0
    %1020 = vmatpush1.msra.mxu0 0.0
    %1021 = vmatprep.subr.mxu0 0.0
    %1022 = vmatpush1.msra.mxu0 0.0
    %1023 = vmatprep.subr.mxu0 0.0
    %1024 = vmatpush1.msra.mxu0 0.0
    %1025 = vmatprep.subr.mxu0 0.0
    %1026 = vmatpush1.msra.mxu0 0.0
    %1027 = vmatprep.subr.mxu0 0.0
    %1028 = vmatpush1.msra.mxu0 0.0
    %1029 = vmatprep.subr.mxu0 0.0
    %1030 = vmatpush1.msra.mxu0 0.0
    %1031 = vmatprep.subr.mxu0 0.0
    %1032 = vmatpush1.msra.mxu0 0.0
    %1033 = vmatprep.subr.mxu0 0.0
    %1034 = vmatpush1.msra.mxu0 0.0
    %1035 = vmatprep.subr.mxu0 0.0
    %1036 = vmatpush1.msra.mxu0 0.0
    %1037 = vmatprep.subr.mxu0 0.0
    %1038 = vmatpush1.msra.mxu0 0.0
    %1039 = vmatprep.subr.mxu0 0.0
    %1040 = vmatpush1.msra.mxu0 0.0
    %1041 = vmatprep.subr.mxu0 0.0
    %1042 = vmatpush1.msra.mxu0 0.0
    %1043 = vmatprep.subr.mxu0 0.0
    %1044 = vmatpush1.msra.mxu0 0.0
    %1045 = vmatprep.subr.mxu0 0.0
    %1046 = vmatpush1.msra.mxu0 0.0
    %1047 = vmatprep.subr.mxu0 0.0
    %1048 = vmatpush1.msra.mxu0 0.0
    %1049 = vmatprep.mubr.f32.mxu0 0.0
    %1050 = vmatmul.mubr.f32.gmra.mrb[0].mxu0 %v980
    %v1051 = vpop.f32.mrb[0].mxu0
    %v1052 = vadd.f32 0.0, %v1051
    %v1053 = vpop.f32.mrb[0].mxu0
    %1054 = vmatprep.mubr.f32.mxu0 0.0
    %1055 = vmatmul.mubr.f32.gmra.mrb[0].mxu0 %v983
    %v1056 = vpop.f32.mrb[0].mxu0
    %v1057 = vadd.f32 0.0, %v1056
    %v1058 = vpop.f32.mrb[0].mxu0
    %1059 = vdwg.mxu0
    %1062 = vrot.lane.b32.xlu0 %v652, 8
    %v1063 = vpop.permute.xlu0 %1062
    %1064 = vrot.lane.b32.xlu0 %v657, 8
    %v1065 = vpop.permute.xlu0 %1064
    %1070 = vrot.lane.b32.xlu0 %v852, 16
    %v1071 = vpop.permute.xlu0 %1070
    %1072 = vrot.lane.b32.xlu0 %v857, 16
    %v1073 = vpop.permute.xlu0 %1072
    %1078 = vrot.lane.b32.xlu0 %v1052, 24
    %v1079 = vpop.permute.xlu0 %1078
    %1080 = vrot.lane.b32.xlu0 %v1057, 24
    %v1081 = vpop.permute.xlu0 %1080
    %v1084 = vsel %vm266, %v452, %v1063
    %v1085 = vsel %vm266, %v457, %v1065
    %v1086 = vsel %vm350, %v1084, %v1071
    %v1087 = vsel %vm350, %v1085, %v1073
    %vm1088 = vcmask 195584
    %v1089 = vsel %vm1088, %v1086, %v1079
    %v1090 = vsel %vm1088, %v1087, %v1081
    %v1091 = vld [vmem:[%s4] sm:$0xff]
    %v1092 = vld [vmem:[%s4 + $0x8] sm:$0xff]
    %v1093 = vld [vmem:[%s4 + $0x10] sm:$0xff]
    %v1094 = vld [vmem:[%s4 + $0x18] sm:$0xff]
    %v1096 = vsel %vm167, %v1089, 0
    %v1099 = vsel %vm167, %v1090, 0
    %1101 = vmatprep.subr.mxu0 0.0
    %1102 = vmatpush1.msra.mxu0 %v1091
    %1103 = vmatprep.subr.mxu0 0.0
    %1104 = vmatpush1.msra.mxu0 %v1092
    %1105 = vmatprep.subr.mxu0 0.0
    %1106 = vmatpush1.msra.mxu0 %v1093
    %1107 = vmatprep.subr.mxu0 0.0
    %1108 = vmatpush1.msra.mxu0 %v1094
    %1109 = vmatprep.subr.mxu0 0.0
    %1110 = vmatpush1.msra.mxu0 0.0
    %1111 = vmatprep.subr.mxu0 0.0
    %1112 = vmatpush1.msra.mxu0 0.0
    %1113 = vmatprep.subr.mxu0 0.0
    %1114 = vmatpush1.msra.mxu0 0.0
    %1115 = vmatprep.subr.mxu0 0.0
    %1116 = vmatpush1.msra.mxu0 0.0
    %1117 = vmatprep.subr.mxu0 0.0
    %1118 = vmatpush1.msra.mxu0 0.0
    %1119 = vmatprep.subr.mxu0 0.0
    %1120 = vmatpush1.msra.mxu0 0.0
    %1121 = vmatprep.subr.mxu0 0.0
    %1122 = vmatpush1.msra.mxu0 0.0
    %1123 = vmatprep.subr.mxu0 0.0
    %1124 = vmatpush1.msra.mxu0 0.0
    %1125 = vmatprep.subr.mxu0 0.0
    %1126 = vmatpush1.msra.mxu0 0.0
    %1127 = vmatprep.subr.mxu0 0.0
    %1128 = vmatpush1.msra.mxu0 0.0
    %1129 = vmatprep.subr.mxu0 0.0
    %1130 = vmatpush1.msra.mxu0 0.0
    %1131 = vmatprep.subr.mxu0 0.0
    %1132 = vmatpush1.msra.mxu0 0.0
    %1133 = vmatprep.subr.mxu0 0.0
    %1134 = vmatpush1.msra.mxu0 0.0
    %1135 = vmatprep.subr.mxu0 0.0
    %1136 = vmatpush1.msra.mxu0 0.0
    %1137 = vmatprep.subr.mxu0 0.0
    %1138 = vmatpush1.msra.mxu0 0.0
    %1139 = vmatprep.subr.mxu0 0.0
    %1140 = vmatpush1.msra.mxu0 0.0
    %1141 = vmatprep.subr.mxu0 0.0
    %1142 = vmatpush1.msra.mxu0 0.0
    %1143 = vmatprep.subr.mxu0 0.0
    %1144 = vmatpush1.msra.mxu0 0.0
    %1145 = vmatprep.subr.mxu0 0.0
    %1146 = vmatpush1.msra.mxu0 0.0
    %1147 = vmatprep.subr.mxu0 0.0
    %1148 = vmatpush1.msra.mxu0 0.0
    %1149 = vmatprep.subr.mxu0 0.0
    %1150 = vmatpush1.msra.mxu0 0.0
    %1151 = vmatprep.subr.mxu0 0.0
    %1152 = vmatpush1.msra.mxu0 0.0
    %1153 = vmatprep.subr.mxu0 0.0
    %1154 = vmatpush1.msra.mxu0 0.0
    %1155 = vmatprep.subr.mxu0 0.0
    %1156 = vmatpush1.msra.mxu0 0.0
    %1157 = vmatprep.subr.mxu0 0.0
    %1158 = vmatpush1.msra.mxu0 0.0
    %1159 = vmatprep.subr.mxu0 0.0
    %1160 = vmatpush1.msra.mxu0 0.0
    %1161 = vmatprep.subr.mxu0 0.0
    %1162 = vmatpush1.msra.mxu0 0.0
    %1163 = vmatprep.subr.mxu0 0.0
    %1164 = vmatpush1.msra.mxu0 0.0
    %1165 = vmatprep.mubr.f32.mxu0 0.0
    %1166 = vmatmul.mubr.f32.gmra.mrb[0].mxu0 %v1096
    %v1167 = vpop.f32.mrb[0].mxu0
    %v1168 = vadd.f32 %v115, %v1167
    %v1169 = vpop.f32.mrb[0].mxu0
    %1170 = vmatprep.mubr.f32.mxu0 0.0
    %1171 = vmatmul.mubr.f32.gmra.mrb[0].mxu0 %v1099
    %v1172 = vpop.f32.mrb[0].mxu0
    %v1173 = vadd.f32 %v115, %v1172
    %v1174 = vpop.f32.mrb[0].mxu0
    %1175 = vdwg.mxu0
    %v1176 = vadd.f32 %v54, %v1168
    %v1177 = vadd.f32 %v55, %v1173
    %v1178 = vsel %vm167, %v1176, 0.0
    %1179 = vadd.xlane.f32.xlu0 %v1178
    %v1180 = vpop.xlane.xlu0 %1179
    %v1181 = vsel %vm167, %v1177, 0.0
    %1182 = vadd.xlane.f32.xlu0 %v1181
    %v1183 = vpop.xlane.xlu0 %1182
    %v1184 = vrcp.pop 32.0
    %v1185 = vmul.f32 %v1180, %v1184
    %v1186 = vmul.f32 %v1183, %v1184
    %v1187 = vsub.f32 %v1176, %v1185
    %v1188 = vsub.f32 %v1177, %v1186
    %v1189 = vmul.f32 %v1187, %v1187
    %v1190 = vmul.f32 %v1188, %v1188
    %v1191 = vsel %vm167, %v1189, 0.0
    %1192 = vadd.xlane.f32.xlu0 %v1191
    %v1193 = vpop.xlane.xlu0 %1192
    %v1194 = vsel %vm167, %v1190, 0.0
    %1195 = vadd.xlane.f32.xlu0 %v1194
    %v1196 = vpop.xlane.xlu0 %1195
    %v1197 = vmul.f32 %v1193, %v1184
    %v1198 = vmul.f32 %v1196, %v1184
    %v1199 = vadd.f32 %v1197, 1e-05
    %v1200 = vadd.f32 %v1198, 1e-05
    %v1201 = vrsqrt.pop %v1199
    %v1202 = vrsqrt.pop %v1200
    %v1203 = vmul.f32 %v1187, %v1201
    %v1204 = vmul.f32 %v1188, %v1202
    %v1205 = vmul.f32 %v1203, %v136
    %v1206 = vmul.f32 %v1204, %v136
    %v1207 = vadd.f32 %v1205, %v143
    %v1208 = vadd.f32 %v1206, %v143
    %v1209 = vld [vmem:[%s6] sm:$0xff]
    %v1210 = vld [vmem:[%s6 + $0x8] sm:$0xff]
    %v1211 = vld [vmem:[%s6 + $0x10] sm:$0xff]
    %v1212 = vld [vmem:[%s6 + $0x18] sm:$0xff]
    %v1214 = vsel %vm167, %v1207, 0
    %v1217 = vsel %vm167, %v1208, 0
    %1219 = vmatprep.subr.mxu0 0.0
    %1220 = vmatpush1.msra.mxu0 %v1209
    %1221 = vmatprep.subr.mxu0 0.0
    %1222 = vmatpush1.msra.mxu0 %v1210
    %1223 = vmatprep.subr.mxu0 0.0
    %1224 = vmatpush1.msra.mxu0 %v1211
    %1225 = vmatprep.subr.mxu0 0.0
    %1226 = vmatpush1.msra.mxu0 %v1212
    %1227 = vmatprep.subr.mxu0 0.0
    %1228 = vmatpush1.msra.mxu0 0.0
    %1229 = vmatprep.subr.mxu0 0.0
    %1230 = vmatpush1.msra.mxu0 0.0
    %1231 = vmatprep.subr.mxu0 0.0
    %1232 = vmatpush1.msra.mxu0 0.0
    %1233 = vmatprep.subr.mxu0 0.0
    %1234 = vmatpush1.msra.mxu0 0.0
    %1235 = vmatprep.subr.mxu0 0.0
    %1236 = vmatpush1.msra.mxu0 0.0
    %1237 = vmatprep.subr.mxu0 0.0
    %1238 = vmatpush1.msra.mxu0 0.0
    %1239 = vmatprep.subr.mxu0 0.0
    %1240 = vmatpush1.msra.mxu0 0.0
    %1241 = vmatprep.subr.mxu0 0.0
    %1242 = vmatpush1.msra.mxu0 0.0
    %1243 = vmatprep.subr.mxu0 0.0
    %1244 = vmatpush1.msra.mxu0 0.0
    %1245 = vmatprep.subr.mxu0 0.0
    %1246 = vmatpush1.msra.mxu0 0.0
    %1247 = vmatprep.subr.mxu0 0.0
    %1248 = vmatpush1.msra.mxu0 0.0
    %1249 = vmatprep.subr.mxu0 0.0
    %1250 = vmatpush1.msra.mxu0 0.0
    %1251 = vmatprep.subr.mxu0 0.0
    %1252 = vmatpush1.msra.mxu0 0.0
    %1253 = vmatprep.subr.mxu0 0.0
    %1254 = vmatpush1.msra.mxu0 0.0
    %1255 = vmatprep.subr.mxu0 0.0
    %1256 = vmatpush1.msra.mxu0 0.0
    %1257 = vmatprep.subr.mxu0 0.0
    %1258 = vmatpush1.msra.mxu0 0.0
    %1259 = vmatprep.subr.mxu0 0.0
    %1260 = vmatpush1.msra.mxu0 0.0
    %1261 = vmatprep.subr.mxu0 0.0
    %1262 = vmatpush1.msra.mxu0 0.0
    %1263 = vmatprep.subr.mxu0 0.0
    %1264 = vmatpush1.msra.mxu0 0.0
    %1265 = vmatprep.subr.mxu0 0.0
    %1266 = vmatpush1.msra.mxu0 0.0
    %1267 = vmatprep.subr.mxu0 0.0
    %1268 = vmatpush1.msra.mxu0 0.0
    %1269 = vmatprep.subr.mxu0 0.0
    %1270 = vmatpush1.msra.mxu0 0.0
    %1271 = vmatprep.subr.mxu0 0.0
    %1272 = vmatpush1.msra.mxu0 0.0
    %1273 = vmatprep.subr.mxu0 0.0
    %1274 = vmatpush1.msra.mxu0 0.0
    %1275 = vmatprep.subr.mxu0 0.0
    %1276 = vmatpush1.msra.mxu0 0.0
    %1277 = vmatprep.subr.mxu0 0.0
    %1278 = vmatpush1.msra.mxu0 0.0
    %1279 = vmatprep.subr.mxu0 0.0
    %1280 = vmatpush1.msra.mxu0 0.0
    %1281 = vmatprep.subr.mxu0 0.0
    %1282 = vmatpush1.msra.mxu0 0.0
    %1283 = vmatprep.mubr.f32.mxu0 0.0
    %1284 = vmatmul.mubr.f32.gmra.mrb[0].mxu0 %v1214
    %v1285 = vpop.f32.mrb[0].mxu0
    %v1286 = vadd.f32 %v122, %v1285
    %v1287 = vpop.f32.mrb[0].mxu0
    %1288 = vmatprep.mubr.f32.mxu0 0.0
    %1289 = vmatmul.mubr.f32.gmra.mrb[0].mxu0 %v1217
    %v1290 = vpop.f32.mrb[0].mxu0
    %v1291 = vadd.f32 %v122, %v1290
    %v1292 = vpop.f32.mrb[0].mxu0
    %1293 = vdwg.mxu0
    %v1294 = vmax.f32 %v1286, 0.0
    %v1295 = vmax.f32 %v1291, 0.0
    %v1296 = vld [vmem:[%s8] sm:$0xff]
    %v1297 = vld [vmem:[%s8 + $0x8] sm:$0xff]
    %v1298 = vld [vmem:[%s8 + $0x10] sm:$0xff]
    %v1299 = vld [vmem:[%s8 + $0x18] sm:$0xff]
    %v1300 = vld [vmem:[%s8 + $0x20] sm:$0xff]
    %v1301 = vld [vmem:[%s8 + $0x28] sm:$0xff]
    %v1302 = vld [vmem:[%s8 + $0x30] sm:$0xff]
    %v1303 = vld [vmem:[%s8 + $0x38] sm:$0xff]
    %v1305 = vsel %vm178, %v1294, 0
    %v1308 = vsel %vm178, %v1295, 0
    %1310 = vmatprep.subr.mxu0 0.0
    %1311 = vmatpush1.msra.mxu0 %v1296
    %1312 = vmatprep.subr.mxu0 0.0
    %1313 = vmatpush1.msra.mxu0 %v1297
    %1314 = vmatprep.subr.mxu0 0.0
    %1315 = vmatpush1.msra.mxu0 %v1298
    %1316 = vmatprep.subr.mxu0 0.0
    %1317 = vmatpush1.msra.mxu0 %v1299
    %1318 = vmatprep.subr.mxu0 0.0
    %1319 = vmatpush1.msra.mxu0 %v1300
    %1320 = vmatprep.subr.mxu0 0.0
    %1321 = vmatpush1.msra.mxu0 %v1301
    %1322 = vmatprep.subr.mxu0 0.0
    %1323 = vmatpush1.msra.mxu0 %v1302
    %1324 = vmatprep.subr.mxu0 0.0
    %1325 = vmatpush1.msra.mxu0 %v1303
    %1326 = vmatprep.subr.mxu0 0.0
    %1327 = vmatpush1.msra.mxu0 0.0
    %1328 = vmatprep.subr.mxu0 0.0
    %1329 = vmatpush1.msra.mxu0 0.0
    %1330 = vmatprep.subr.mxu0 0.0
    %1331 = vmatpush1.msra.mxu0 0.0
    %1332 = vmatprep.subr.mxu0 0.0
    %1333 = vmatpush1.msra.mxu0 0.0
    %1334 = vmatprep.subr.mxu0 0.0
    %1335 = vmatpush1.msra.mxu0 0.0
    %1336 = vmatprep.subr.mxu0 0.0
    %1337 = vmatpush1.msra.mxu0 0.0
    %1338 = vmatprep.subr.mxu0 0.0
    %1339 = vmatpush1.msra.mxu0 0.0
    %1340 = vmatprep.subr.mxu0 0.0
    %1341 = vmatpush1.msra.mxu0 0.0
    %1342 = vmatprep.subr.mxu0 0.0
    %1343 = vmatpush1.msra.mxu0 0.0
    %1344 = vmatprep.subr.mxu0 0.0
    %1345 = vmatpush1.msra.mxu0 0.0
    %1346 = vmatprep.subr.mxu0 0.0
    %1347 = vmatpush1.msra.mxu0 0.0
    %1348 = vmatprep.subr.mxu0 0.0
    %1349 = vmatpush1.msra.mxu0 0.0
    %1350 = vmatprep.subr.mxu0 0.0
    %1351 = vmatpush1.msra.mxu0 0.0
    %1352 = vmatprep.subr.mxu0 0.0
    %1353 = vmatpush1.msra.mxu0 0.0
    %1354 = vmatprep.subr.mxu0 0.0
    %1355 = vmatpush1.msra.mxu0 0.0
    %1356 = vmatprep.subr.mxu0 0.0
    %1357 = vmatpush1.msra.mxu0 0.0
    %1358 = vmatprep.subr.mxu0 0.0
    %1359 = vmatpush1.msra.mxu0 0.0
    %1360 = vmatprep.subr.mxu0 0.0
    %1361 = vmatpush1.msra.mxu0 0.0
    %1362 = vmatprep.subr.mxu0 0.0
    %1363 = vmatpush1.msra.mxu0 0.0
    %1364 = vmatprep.subr.mxu0 0.0
    %1365 = vmatpush1.msra.mxu0 0.0
    %1366 = vmatprep.subr.mxu0 0.0
    %1367 = vmatpush1.msra.mxu0 0.0
    %1368 = vmatprep.subr.mxu0 0.0
    %1369 = vmatpush1.msra.mxu0 0.0
    %1370 = vmatprep.subr.mxu0 0.0
    %1371 = vmatpush1.msra.mxu0 0.0
    %1372 = vmatprep.subr.mxu0 0.0
    %1373 = vmatpush1.msra.mxu0 0.0
    %1374 = vmatprep.mubr.f32.mxu0 0.0
    %1375 = vmatmul.mubr.f32.gmra.mrb[0].mxu0 %v1305
    %v1376 = vpop.f32.mrb[0].mxu0
    %v1377 = vadd.f32 %v129, %v1376
    %v1378 = vpop.f32.mrb[0].mxu0
    %1379 = vmatprep.mubr.f32.mxu0 0.0
    %1380 = vmatmul.mubr.f32.gmra.mrb[0].mxu0 %v1308
    %v1381 = vpop.f32.mrb[0].mxu0
    %v1382 = vadd.f32 %v129, %v1381
    %v1383 = vpop.f32.mrb[0].mxu0
    %1384 = vdwg.mxu0
    %v1385 = vadd.f32 %v1207, %v1377
    %v1386 = vadd.f32 %v1208, %v1382
    %v1387 = vsel %vm167, %v1385, 0.0
    %1388 = vadd.xlane.f32.xlu0 %v1387
    %v1389 = vpop.xlane.xlu0 %1388
    %v1390 = vsel %vm167, %v1386, 0.0
    %1391 = vadd.xlane.f32.xlu0 %v1390
    %v1392 = vpop.xlane.xlu0 %1391
    %v1393 = vmul.f32 %v1389, %v1184
    %v1394 = vmul.f32 %v1392, %v1184
    %v1395 = vsub.f32 %v1385, %v1393
    %v1396 = vsub.f32 %v1386, %v1394
    %v1397 = vmul.f32 %v1395, %v1395
    %v1398 = vmul.f32 %v1396, %v1396
    %v1399 = vsel %vm167, %v1397, 0.0
    %1400 = vadd.xlane.f32.xlu0 %v1399
    %v1401 = vpop.xlane.xlu0 %1400
    %v1402 = vsel %vm167, %v1398, 0.0
    %1403 = vadd.xlane.f32.xlu0 %v1402
    %v1404 = vpop.xlane.xlu0 %1403
    %v1405 = vmul.f32 %v1401, %v1184
    %v1406 = vmul.f32 %v1404, %v1184
    %v1407 = vadd.f32 %v1405, 1e-05
    %v1408 = vadd.f32 %v1406, 1e-05
    %v1409 = vrsqrt.pop %v1407
    %v1410 = vrsqrt.pop %v1408
    %v1411 = vmul.f32 %v1395, %v1409
    %v1412 = vmul.f32 %v1396, %v1410
    %v1413 = vmul.f32 %v1411, %v150
    %v1414 = vmul.f32 %v1412, %v150
    %v1415 = vadd.f32 %v1413, %v157
    %v1416 = vadd.f32 %v1414, %v157
    %v1417 = vsel %vm167, %v1415, %v162
    %v1418 = vsel %vm167, %v1416, %v164
    %v1420 = vsel %vm178, %v1417, 0
    %v1423 = vsel %vm178, %v1418, 0
    %1425 = vmatprep.subr.mxu0 0.0
    %1426 = vmatpush1.msra.mxu0 %v170
    %1427 = vmatprep.subr.mxu0 0.0
    %1428 = vmatpush1.msra.mxu0 %v171
    %1429 = vmatprep.subr.mxu0 0.0
    %1430 = vmatpush1.msra.mxu0 %v172
    %1431 = vmatprep.subr.mxu0 0.0
    %1432 = vmatpush1.msra.mxu0 %v173
    %1433 = vmatprep.subr.mxu0 0.0
    %1434 = vmatpush1.msra.mxu0 %v174
    %1435 = vmatprep.subr.mxu0 0.0
    %1436 = vmatpush1.msra.mxu0 %v175
    %1437 = vmatprep.subr.mxu0 0.0
    %1438 = vmatpush1.msra.mxu0 %v176
    %1439 = vmatprep.subr.mxu0 0.0
    %1440 = vmatpush1.msra.mxu0 %v177
    %1441 = vmatprep.subr.mxu0 0.0
    %1442 = vmatpush1.msra.mxu0 0.0
    %1443 = vmatprep.subr.mxu0 0.0
    %1444 = vmatpush1.msra.mxu0 0.0
    %1445 = vmatprep.subr.mxu0 0.0
    %1446 = vmatpush1.msra.mxu0 0.0
    %1447 = vmatprep.subr.mxu0 0.0
    %1448 = vmatpush1.msra.mxu0 0.0
    %1449 = vmatprep.subr.mxu0 0.0
    %1450 = vmatpush1.msra.mxu0 0.0
    %1451 = vmatprep.subr.mxu0 0.0
    %1452 = vmatpush1.msra.mxu0 0.0
    %1453 = vmatprep.subr.mxu0 0.0
    %1454 = vmatpush1.msra.mxu0 0.0
    %1455 = vmatprep.subr.mxu0 0.0
    %1456 = vmatpush1.msra.mxu0 0.0
    %1457 = vmatprep.subr.mxu0 0.0
    %1458 = vmatpush1.msra.mxu0 0.0
    %1459 = vmatprep.subr.mxu0 0.0
    %1460 = vmatpush1.msra.mxu0 0.0
    %1461 = vmatprep.subr.mxu0 0.0
    %1462 = vmatpush1.msra.mxu0 0.0
    %1463 = vmatprep.subr.mxu0 0.0
    %1464 = vmatpush1.msra.mxu0 0.0
    %1465 = vmatprep.subr.mxu0 0.0
    %1466 = vmatpush1.msra.mxu0 0.0
    %1467 = vmatprep.subr.mxu0 0.0
    %1468 = vmatpush1.msra.mxu0 0.0
    %1469 = vmatprep.subr.mxu0 0.0
    %1470 = vmatpush1.msra.mxu0 0.0
    %1471 = vmatprep.subr.mxu0 0.0
    %1472 = vmatpush1.msra.mxu0 0.0
    %1473 = vmatprep.subr.mxu0 0.0
    %1474 = vmatpush1.msra.mxu0 0.0
    %1475 = vmatprep.subr.mxu0 0.0
    %1476 = vmatpush1.msra.mxu0 0.0
    %1477 = vmatprep.subr.mxu0 0.0
    %1478 = vmatpush1.msra.mxu0 0.0
    %1479 = vmatprep.subr.mxu0 0.0
    %1480 = vmatpush1.msra.mxu0 0.0
    %1481 = vmatprep.subr.mxu0 0.0
    %1482 = vmatpush1.msra.mxu0 0.0
    %1483 = vmatprep.subr.mxu0 0.0
    %1484 = vmatpush1.msra.mxu0 0.0
    %1485 = vmatprep.subr.mxu0 0.0
    %1486 = vmatpush1.msra.mxu0 0.0
    %1487 = vmatprep.subr.mxu0 0.0
    %1488 = vmatpush1.msra.mxu0 0.0
    %1489 = vmatprep.mubr.f32.mxu0 0.0
    %1490 = vmatmul.mubr.f32.gmra.mrb[0].mxu0 %v1420
    %v1491 = vpop.f32.mrb[0].mxu0
    %v1492 = vadd.f32 %v108, %v1491
    %v1493 = vpop.f32.mrb[0].mxu0
    %1494 = vmatprep.mubr.f32.mxu0 0.0
    %1495 = vmatmul.mubr.f32.gmra.mrb[0].mxu0 %v1423
    %v1496 = vpop.f32.mrb[0].mxu0
    %v1497 = vadd.f32 %v108, %v1496
    %v1498 = vpop.f32.mrb[0].mxu0
    %1499 = vdwg.mxu0
    %1502 = vrot.lane.b32.xlu0 %v1492, 96
    %v1503 = vpop.permute.xlu0 %1502
    %1504 = vrot.lane.b32.xlu0 %v1497, 96
    %v1505 = vpop.permute.xlu0 %1504
    %v1506 = vsel %vm266, %v1492, 0
    %v1508 = vsel %vm266, %v1497, 0
    %v1510 = vsel %vm266, %v1503, 0
    %v1512 = vsel %vm266, %v1505, 0
    %1514 = vmatprep.subr.mxu0 0.0
    %1515 = vmatpush1.xpose.msra.mxu0 %v1510
    %1516 = vmatprep.subr.mxu0 0.0
    %1517 = vmatpush1.xpose.msra.mxu0 %v1512
    %1518 = vmatprep.subr.mxu0 0.0
    %1519 = vmatpush1.xpose.msra.mxu0 0.0
    %1520 = vmatprep.subr.mxu0 0.0
    %1521 = vmatpush1.xpose.msra.mxu0 0.0
    %1522 = vmatprep.subr.mxu0 0.0
    %1523 = vmatpush1.xpose.msra.mxu0 0.0
    %1524 = vmatprep.subr.mxu0 0.0
    %1525 = vmatpush1.xpose.msra.mxu0 0.0
    %1526 = vmatprep.subr.mxu0 0.0
    %1527 = vmatpush1.xpose.msra.mxu0 0.0
    %1528 = vmatprep.subr.mxu0 0.0
    %1529 = vmatpush1.xpose.msra.mxu0 0.0
    %1530 = vmatprep.subr.mxu0 0.0
    %1531 = vmatpush1.xpose.msra.mxu0 0.0
    %1532 = vmatprep.subr.mxu0 0.0
    %1533 = vmatpush1.xpose.msra.mxu0 0.0
    %1534 = vmatprep.subr.mxu0 0.0
    %1535 = vmatpush1.xpose.msra.mxu0 0.0
    %1536 = vmatprep.subr.mxu0 0.0
    %1537 = vmatpush1.xpose.msra.mxu0 0.0
    %1538 = vmatprep.subr.mxu0 0.0
    %1539 = vmatpush1.xpose.msra.mxu0 0.0
    %1540 = vmatprep.subr.mxu0 0.0
    %1541 = vmatpush1.xpose.msra.mxu0 0.0
    %1542 = vmatprep.subr.mxu0 0.0
    %1543 = vmatpush1.xpose.msra.mxu0 0.0
    %1544 = vmatprep.subr.mxu0 0.0
    %1545 = vmatpush1.xpose.msra.mxu0 0.0
    %1546 = vmatprep.subr.mxu0 0.0
    %1547 = vmatpush1.xpose.msra.mxu0 0.0
    %1548 = vmatprep.subr.mxu0 0.0
    %1549 = vmatpush1.xpose.msra.mxu0 0.0
    %1550 = vmatprep.subr.mxu0 0.0
    %1551 = vmatpush1.xpose.msra.mxu0 0.0
    %1552 = vmatprep.subr.mxu0 0.0
    %1553 = vmatpush1.xpose.msra.mxu0 0.0
    %1554 = vmatprep.subr.mxu0 0.0
    %1555 = vmatpush1.xpose.msra.mxu0 0.0
    %1556 = vmatprep.subr.mxu0 0.0
    %1557 = vmatpush1.xpose.msra.mxu0 0.0
    %1558 = vmatprep.subr.mxu0 0.0
    %1559 = vmatpush1.xpose.msra.mxu0 0.0
    %1560 = vmatprep.subr.mxu0 0.0
    %1561 = vmatpush1.xpose.msra.mxu0 0.0
    %1562 = vmatprep.subr.mxu0 0.0
    %1563 = vmatpush1.xpose.msra.mxu0 0.0
    %1564 = vmatprep.subr.mxu0 0.0
    %1565 = vmatpush1.xpose.msra.mxu0 0.0
    %1566 = vmatprep.subr.mxu0 0.0
    %1567 = vmatpush1.xpose.msra.mxu0 0.0
    %1568 = vmatprep.subr.mxu0 0.0
    %1569 = vmatpush1.xpose.msra.mxu0 0.0
    %1570 = vmatprep.subr.mxu0 0.0
    %1571 = vmatpush1.xpose.msra.mxu0 0.0
    %1572 = vmatprep.subr.mxu0 0.0
    %1573 = vmatpush1.xpose.msra.mxu0 0.0
    %1574 = vmatprep.subr.mxu0 0.0
    %1575 = vmatpush1.xpose.msra.mxu0 0.0
    %1576 = vmatprep.subr.mxu0 0.0
    %1577 = vmatpush1.xpose.msra.mxu0 0.0
    %1578 = vmatprep.mubr.f32.mxu0 0.0
    %1579 = vmatmul.mubr.f32.gmra.mrb[0].mxu0 %v1506
    %v1580 = vpop.f32.mrb[0].mxu0
    %v1581 = vadd.f32 %v101, %v1580
    %v1582 = vpop.f32.mrb[0].mxu0
    %1583 = vmatprep.mubr.f32.mxu0 0.0
    %1584 = vmatmul.mubr.f32.gmra.mrb[0].mxu0 %v1508
    %v1585 = vpop.f32.mrb[0].mxu0
    %v1586 = vadd.f32 %v102, %v1585
    %v1587 = vpop.f32.mrb[0].mxu0
    %1588 = vdwg.mxu0
    %v1589 = vsel %vm350, %v1581, -inf
    %1590 = vmax.xlane.f32.xlu0 %v1589
    %v1591 = vpop.xlane.xlu0 %1590
    %v1592 = vsel %vm350, %v1586, -inf
    %1593 = vmax.xlane.f32.xlu0 %v1592
    %v1594 = vpop.xlane.xlu0 %1593
    %v1595 = vsub.f32 %v1581, %v1591
    %v1596 = vsub.f32 %v1586, %v1594
    %v1597 = vmul.f32 %v1595, 1.442695
    %v1598 = vpow.pop %v1597
    %v1599 = vmul.f32 %v1596, 1.442695
    %v1600 = vpow.pop %v1599
    %v1601 = vsel %vm350, %v1598, 0.0
    %1602 = vadd.xlane.f32.xlu0 %v1601
    %v1603 = vpop.xlane.xlu0 %1602
    %v1604 = vsel %vm350, %v1600, 0.0
    %1605 = vadd.xlane.f32.xlu0 %v1604
    %v1606 = vpop.xlane.xlu0 %1605
    %v1607 = vrcp.pop %v1603
    %v1608 = vmul.f32 %v1598, %v1607
    %v1609 = vrcp.pop %v1606
    %v1610 = vmul.f32 %v1600, %v1609
    %1611 = vrot.lane.b32.xlu0 %v1492, 64
    %v1612 = vpop.permute.xlu0 %1611
    %1613 = vrot.lane.b32.xlu0 %v1497, 64
    %v1614 = vpop.permute.xlu0 %1613
    %v1618 = vsel %vm350, %v1608, 0
    %v1621 = vsel %vm350, %v1610, 0
    %1623 = vmatprep.subr.mxu0 0.0
    %1624 = vmatpush1.msra.mxu0 %v1612
    %1625 = vmatprep.subr.mxu0 0.0
    %1626 = vmatpush1.msra.mxu0 %v1614
    %1627 = vmatprep.subr.mxu0 0.0
    %1628 = vmatpush1.msra.mxu0 0.0
    %1629 = vmatprep.subr.mxu0 0.0
    %1630 = vmatpush1.msra.mxu0 0.0
    %1631 = vmatprep.subr.mxu0 0.0
    %1632 = vmatpush1.msra.mxu0 0.0
    %1633 = vmatprep.subr.mxu0 0.0
    %1634 = vmatpush1.msra.mxu0 0.0
    %1635 = vmatprep.subr.mxu0 0.0
    %1636 = vmatpush1.msra.mxu0 0.0
    %1637 = vmatprep.subr.mxu0 0.0
    %1638 = vmatpush1.msra.mxu0 0.0
    %1639 = vmatprep.subr.mxu0 0.0
    %1640 = vmatpush1.msra.mxu0 0.0
    %1641 = vmatprep.subr.mxu0 0.0
    %1642 = vmatpush1.msra.mxu0 0.0
    %1643 = vmatprep.subr.mxu0 0.0
    %1644 = vmatpush1.msra.mxu0 0.0
    %1645 = vmatprep.subr.mxu0 0.0
    %1646 = vmatpush1.msra.mxu0 0.0
    %1647 = vmatprep.subr.mxu0 0.0
    %1648 = vmatpush1.msra.mxu0 0.0
    %1649 = vmatprep.subr.mxu0 0.0
    %1650 = vmatpush1.msra.mxu0 0.0
    %1651 = vmatprep.subr.mxu0 0.0
    %1652 = vmatpush1.msra.mxu0 0.0
    %1653 = vmatprep.subr.mxu0 0.0
    %1654 = vmatpush1.msra.mxu0 0.0
    %1655 = vmatprep.subr.mxu0 0.0
    %1656 = vmatpush1.msra.mxu0 0.0
    %1657 = vmatprep.subr.mxu0 0.0
    %1658 = vmatpush1.msra.mxu0 0.0
    %1659 = vmatprep.subr.mxu0 0.0
    %1660 = vmatpush1.msra.mxu0 0.0
    %1661 = vmatprep.subr.mxu0 0.0
    %1662 = vmatpush1.msra.mxu0 0.0
    %1663 = vmatprep.subr.mxu0 0.0
    %1664 = vmatpush1.msra.mxu0 0.0
    %1665 = vmatprep.subr.mxu0 0.0
    %1666 = vmatpush1.msra.mxu0 0.0
    %1667 = vmatprep.subr.mxu0 0.0
    %1668 = vmatpush1.msra.mxu0 0.0
    %1669 = vmatprep.subr.mxu0 0.0
    %1670 = vmatpush1.msra.mxu0 0.0
    %1671 = vmatprep.subr.mxu0 0.0
    %1672 = vmatpush1.msra.mxu0 0.0
    %1673 = vmatprep.subr.mxu0 0.0
    %1674 = vmatpush1.msra.mxu0 0.0
    %1675 = vmatprep.subr.mxu0 0.0
    %1676 = vmatpush1.msra.mxu0 0.0
    %1677 = vmatprep.subr.mxu0 0.0
    %1678 = vmatpush1.msra.mxu0 0.0
    %1679 = vmatprep.subr.mxu0 0.0
    %1680 = vmatpush1.msra.mxu0 0.0
    %1681 = vmatprep.subr.mxu0 0.0
    %1682 = vmatpush1.msra.mxu0 0.0
    %1683 = vmatprep.subr.mxu0 0.0
    %1684 = vmatpush1.msra.mxu0 0.0
    %1685 = vmatprep.subr.mxu0 0.0
    %1686 = vmatpush1.msra.mxu0 0.0
    %1687 = vmatprep.mubr.f32.mxu0 0.0
    %1688 = vmatmul.mubr.f32.gmra.mrb[0].mxu0 %v1618
    %v1689 = vpop.f32.mrb[0].mxu0
    %v1690 = vadd.f32 0.0, %v1689
    %v1691 = vpop.f32.mrb[0].mxu0
    %1692 = vmatprep.mubr.f32.mxu0 0.0
    %1693 = vmatmul.mubr.f32.gmra.mrb[0].mxu0 %v1621
    %v1694 = vpop.f32.mrb[0].mxu0
    %v1695 = vadd.f32 0.0, %v1694
    %v1696 = vpop.f32.mrb[0].mxu0
    %1697 = vdwg.mxu0
    %1698 = vrot.lane.b32.xlu0 %v1492, 120
    %v1699 = vpop.permute.xlu0 %1698
    %1700 = vrot.lane.b32.xlu0 %v1497, 120
    %v1701 = vpop.permute.xlu0 %1700
    %1702 = vrot.lane.b32.xlu0 %v1492, 88
    %v1703 = vpop.permute.xlu0 %1702
    %1704 = vrot.lane.b32.xlu0 %v1497, 88
    %v1705 = vpop.permute.xlu0 %1704
    %v1706 = vsel %vm266, %v1699, 0
    %v1708 = vsel %vm266, %v1701, 0
    %v1710 = vsel %vm266, %v1703, 0
    %v1712 = vsel %vm266, %v1705, 0
    %1714 = vmatprep.subr.mxu0 0.0
    %1715 = vmatpush1.xpose.msra.mxu0 %v1710
    %1716 = vmatprep.subr.mxu0 0.0
    %1717 = vmatpush1.xpose.msra.mxu0 %v1712
    %1718 = vmatprep.subr.mxu0 0.0
    %1719 = vmatpush1.xpose.msra.mxu0 0.0
    %1720 = vmatprep.subr.mxu0 0.0
    %1721 = vmatpush1.xpose.msra.mxu0 0.0
    %1722 = vmatprep.subr.mxu0 0.0
    %1723 = vmatpush1.xpose.msra.mxu0 0.0
    %1724 = vmatprep.subr.mxu0 0.0
    %1725 = vmatpush1.xpose.msra.mxu0 0.0
    %1726 = vmatprep.subr.mxu0 0.0
    %1727 = vmatpush1.xpose.msra.mxu0 0.0
    %1728 = vmatprep.subr.mxu0 0.0
    %1729 = vmatpush1.xpose.msra.mxu0 0.0
    %1730 = vmatprep.subr.mxu0 0.0
    %1731 = vmatpush1.xpose.msra.mxu0 0.0
    %1732 = vmatprep.subr.mxu0 0.0
    %1733 = vmatpush1.xpose.msra.mxu0 0.0
    %1734 = vmatprep.subr.mxu0 0.0
    %1735 = vmatpush1.xpose.msra.mxu0 0.0
    %1736 = vmatprep.subr.mxu0 0.0
    %1737 = vmatpush1.xpose.msra.mxu0 0.0
    %1738 = vmatprep.subr.mxu0 0.0
    %1739 = vmatpush1.xpose.msra.mxu0 0.0
    %1740 = vmatprep.subr.mxu0 0.0
    %1741 = vmatpush1.xpose.msra.mxu0 0.0
    %1742 = vmatprep.subr.mxu0 0.0
    %1743 = vmatpush1.xpose.msra.mxu0 0.0
    %1744 = vmatprep.subr.mxu0 0.0
    %1745 = vmatpush1.xpose.msra.mxu0 0.0
    %1746 = vmatprep.subr.mxu0 0.0
    %1747 = vmatpush1.xpose.msra.mxu0 0.0
    %1748 = vmatprep.subr.mxu0 0.0
    %1749 = vmatpush1.xpose.msra.mxu0 0.0
    %1750 = vmatprep.subr.mxu0 0.0
    %1751 = vmatpush1.xpose.msra.mxu0 0.0
    %1752 = vmatprep.subr.mxu0 0.0
    %1753 = vmatpush1.xpose.msra.mxu0 0.0
    %1754 = vmatprep.subr.mxu0 0.0
    %1755 = vmatpush1.xpose.msra.mxu0 0.0
    %1756 = vmatprep.subr.mxu0 0.0
    %1757 = vmatpush1.xpose.msra.mxu0 0.0
    %1758 = vmatprep.subr.mxu0 0.0
    %1759 = vmatpush1.xpose.msra.mxu0 0.0
    %1760 = vmatprep.subr.mxu0 0.0
    %1761 = vmatpush1.xpose.msra.mxu0 0.0
    %1762 = vmatprep.subr.mxu0 0.0
    %1763 = vmatpush1.xpose.msra.mxu0 0.0
    %1764 = vmatprep.subr.mxu0 0.0
    %1765 = vmatpush1.xpose.msra.mxu0 0.0
    %1766 = vmatprep.subr.mxu0 0.0
    %1767 = vmatpush1.xpose.msra.mxu0 0.0
    %1768 = vmatprep.subr.mxu0 0.0
    %1769 = vmatpush1.xpose.msra.mxu0 0.0
    %1770 = vmatprep.subr.mxu0 0.0
    %1771 = vmatpush1.xpose.msra.mxu0 0.0
    %1772 = vmatprep.subr.mxu0 0.0
    %1773 = vmatpush1.xpose.msra.mxu0 0.0
    %1774 = vmatprep.subr.mxu0 0.0
    %1775 = vmatpush1.xpose.msra.mxu0 0.0
    %1776 = vmatprep.subr.mxu0 0.0
    %1777 = vmatpush1.xpose.msra.mxu0 0.0
    %1778 = vmatprep.mubr.f32.mxu0 0.0
    %1779 = vmatmul.mubr.f32.gmra.mrb[0].mxu0 %v1706
    %v1780 = vpop.f32.mrb[0].mxu0
    %v1781 = vadd.f32 %v101, %v1780
    %v1782 = vpop.f32.mrb[0].mxu0
    %1783 = vmatprep.mubr.f32.mxu0 0.0
    %1784 = vmatmul.mubr.f32.gmra.mrb[0].mxu0 %v1708
    %v1785 = vpop.f32.mrb[0].mxu0
    %v1786 = vadd.f32 %v102, %v1785
    %v1787 = vpop.f32.mrb[0].mxu0
    %1788 = vdwg.mxu0
    %v1789 = vsel %vm350, %v1781, -inf
    %1790 = vmax.xlane.f32.xlu0 %v1789
    %v1791 = vpop.xlane.xlu0 %1790
    %v1792 = vsel %vm350, %v1786, -inf
    %1793 = vmax.xlane.f32.xlu0 %v1792
    %v1794 = vpop.xlane.xlu0 %1793
    %v1795 = vsub.f32 %v1781, %v1791
    %v1796 = vsub.f32 %v1786, %v1794
    %v1797 = vmul.f32 %v1795, 1.442695
    %v1798 = vpow.pop %v1797
    %v1799 = vmul.f32 %v1796, 1.442695
    %v1800 = vpow.pop %v1799
    %v1801 = vsel %vm350, %v1798, 0.0
    %1802 = vadd.xlane.f32.xlu0 %v1801
    %v1803 = vpop.xlane.xlu0 %1802
    %v1804 = vsel %vm350, %v1800, 0.0
    %1805 = vadd.xlane.f32.xlu0 %v1804
    %v1806 = vpop.xlane.xlu0 %1805
    %v1807 = vrcp.pop %v1803
    %v1808 = vmul.f32 %v1798, %v1807
    %v1809 = vrcp.pop %v1806
    %v1810 = vmul.f32 %v1800, %v1809
    %1811 = vrot.lane.b32.xlu0 %v1492, 56
    %v1812 = vpop.permute.xlu0 %1811
    %1813 = vrot.lane.b32.xlu0 %v1497, 56
    %v1814 = vpop.permute.xlu0 %1813
    %v1818 = vsel %vm350, %v1808, 0
    %v1821 = vsel %vm350, %v1810, 0
    %1823 = vmatprep.subr.mxu0 0.0
    %1824 = vmatpush1.msra.mxu0 %v1812
    %1825 = vmatprep.subr.mxu0 0.0
    %1826 = vmatpush1.msra.mxu0 %v1814
    %1827 = vmatprep.subr.mxu0 0.0
    %1828 = vmatpush1.msra.mxu0 0.0
    %1829 = vmatprep.subr.mxu0 0.0
    %1830 = vmatpush1.msra.mxu0 0.0
    %1831 = vmatprep.subr.mxu0 0.0
    %1832 = vmatpush1.msra.mxu0 0.0
    %1833 = vmatprep.subr.mxu0 0.0
    %1834 = vmatpush1.msra.mxu0 0.0
    %1835 = vmatprep.subr.mxu0 0.0
    %1836 = vmatpush1.msra.mxu0 0.0
    %1837 = vmatprep.subr.mxu0 0.0
    %1838 = vmatpush1.msra.mxu0 0.0
    %1839 = vmatprep.subr.mxu0 0.0
    %1840 = vmatpush1.msra.mxu0 0.0
    %1841 = vmatprep.subr.mxu0 0.0
    %1842 = vmatpush1.msra.mxu0 0.0
    %1843 = vmatprep.subr.mxu0 0.0
    %1844 = vmatpush1.msra.mxu0 0.0
    %1845 = vmatprep.subr.mxu0 0.0
    %1846 = vmatpush1.msra.mxu0 0.0
    %1847 = vmatprep.subr.mxu0 0.0
    %1848 = vmatpush1.msra.mxu0 0.0
    %1849 = vmatprep.subr.mxu0 0.0
    %1850 = vmatpush1.msra.mxu0 0.0
    %1851 = vmatprep.subr.mxu0 0.0
    %1852 = vmatpush1.msra.mxu0 0.0
    %1853 = vmatprep.subr.mxu0 0.0
    %1854 = vmatpush1.msra.mxu0 0.0
    %1855 = vmatprep.subr.mxu0 0.0
    %1856 = vmatpush1.msra.mxu0 0.0
    %1857 = vmatprep.subr.mxu0 0.0
    %1858 = vmatpush1.msra.mxu0 0.0
    %1859 = vmatprep.subr.mxu0 0.0
    %1860 = vmatpush1.msra.mxu0 0.0
    %1861 = vmatprep.subr.mxu0 0.0
    %1862 = vmatpush1.msra.mxu0 0.0
    %1863 = vmatprep.subr.mxu0 0.0
    %1864 = vmatpush1.msra.mxu0 0.0
    %1865 = vmatprep.subr.mxu0 0.0
    %1866 = vmatpush1.msra.mxu0 0.0
    %1867 = vmatprep.subr.mxu0 0.0
    %1868 = vmatpush1.msra.mxu0 0.0
    %1869 = vmatprep.subr.mxu0 0.0
    %1870 = vmatpush1.msra.mxu0 0.0
    %1871 = vmatprep.subr.mxu0 0.0
    %1872 = vmatpush1.msra.mxu0 0.0
    %1873 = vmatprep.subr.mxu0 0.0
    %1874 = vmatpush1.msra.mxu0 0.0
    %1875 = vmatprep.subr.mxu0 0.0
    %1876 = vmatpush1.msra.mxu0 0.0
    %1877 = vmatprep.subr.mxu0 0.0
    %1878 = vmatpush1.msra.mxu0 0.0
    %1879 = vmatprep.subr.mxu0 0.0
    %1880 = vmatpush1.msra.mxu0 0.0
    %1881 = vmatprep.subr.mxu0 0.0
    %1882 = vmatpush1.msra.mxu0 0.0
    %1883 = vmatprep.subr.mxu0 0.0
    %1884 = vmatpush1.msra.mxu0 0.0
    %1885 = vmatprep.subr.mxu0 0.0
    %1886 = vmatpush1.msra.mxu0 0.0
    %1887 = vmatprep.mubr.f32.mxu0 0.0
    %1888 = vmatmul.mubr.f32.gmra.mrb[0].mxu0 %v1818
    %v1889 = vpop.f32.mrb[0].mxu0
    %v1890 = vadd.f32 0.0, %v1889
    %v1891 = vpop.f32.mrb[0].mxu0
    %1892 = vmatprep.mubr.f32.mxu0 0.0
    %1893 = vmatmul.mubr.f32.gmra.mrb[0].mxu0 %v1821
    %v1894 = vpop.f32.mrb[0].mxu0
    %v1895 = vadd.f32 0.0, %v1894
    %v1896 = vpop.f32.mrb[0].mxu0
    %1897 = vdwg.mxu0
    %1898 = vrot.lane.b32.xlu0 %v1492, 112
    %v1899 = vpop.permute.xlu0 %1898
    %1900 = vrot.lane.b32.xlu0 %v1497, 112
    %v1901 = vpop.permute.xlu0 %1900
    %1902 = vrot.lane.b32.xlu0 %v1492, 80
    %v1903 = vpop.permute.xlu0 %1902
    %1904 = vrot.lane.b32.xlu0 %v1497, 80
    %v1905 = vpop.permute.xlu0 %1904
    %v1906 = vsel %vm266, %v1899, 0
    %v1908 = vsel %vm266, %v1901, 0
    %v1910 = vsel %vm266, %v1903, 0
    %v1912 = vsel %vm266, %v1905, 0
    %1914 = vmatprep.subr.mxu0 0.0
    %1915 = vmatpush1.xpose.msra.mxu0 %v1910
    %1916 = vmatprep.subr.mxu0 0.0
    %1917 = vmatpush1.xpose.msra.mxu0 %v1912
    %1918 = vmatprep.subr.mxu0 0.0
    %1919 = vmatpush1.xpose.msra.mxu0 0.0
    %1920 = vmatprep.subr.mxu0 0.0
    %1921 = vmatpush1.xpose.msra.mxu0 0.0
    %1922 = vmatprep.subr.mxu0 0.0
    %1923 = vmatpush1.xpose.msra.mxu0 0.0
    %1924 = vmatprep.subr.mxu0 0.0
    %1925 = vmatpush1.xpose.msra.mxu0 0.0
    %1926 = vmatprep.subr.mxu0 0.0
    %1927 = vmatpush1.xpose.msra.mxu0 0.0
    %1928 = vmatprep.subr.mxu0 0.0
    %1929 = vmatpush1.xpose.msra.mxu0 0.0
    %1930 = vmatprep.subr.mxu0 0.0
    %1931 = vmatpush1.xpose.msra.mxu0 0.0
    %1932 = vmatprep.subr.mxu0 0.0
    %1933 = vmatpush1.xpose.msra.mxu0 0.0
    %1934 = vmatprep.subr.mxu0 0.0
    %1935 = vmatpush1.xpose.msra.mxu0 0.0
    %1936 = vmatprep.subr.mxu0 0.0
    %1937 = vmatpush1.xpose.msra.mxu0 0.0
    %1938 = vmatprep.subr.mxu0 0.0
    %1939 = vmatpush1.xpose.msra.mxu0 0.0
    %1940 = vmatprep.subr.mxu0 0.0
    %1941 = vmatpush1.xpose.msra.mxu0 0.0
    %1942 = vmatprep.subr.mxu0 0.0
    %1943 = vmatpush1.xpose.msra.mxu0 0.0
    %1944 = vmatprep.subr.mxu0 0.0
    %1945 = vmatpush1.xpose.msra.mxu0 0.0
    %1946 = vmatprep.subr.mxu0 0.0
    %1947 = vmatpush1.xpose.msra.mxu0 0.0
    %1948 = vmatprep.subr.mxu0 0.0
    %1949 = vmatpush1.xpose.msra.mxu0 0.0
    %1950 = vmatprep.subr.mxu0 0.0
    %1951 = vmatpush1.xpose.msra.mxu0 0.0
    %1952 = vmatprep.subr.mxu0 0.0
    %1953 = vmatpush1.xpose.msra.mxu0 0.0
    %1954 = vmatprep.subr.mxu0 0.0
    %1955 = vmatpush1.xpose.msra.mxu0 0.0
    %1956 = vmatprep.subr.mxu0 0.0
    %1957 = vmatpush1.xpose.msra.mxu0 0.0
    %1958 = vmatprep.subr.mxu0 0.0
    %1959 = vmatpush1.xpose.msra.mxu0 0.0
    %1960 = vmatprep.subr.mxu0 0.0
    %1961 = vmatpush1.xpose.msra.mxu0 0.0
    %1962 = vmatprep.subr.mxu0 0.0
    %1963 = vmatpush1.xpose.msra.mxu0 0.0
    %1964 = vmatprep.subr.mxu0 0.0
    %1965 = vmatpush1.xpose.msra.mxu0 0.0
    %1966 = vmatprep.subr.mxu0 0.0
    %1967 = vmatpush1.xpose.msra.mxu0 0.0
    %1968 = vmatprep.subr.mxu0 0.0
    %1969 = vmatpush1.xpose.msra.mxu0 0.0
    %1970 = vmatprep.subr.mxu0 0.0
    %1971 = vmatpush1.xpose.msra.mxu0 0.0
    %1972 = vmatprep.subr.mxu0 0.0
    %1973 = vmatpush1.xpose.msra.mxu0 0.0
    %1974 = vmatprep.subr.mxu0 0.0
    %1975 = vmatpush1.xpose.msra.mxu0 0.0
    %1976 = vmatprep.subr.mxu0 0.0
    %1977 = vmatpush1.xpose.msra.mxu0 0.0
    %1978 = vmatprep.mubr.f32.mxu0 0.0
    %1979 = vmatmul.mubr.f32.gmra.mrb[0].mxu0 %v1906
    %v1980 = vpop.f32.mrb[0].mxu0
    %v1981 = vadd.f32 %v101, %v1980
    %v1982 = vpop.f32.mrb[0].mxu0
    %1983 = vmatprep.mubr.f32.mxu0 0.0
    %1984 = vmatmul.mubr.f32.gmra.mrb[0].mxu0 %v1908
    %v1985 = vpop.f32.mrb[0].mxu0
    %v1986 = vadd.f32 %v102, %v1985
    %v1987 = vpop.f32.mrb[0].mxu0
    %1988 = vdwg.mxu0
    %v1989 = vsel %vm350, %v1981, -inf
    %1990 = vmax.xlane.f32.xlu0 %v1989
    %v1991 = vpop.xlane.xlu0 %1990
    %v1992 = vsel %vm350, %v1986, -inf
    %1993 = vmax.xlane.f32.xlu0 %v1992
    %v1994 = vpop.xlane.xlu0 %1993
    %v1995 = vsub.f32 %v1981, %v1991
    %v1996 = vsub.f32 %v1986, %v1994
    %v1997 = vmul.f32 %v1995, 1.442695
    %v1998 = vpow.pop %v1997
    %v1999 = vmul.f32 %v1996, 1.442695
    %v2000 = vpow.pop %v1999
    %v2001 = vsel %vm350, %v1998, 0.0
    %2002 = vadd.xlane.f32.xlu0 %v2001
    %v2003 = vpop.xlane.xlu0 %2002
    %v2004 = vsel %vm350, %v2000, 0.0
    %2005 = vadd.xlane.f32.xlu0 %v2004
    %v2006 = vpop.xlane.xlu0 %2005
    %v2007 = vrcp.pop %v2003
    %v2008 = vmul.f32 %v1998, %v2007
    %v2009 = vrcp.pop %v2006
    %v2010 = vmul.f32 %v2000, %v2009
    %2011 = vrot.lane.b32.xlu0 %v1492, 48
    %v2012 = vpop.permute.xlu0 %2011
    %2013 = vrot.lane.b32.xlu0 %v1497, 48
    %v2014 = vpop.permute.xlu0 %2013
    %v2018 = vsel %vm350, %v2008, 0
    %v2021 = vsel %vm350, %v2010, 0
    %2023 = vmatprep.subr.mxu0 0.0
    %2024 = vmatpush1.msra.mxu0 %v2012
    %2025 = vmatprep.subr.mxu0 0.0
    %2026 = vmatpush1.msra.mxu0 %v2014
    %2027 = vmatprep.subr.mxu0 0.0
    %2028 = vmatpush1.msra.mxu0 0.0
    %2029 = vmatprep.subr.mxu0 0.0
    %2030 = vmatpush1.msra.mxu0 0.0
    %2031 = vmatprep.subr.mxu0 0.0
    %2032 = vmatpush1.msra.mxu0 0.0
    %2033 = vmatprep.subr.mxu0 0.0
    %2034 = vmatpush1.msra.mxu0 0.0
    %2035 = vmatprep.subr.mxu0 0.0
    %2036 = vmatpush1.msra.mxu0 0.0
    %2037 = vmatprep.subr.mxu0 0.0
    %2038 = vmatpush1.msra.mxu0 0.0
    %2039 = vmatprep.subr.mxu0 0.0
    %2040 = vmatpush1.msra.mxu0 0.0
    %2041 = vmatprep.subr.mxu0 0.0
    %2042 = vmatpush1.msra.mxu0 0.0
    %2043 = vmatprep.subr.mxu0 0.0
    %2044 = vmatpush1.msra.mxu0 0.0
    %2045 = vmatprep.subr.mxu0 0.0
    %2046 = vmatpush1.msra.mxu0 0.0
    %2047 = vmatprep.subr.mxu0 0.0
    %2048 = vmatpush1.msra.mxu0 0.0
    %2049 = vmatprep.subr.mxu0 0.0
    %2050 = vmatpush1.msra.mxu0 0.0
    %2051 = vmatprep.subr.mxu0 0.0
    %2052 = vmatpush1.msra.mxu0 0.0
    %2053 = vmatprep.subr.mxu0 0.0
    %2054 = vmatpush1.msra.mxu0 0.0
    %2055 = vmatprep.subr.mxu0 0.0
    %2056 = vmatpush1.msra.mxu0 0.0
    %2057 = vmatprep.subr.mxu0 0.0
    %2058 = vmatpush1.msra.mxu0 0.0
    %2059 = vmatprep.subr.mxu0 0.0
    %2060 = vmatpush1.msra.mxu0 0.0
    %2061 = vmatprep.subr.mxu0 0.0
    %2062 = vmatpush1.msra.mxu0 0.0
    %2063 = vmatprep.subr.mxu0 0.0
    %2064 = vmatpush1.msra.mxu0 0.0
    %2065 = vmatprep.subr.mxu0 0.0
    %2066 = vmatpush1.msra.mxu0 0.0
    %2067 = vmatprep.subr.mxu0 0.0
    %2068 = vmatpush1.msra.mxu0 0.0
    %2069 = vmatprep.subr.mxu0 0.0
    %2070 = vmatpush1.msra.mxu0 0.0
    %2071 = vmatprep.subr.mxu0 0.0
    %2072 = vmatpush1.msra.mxu0 0.0
    %2073 = vmatprep.subr.mxu0 0.0
    %2074 = vmatpush1.msra.mxu0 0.0
    %2075 = vmatprep.subr.mxu0 0.0
    %2076 = vmatpush1.msra.mxu0 0.0
    %2077 = vmatprep.subr.mxu0 0.0
    %2078 = vmatpush1.msra.mxu0 0.0
    %2079 = vmatprep.subr.mxu0 0.0
    %2080 = vmatpush1.msra.mxu0 0.0
    %2081 = vmatprep.subr.mxu0 0.0
    %2082 = vmatpush1.msra.mxu0 0.0
    %2083 = vmatprep.subr.mxu0 0.0
    %2084 = vmatpush1.msra.mxu0 0.0
    %2085 = vmatprep.subr.mxu0 0.0
    %2086 = vmatpush1.msra.mxu0 0.0
    %2087 = vmatprep.mubr.f32.mxu0 0.0
    %2088 = vmatmul.mubr.f32.gmra.mrb[0].mxu0 %v2018
    %v2089 = vpop.f32.mrb[0].mxu0
    %v2090 = vadd.f32 0.0, %v2089
    %v2091 = vpop.f32.mrb[0].mxu0
    %2092 = vmatprep.mubr.f32.mxu0 0.0
    %2093 = vmatmul.mubr.f32.gmra.mrb[0].mxu0 %v2021
    %v2094 = vpop.f32.mrb[0].mxu0
    %v2095 = vadd.f32 0.0, %v2094
    %v2096 = vpop.f32.mrb[0].mxu0
    %2097 = vdwg.mxu0
    %2098 = vrot.lane.b32.xlu0 %v1492, 104
    %v2099 = vpop.permute.xlu0 %2098
    %2100 = vrot.lane.b32.xlu0 %v1497, 104
    %v2101 = vpop.permute.xlu0 %2100
    %2102 = vrot.lane.b32.xlu0 %v1492, 72
    %v2103 = vpop.permute.xlu0 %2102
    %2104 = vrot.lane.b32.xlu0 %v1497, 72
    %v2105 = vpop.permute.xlu0 %2104
    %v2106 = vsel %vm266, %v2099, 0
    %v2108 = vsel %vm266, %v2101, 0
    %v2110 = vsel %vm266, %v2103, 0
    %v2112 = vsel %vm266, %v2105, 0
    %2114 = vmatprep.subr.mxu0 0.0
    %2115 = vmatpush1.xpose.msra.mxu0 %v2110
    %2116 = vmatprep.subr.mxu0 0.0
    %2117 = vmatpush1.xpose.msra.mxu0 %v2112
    %2118 = vmatprep.subr.mxu0 0.0
    %2119 = vmatpush1.xpose.msra.mxu0 0.0
    %2120 = vmatprep.subr.mxu0 0.0
    %2121 = vmatpush1.xpose.msra.mxu0 0.0
    %2122 = vmatprep.subr.mxu0 0.0
    %2123 = vmatpush1.xpose.msra.mxu0 0.0
    %2124 = vmatprep.subr.mxu0 0.0
    %2125 = vmatpush1.xpose.msra.mxu0 0.0
    %2126 = vmatprep.subr.mxu0 0.0
    %2127 = vmatpush1.xpose.msra.mxu0 0.0
    %2128 = vmatprep.subr.mxu0 0.0
    %2129 = vmatpush1.xpose.msra.mxu0 0.0
    %2130 = vmatprep.subr.mxu0 0.0
    %2131 = vmatpush1.xpose.msra.mxu0 0.0
    %2132 = vmatprep.subr.mxu0 0.0
    %2133 = vmatpush1.xpose.msra.mxu0 0.0
    %2134 = vmatprep.subr.mxu0 0.0
    %2135 = vmatpush1.xpose.msra.mxu0 0.0
    %2136 = vmatprep.subr.mxu0 0.0
    %2137 = vmatpush1.xpose.msra.mxu0 0.0
    %2138 = vmatprep.subr.mxu0 0.0
    %2139 = vmatpush1.xpose.msra.mxu0 0.0
    %2140 = vmatprep.subr.mxu0 0.0
    %2141 = vmatpush1.xpose.msra.mxu0 0.0
    %2142 = vmatprep.subr.mxu0 0.0
    %2143 = vmatpush1.xpose.msra.mxu0 0.0
    %2144 = vmatprep.subr.mxu0 0.0
    %2145 = vmatpush1.xpose.msra.mxu0 0.0
    %2146 = vmatprep.subr.mxu0 0.0
    %2147 = vmatpush1.xpose.msra.mxu0 0.0
    %2148 = vmatprep.subr.mxu0 0.0
    %2149 = vmatpush1.xpose.msra.mxu0 0.0
    %2150 = vmatprep.subr.mxu0 0.0
    %2151 = vmatpush1.xpose.msra.mxu0 0.0
    %2152 = vmatprep.subr.mxu0 0.0
    %2153 = vmatpush1.xpose.msra.mxu0 0.0
    %2154 = vmatprep.subr.mxu0 0.0
    %2155 = vmatpush1.xpose.msra.mxu0 0.0
    %2156 = vmatprep.subr.mxu0 0.0
    %2157 = vmatpush1.xpose.msra.mxu0 0.0
    %2158 = vmatprep.subr.mxu0 0.0
    %2159 = vmatpush1.xpose.msra.mxu0 0.0
    %2160 = vmatprep.subr.mxu0 0.0
    %2161 = vmatpush1.xpose.msra.mxu0 0.0
    %2162 = vmatprep.subr.mxu0 0.0
    %2163 = vmatpush1.xpose.msra.mxu0 0.0
    %2164 = vmatprep.subr.mxu0 0.0
    %2165 = vmatpush1.xpose.msra.mxu0 0.0
    %2166 = vmatprep.subr.mxu0 0.0
    %2167 = vmatpush1.xpose.msra.mxu0 0.0
    %2168 = vmatprep.subr.mxu0 0.0
    %2169 = vmatpush1.xpose.msra.mxu0 0.0
    %2170 = vmatprep.subr.mxu0 0.0
    %2171 = vmatpush1.xpose.msra.mxu0 0.0
    %2172 = vmatprep.subr.mxu0 0.0
    %2173 = vmatpush1.xpose.msra.mxu0 0.0
    %2174 = vmatprep.subr.mxu0 0.0
    %2175 = vmatpush1.xpose.msra.mxu0 0.0
    %2176 = vmatprep.subr.mxu0 0.0
    %2177 = vmatpush1.xpose.msra.mxu0 0.0
    %2178 = vmatprep.mubr.f32.mxu0 0.0
    %2179 = vmatmul.mubr.f32.gmra.mrb[0].mxu0 %v2106
    %v2180 = vpop.f32.mrb[0].mxu0
    %v2181 = vadd.f32 %v101, %v2180
    %v2182 = vpop.f32.mrb[0].mxu0
    %2183 = vmatprep.mubr.f32.mxu0 0.0
    %2184 = vmatmul.mubr.f32.gmra.mrb[0].mxu0 %v2108
    %v2185 = vpop.f32.mrb[0].mxu0
    %v2186 = vadd.f32 %v102, %v2185
    %v2187 = vpop.f32.mrb[0].mxu0
    %2188 = vdwg.mxu0
    %v2189 = vsel %vm350, %v2181, -inf
    %2190 = vmax.xlane.f32.xlu0 %v2189
    %v2191 = vpop.xlane.xlu0 %2190
    %v2192 = vsel %vm350, %v2186, -inf
    %2193 = vmax.xlane.f32.xlu0 %v2192
    %v2194 = vpop.xlane.xlu0 %2193
    %v2195 = vsub.f32 %v2181, %v2191
    %v2196 = vsub.f32 %v2186, %v2194
    %v2197 = vmul.f32 %v2195, 1.442695
    %v2198 = vpow.pop %v2197
    %v2199 = vmul.f32 %v2196, 1.442695
    %v2200 = vpow.pop %v2199
    %v2201 = vsel %vm350, %v2198, 0.0
    %2202 = vadd.xlane.f32.xlu0 %v2201
    %v2203 = vpop.xlane.xlu0 %2202
    %v2204 = vsel %vm350, %v2200, 0.0
    %2205 = vadd.xlane.f32.xlu0 %v2204
    %v2206 = vpop.xlane.xlu0 %2205
    %v2207 = vrcp.pop %v2203
    %v2208 = vmul.f32 %v2198, %v2207
    %v2209 = vrcp.pop %v2206
    %v2210 = vmul.f32 %v2200, %v2209
    %2211 = vrot.lane.b32.xlu0 %v1492, 40
    %v2212 = vpop.permute.xlu0 %2211
    %2213 = vrot.lane.b32.xlu0 %v1497, 40
    %v2214 = vpop.permute.xlu0 %2213
    %v2218 = vsel %vm350, %v2208, 0
    %v2221 = vsel %vm350, %v2210, 0
    %2223 = vmatprep.subr.mxu0 0.0
    %2224 = vmatpush1.msra.mxu0 %v2212
    %2225 = vmatprep.subr.mxu0 0.0
    %2226 = vmatpush1.msra.mxu0 %v2214
    %2227 = vmatprep.subr.mxu0 0.0
    %2228 = vmatpush1.msra.mxu0 0.0
    %2229 = vmatprep.subr.mxu0 0.0
    %2230 = vmatpush1.msra.mxu0 0.0
    %2231 = vmatprep.subr.mxu0 0.0
    %2232 = vmatpush1.msra.mxu0 0.0
    %2233 = vmatprep.subr.mxu0 0.0
    %2234 = vmatpush1.msra.mxu0 0.0
    %2235 = vmatprep.subr.mxu0 0.0
    %2236 = vmatpush1.msra.mxu0 0.0
    %2237 = vmatprep.subr.mxu0 0.0
    %2238 = vmatpush1.msra.mxu0 0.0
    %2239 = vmatprep.subr.mxu0 0.0
    %2240 = vmatpush1.msra.mxu0 0.0
    %2241 = vmatprep.subr.mxu0 0.0
    %2242 = vmatpush1.msra.mxu0 0.0
    %2243 = vmatprep.subr.mxu0 0.0
    %2244 = vmatpush1.msra.mxu0 0.0
    %2245 = vmatprep.subr.mxu0 0.0
    %2246 = vmatpush1.msra.mxu0 0.0
    %2247 = vmatprep.subr.mxu0 0.0
    %2248 = vmatpush1.msra.mxu0 0.0
    %2249 = vmatprep.subr.mxu0 0.0
    %2250 = vmatpush1.msra.mxu0 0.0
    %2251 = vmatprep.subr.mxu0 0.0
    %2252 = vmatpush1.msra.mxu0 0.0
    %2253 = vmatprep.subr.mxu0 0.0
    %2254 = vmatpush1.msra.mxu0 0.0
    %2255 = vmatprep.subr.mxu0 0.0
    %2256 = vmatpush1.msra.mxu0 0.0
    %2257 = vmatprep.subr.mxu0 0.0
    %2258 = vmatpush1.msra.mxu0 0.0
    %2259 = vmatprep.subr.mxu0 0.0
    %2260 = vmatpush1.msra.mxu0 0.0
    %2261 = vmatprep.subr.mxu0 0.0
    %2262 = vmatpush1.msra.mxu0 0.0
    %2263 = vmatprep.subr.mxu0 0.0
    %2264 = vmatpush1.msra.mxu0 0.0
    %2265 = vmatprep.subr.mxu0 0.0
    %2266 = vmatpush1.msra.mxu0 0.0
    %2267 = vmatprep.subr.mxu0 0.0
    %2268 = vmatpush1.msra.mxu0 0.0
    %2269 = vmatprep.subr.mxu0 0.0
    %2270 = vmatpush1.msra.mxu0 0.0
    %2271 = vmatprep.subr.mxu0 0.0
    %2272 = vmatpush1.msra.mxu0 0.0
    %2273 = vmatprep.subr.mxu0 0.0
    %2274 = vmatpush1.msra.mxu0 0.0
    %2275 = vmatprep.subr.mxu0 0.0
    %2276 = vmatpush1.msra.mxu0 0.0
    %2277 = vmatprep.subr.mxu0 0.0
    %2278 = vmatpush1.msra.mxu0 0.0
    %2279 = vmatprep.subr.mxu0 0.0
    %2280 = vmatpush1.msra.mxu0 0.0
    %2281 = vmatprep.subr.mxu0 0.0
    %2282 = vmatpush1.msra.mxu0 0.0
    %2283 = vmatprep.subr.mxu0 0.0
    %2284 = vmatpush1.msra.mxu0 0.0
    %2285 = vmatprep.subr.mxu0 0.0
    %2286 = vmatpush1.msra.mxu0 0.0
    %2287 = vmatprep.mubr.f32.mxu0 0.0
    %2288 = vmatmul.mubr.f32.gmra.mrb[0].mxu0 %v2218
    %v2289 = vpop.f32.mrb[0].mxu0
    %v2290 = vadd.f32 0.0, %v2289
    %v2291 = vpop.f32.mrb[0].mxu0
    %2292 = vmatprep.mubr.f32.mxu0 0.0
    %2293 = vmatmul.mubr.f32.gmra.mrb[0].mxu0 %v2221
    %v2294 = vpop.f32.mrb[0].mxu0
    %v2295 = vadd.f32 0.0, %v2294
    %v2296 = vpop.f32.mrb[0].mxu0
    %2297 = vdwg.mxu0
    %2300 = vrot.lane.b32.xlu0 %v1890, 8
    %v2301 = vpop.permute.xlu0 %2300
    %2302 = vrot.lane.b32.xlu0 %v1895, 8
    %v2303 = vpop.permute.xlu0 %2302
    %2308 = vrot.lane.b32.xlu0 %v2090, 16
    %v2309 = vpop.permute.xlu0 %2308
    %2310 = vrot.lane.b32.xlu0 %v2095, 16
    %v2311 = vpop.permute.xlu0 %2310
    %2316 = vrot.lane.b32.xlu0 %v2290, 24
    %v2317 = vpop.permute.xlu0 %2316
    %2318 = vrot.lane.b32.xlu0 %v2295, 24
    %v2319 = vpop.permute.xlu0 %2318
    %v2322 = vsel %vm266, %v1690, %v2301
    %v2323 = vsel %vm266, %v1695, %v2303
    %v2324 = vsel %vm350, %v2322, %v2309
    %v2325 = vsel %vm350, %v2323, %v2311
    %v2326 = vsel %vm1088, %v2324, %v2317
    %v2327 = vsel %vm1088, %v2325, %v2319
    %v2329 = vsel %vm167, %v2326, 0
    %v2332 = vsel %vm167, %v2327, 0
    %2334 = vmatprep.subr.mxu0 0.0
    %2335 = vmatpush1.msra.mxu0 %v1091
    %2336 = vmatprep.subr.mxu0 0.0
    %2337 = vmatpush1.msra.mxu0 %v1092
    %2338 = vmatprep.subr.mxu0 0.0
    %2339 = vmatpush1.msra.mxu0 %v1093
    %2340 = vmatprep.subr.mxu0 0.0
    %2341 = vmatpush1.msra.mxu0 %v1094
    %2342 = vmatprep.subr.mxu0 0.0
    %2343 = vmatpush1.msra.mxu0 0.0
    %2344 = vmatprep.subr.mxu0 0.0
    %2345 = vmatpush1.msra.mxu0 0.0
    %2346 = vmatprep.subr.mxu0 0.0
    %2347 = vmatpush1.msra.mxu0 0.0
    %2348 = vmatprep.subr.mxu0 0.0
    %2349 = vmatpush1.msra.mxu0 0.0
    %2350 = vmatprep.subr.mxu0 0.0
    %2351 = vmatpush1.msra.mxu0 0.0
    %2352 = vmatprep.subr.mxu0 0.0
    %2353 = vmatpush1.msra.mxu0 0.0
    %2354 = vmatprep.subr.mxu0 0.0
    %2355 = vmatpush1.msra.mxu0 0.0
    %2356 = vmatprep.subr.mxu0 0.0
    %2357 = vmatpush1.msra.mxu0 0.0
    %2358 = vmatprep.subr.mxu0 0.0
    %2359 = vmatpush1.msra.mxu0 0.0
    %2360 = vmatprep.subr.mxu0 0.0
    %2361 = vmatpush1.msra.mxu0 0.0
    %2362 = vmatprep.subr.mxu0 0.0
    %2363 = vmatpush1.msra.mxu0 0.0
    %2364 = vmatprep.subr.mxu0 0.0
    %2365 = vmatpush1.msra.mxu0 0.0
    %2366 = vmatprep.subr.mxu0 0.0
    %2367 = vmatpush1.msra.mxu0 0.0
    %2368 = vmatprep.subr.mxu0 0.0
    %2369 = vmatpush1.msra.mxu0 0.0
    %2370 = vmatprep.subr.mxu0 0.0
    %2371 = vmatpush1.msra.mxu0 0.0
    %2372 = vmatprep.subr.mxu0 0.0
    %2373 = vmatpush1.msra.mxu0 0.0
    %2374 = vmatprep.subr.mxu0 0.0
    %2375 = vmatpush1.msra.mxu0 0.0
    %2376 = vmatprep.subr.mxu0 0.0
    %2377 = vmatpush1.msra.mxu0 0.0
    %2378 = vmatprep.subr.mxu0 0.0
    %2379 = vmatpush1.msra.mxu0 0.0
    %2380 = vmatprep.subr.mxu0 0.0
    %2381 = vmatpush1.msra.mxu0 0.0
    %2382 = vmatprep.subr.mxu0 0.0
    %2383 = vmatpush1.msra.mxu0 0.0
    %2384 = vmatprep.subr.mxu0 0.0
    %2385 = vmatpush1.msra.mxu0 0.0
    %2386 = vmatprep.subr.mxu0 0.0
    %2387 = vmatpush1.msra.mxu0 0.0
    %2388 = vmatprep.subr.mxu0 0.0
    %2389 = vmatpush1.msra.mxu0 0.0
    %2390 = vmatprep.subr.mxu0 0.0
    %2391 = vmatpush1.msra.mxu0 0.0
    %2392 = vmatprep.subr.mxu0 0.0
    %2393 = vmatpush1.msra.mxu0 0.0
    %2394 = vmatprep.subr.mxu0 0.0
    %2395 = vmatpush1.msra.mxu0 0.0
    %2396 = vmatprep.subr.mxu0 0.0
    %2397 = vmatpush1.msra.mxu0 0.0
    %2398 = vmatprep.mubr.f32.mxu0 0.0
    %2399 = vmatmul.mubr.f32.gmra.mrb[0].mxu0 %v2329
    %v2400 = vpop.f32.mrb[0].mxu0
    %v2401 = vadd.f32 %v115, %v2400
    %v2402 = vpop.f32.mrb[0].mxu0
    %2403 = vmatprep.mubr.f32.mxu0 0.0
    %2404 = vmatmul.mubr.f32.gmra.mrb[0].mxu0 %v2332
    %v2405 = vpop.f32.mrb[0].mxu0
    %v2406 = vadd.f32 %v115, %v2405
    %v2407 = vpop.f32.mrb[0].mxu0
    %2408 = vdwg.mxu0
    %v2409 = vadd.f32 %v1415, %v2401
    %v2410 = vadd.f32 %v1416, %v2406
    %v2411 = vsel %vm167, %v2409, 0.0
    %2412 = vadd.xlane.f32.xlu0 %v2411
    %v2413 = vpop.xlane.xlu0 %2412
    %v2414 = vsel %vm167, %v2410, 0.0
    %2415 = vadd.xlane.f32.xlu0 %v2414
    %v2416 = vpop.xlane.xlu0 %2415
    %v2417 = vmul.f32 %v2413, %v1184
    %v2418 = vmul.f32 %v2416, %v1184
    %v2419 = vsub.f32 %v2409, %v2417
    %v2420 = vsub.f32 %v2410, %v2418
    %v2421 = vmul.f32 %v2419, %v2419
    %v2422 = vmul.f32 %v2420, %v2420
    %v2423 = vsel %vm167, %v2421, 0.0
    %2424 = vadd.xlane.f32.xlu0 %v2423
    %v2425 = vpop.xlane.xlu0 %2424
    %v2426 = vsel %vm167, %v2422, 0.0
    %2427 = vadd.xlane.f32.xlu0 %v2426
    %v2428 = vpop.xlane.xlu0 %2427
    %v2429 = vmul.f32 %v2425, %v1184
    %v2430 = vmul.f32 %v2428, %v1184
    %v2431 = vadd.f32 %v2429, 1e-05
    %v2432 = vadd.f32 %v2430, 1e-05
    %v2433 = vrsqrt.pop %v2431
    %v2434 = vrsqrt.pop %v2432
    %v2435 = vmul.f32 %v2419, %v2433
    %v2436 = vmul.f32 %v2420, %v2434
    %v2437 = vmul.f32 %v2435, %v136
    %v2438 = vmul.f32 %v2436, %v136
    %v2439 = vadd.f32 %v2437, %v143
    %v2440 = vadd.f32 %v2438, %v143
    %v2442 = vsel %vm167, %v2439, 0
    %v2445 = vsel %vm167, %v2440, 0
    %2447 = vmatprep.subr.mxu0 0.0
    %2448 = vmatpush1.msra.mxu0 %v1209
    %2449 = vmatprep.subr.mxu0 0.0
    %2450 = vmatpush1.msra.mxu0 %v1210
    %2451 = vmatprep.subr.mxu0 0.0
    %2452 = vmatpush1.msra.mxu0 %v1211
    %2453 = vmatprep.subr.mxu0 0.0
    %2454 = vmatpush1.msra.mxu0 %v1212
    %2455 = vmatprep.subr.mxu0 0.0
    %2456 = vmatpush1.msra.mxu0 0.0
    %2457 = vmatprep.subr.mxu0 0.0
    %2458 = vmatpush1.msra.mxu0 0.0
    %2459 = vmatprep.subr.mxu0 0.0
    %2460 = vmatpush1.msra.mxu0 0.0
    %2461 = vmatprep.subr.mxu0 0.0
    %2462 = vmatpush1.msra.mxu0 0.0
    %2463 = vmatprep.subr.mxu0 0.0
    %2464 = vmatpush1.msra.mxu0 0.0
    %2465 = vmatprep.subr.mxu0 0.0
    %2466 = vmatpush1.msra.mxu0 0.0
    %2467 = vmatprep.subr.mxu0 0.0
    %2468 = vmatpush1.msra.mxu0 0.0
    %2469 = vmatprep.subr.mxu0 0.0
    %2470 = vmatpush1.msra.mxu0 0.0
    %2471 = vmatprep.subr.mxu0 0.0
    %2472 = vmatpush1.msra.mxu0 0.0
    %2473 = vmatprep.subr.mxu0 0.0
    %2474 = vmatpush1.msra.mxu0 0.0
    %2475 = vmatprep.subr.mxu0 0.0
    %2476 = vmatpush1.msra.mxu0 0.0
    %2477 = vmatprep.subr.mxu0 0.0
    %2478 = vmatpush1.msra.mxu0 0.0
    %2479 = vmatprep.subr.mxu0 0.0
    %2480 = vmatpush1.msra.mxu0 0.0
    %2481 = vmatprep.subr.mxu0 0.0
    %2482 = vmatpush1.msra.mxu0 0.0
    %2483 = vmatprep.subr.mxu0 0.0
    %2484 = vmatpush1.msra.mxu0 0.0
    %2485 = vmatprep.subr.mxu0 0.0
    %2486 = vmatpush1.msra.mxu0 0.0
    %2487 = vmatprep.subr.mxu0 0.0
    %2488 = vmatpush1.msra.mxu0 0.0
    %2489 = vmatprep.subr.mxu0 0.0
    %2490 = vmatpush1.msra.mxu0 0.0
    %2491 = vmatprep.subr.mxu0 0.0
    %2492 = vmatpush1.msra.mxu0 0.0
    %2493 = vmatprep.subr.mxu0 0.0
    %2494 = vmatpush1.msra.mxu0 0.0
    %2495 = vmatprep.subr.mxu0 0.0
    %2496 = vmatpush1.msra.mxu0 0.0
    %2497 = vmatprep.subr.mxu0 0.0
    %2498 = vmatpush1.msra.mxu0 0.0
    %2499 = vmatprep.subr.mxu0 0.0
    %2500 = vmatpush1.msra.mxu0 0.0
    %2501 = vmatprep.subr.mxu0 0.0
    %2502 = vmatpush1.msra.mxu0 0.0
    %2503 = vmatprep.subr.mxu0 0.0
    %2504 = vmatpush1.msra.mxu0 0.0
    %2505 = vmatprep.subr.mxu0 0.0
    %2506 = vmatpush1.msra.mxu0 0.0
    %2507 = vmatprep.subr.mxu0 0.0
    %2508 = vmatpush1.msra.mxu0 0.0
    %2509 = vmatprep.subr.mxu0 0.0
    %2510 = vmatpush1.msra.mxu0 0.0
    %2511 = vmatprep.mubr.f32.mxu0 0.0
    %2512 = vmatmul.mubr.f32.gmra.mrb[0].mxu0 %v2442
    %v2513 = vpop.f32.mrb[0].mxu0
    %v2514 = vadd.f32 %v122, %v2513
    %v2515 = vpop.f32.mrb[0].mxu0
    %2516 = vmatprep.mubr.f32.mxu0 0.0
    %2517 = vmatmul.mubr.f32.gmra.mrb[0].mxu0 %v2445
    %v2518 = vpop.f32.mrb[0].mxu0
    %v2519 = vadd.f32 %v122, %v2518
    %v2520 = vpop.f32.mrb[0].mxu0
    %2521 = vdwg.mxu0
    %v2522 = vmax.f32 %v2514, 0.0
    %v2523 = vmax.f32 %v2519, 0.0
    %v2525 = vsel %vm178, %v2522, 0
    %v2528 = vsel %vm178, %v2523, 0
    %2530 = vmatprep.subr.mxu0 0.0
    %2531 = vmatpush1.msra.mxu0 %v1296
    %2532 = vmatprep.subr.mxu0 0.0
    %2533 = vmatpush1.msra.mxu0 %v1297
    %2534 = vmatprep.subr.mxu0 0.0
    %2535 = vmatpush1.msra.mxu0 %v1298
    %2536 = vmatprep.subr.mxu0 0.0
    %2537 = vmatpush1.msra.mxu0 %v1299
    %2538 = vmatprep.subr.mxu0 0.0
    %2539 = vmatpush1.msra.mxu0 %v1300
    %2540 = vmatprep.subr.mxu0 0.0
    %2541 = vmatpush1.msra.mxu0 %v1301
    %2542 = vmatprep.subr.mxu0 0.0
    %2543 = vmatpush1.msra.mxu0 %v1302
    %2544 = vmatprep.subr.mxu0 0.0
    %2545 = vmatpush1.msra.mxu0 %v1303
    %2546 = vmatprep.subr.mxu0 0.0
    %2547 = vmatpush1.msra.mxu0 0.0
    %2548 = vmatprep.subr.mxu0 0.0
    %2549 = vmatpush1.msra.mxu0 0.0
    %2550 = vmatprep.subr.mxu0 0.0
    %2551 = vmatpush1.msra.mxu0 0.0
    %2552 = vmatprep.subr.mxu0 0.0
    %2553 = vmatpush1.msra.mxu0 0.0
    %2554 = vmatprep.subr.mxu0 0.0
    %2555 = vmatpush1.msra.mxu0 0.0
    %2556 = vmatprep.subr.mxu0 0.0
    %2557 = vmatpush1.msra.mxu0 0.0
    %2558 = vmatprep.subr.mxu0 0.0
    %2559 = vmatpush1.msra.mxu0 0.0
    %2560 = vmatprep.subr.mxu0 0.0
    %2561 = vmatpush1.msra.mxu0 0.0
    %2562 = vmatprep.subr.mxu0 0.0
    %2563 = vmatpush1.msra.mxu0 0.0
    %2564 = vmatprep.subr.mxu0 0.0
    %2565 = vmatpush1.msra.mxu0 0.0
    %2566 = vmatprep.subr.mxu0 0.0
    %2567 = vmatpush1.msra.mxu0 0.0
    %2568 = vmatprep.subr.mxu0 0.0
    %2569 = vmatpush1.msra.mxu0 0.0
    %2570 = vmatprep.subr.mxu0 0.0
    %2571 = vmatpush1.msra.mxu0 0.0
    %2572 = vmatprep.subr.mxu0 0.0
    %2573 = vmatpush1.msra.mxu0 0.0
    %2574 = vmatprep.subr.mxu0 0.0
    %2575 = vmatpush1.msra.mxu0 0.0
    %2576 = vmatprep.subr.mxu0 0.0
    %2577 = vmatpush1.msra.mxu0 0.0
    %2578 = vmatprep.subr.mxu0 0.0
    %2579 = vmatpush1.msra.mxu0 0.0
    %2580 = vmatprep.subr.mxu0 0.0
    %2581 = vmatpush1.msra.mxu0 0.0
    %2582 = vmatprep.subr.mxu0 0.0
    %2583 = vmatpush1.msra.mxu0 0.0
    %2584 = vmatprep.subr.mxu0 0.0
    %2585 = vmatpush1.msra.mxu0 0.0
    %2586 = vmatprep.subr.mxu0 0.0
    %2587 = vmatpush1.msra.mxu0 0.0
    %2588 = vmatprep.subr.mxu0 0.0
    %2589 = vmatpush1.msra.mxu0 0.0
    %2590 = vmatprep.subr.mxu0 0.0
    %2591 = vmatpush1.msra.mxu0 0.0
    %2592 = vmatprep.subr.mxu0 0.0
    %2593 = vmatpush1.msra.mxu0 0.0
    %2594 = vmatprep.mubr.f32.mxu0 0.0
    %2595 = vmatmul.mubr.f32.gmra.mrb[0].mxu0 %v2525
    %v2596 = vpop.f32.mrb[0].mxu0
    %v2597 = vadd.f32 %v129, %v2596
    %v2598 = vpop.f32.mrb[0].mxu0
    %2599 = vmatprep.mubr.f32.mxu0 0.0
    %2600 = vmatmul.mubr.f32.gmra.mrb[0].mxu0 %v2528
    %v2601 = vpop.f32.mrb[0].mxu0
    %v2602 = vadd.f32 %v129, %v2601
    %v2603 = vpop.f32.mrb[0].mxu0
    %2604 = vdwg.mxu0
    %v2605 = vadd.f32 %v2439, %v2597
    %v2606 = vadd.f32 %v2440, %v2602
    %v2607 = vsel %vm167, %v2605, 0.0
    %2608 = vadd.xlane.f32.xlu0 %v2607
    %v2609 = vpop.xlane.xlu0 %2608
    %v2610 = vsel %vm167, %v2606, 0.0
    %2611 = vadd.xlane.f32.xlu0 %v2610
    %v2612 = vpop.xlane.xlu0 %2611
    %v2613 = vmul.f32 %v2609, %v1184
    %v2614 = vmul.f32 %v2612, %v1184
    %v2615 = vsub.f32 %v2605, %v2613
    %v2616 = vsub.f32 %v2606, %v2614
    %v2617 = vmul.f32 %v2615, %v2615
    %v2618 = vmul.f32 %v2616, %v2616
    %v2619 = vsel %vm167, %v2617, 0.0
    %2620 = vadd.xlane.f32.xlu0 %v2619
    %v2621 = vpop.xlane.xlu0 %2620
    %v2622 = vsel %vm167, %v2618, 0.0
    %2623 = vadd.xlane.f32.xlu0 %v2622
    %v2624 = vpop.xlane.xlu0 %2623
    %v2625 = vmul.f32 %v2621, %v1184
    %v2626 = vmul.f32 %v2624, %v1184
    %v2627 = vadd.f32 %v2625, 1e-05
    %v2628 = vadd.f32 %v2626, 1e-05
    %v2629 = vrsqrt.pop %v2627
    %v2630 = vrsqrt.pop %v2628
    %v2631 = vmul.f32 %v2615, %v2629
    %v2632 = vmul.f32 %v2616, %v2630
    %v2633 = vmul.f32 %v2631, %v150
    %v2634 = vmul.f32 %v2632, %v150
    %v2635 = vadd.f32 %v2633, %v157
    %v2636 = vadd.f32 %v2634, %v157
    %v2637 = vld [vmem:[%s14] sm:$0x1]
    %v2638 = vld [vmem:[%s15] sm:$0x1]
    %v2639 = vsel %vm167, %v2635, 0.0
    %2640 = vadd.xlane.f32.xlu0 %v2639
    %v2641 = vpop.xlane.xlu0 %2640
    %v2642 = vsel %vm167, %v2636, 0.0
    %2643 = vadd.xlane.f32.xlu0 %v2642
    %v2644 = vpop.xlane.xlu0 %2643
    %v2645 = vmul.f32 %v2641, %v1184
    %v2646 = vmul.f32 %v2644, %v1184
    %v2647 = vsub.f32 %v2635, %v2645
    %v2648 = vsub.f32 %v2636, %v2646
    %v2649 = vmul.f32 %v2647, %v2647
    %v2650 = vmul.f32 %v2648, %v2648
    %v2651 = vsel %vm167, %v2649, 0.0
    %2652 = vadd.xlane.f32.xlu0 %v2651
    %v2653 = vpop.xlane.xlu0 %2652
    %v2654 = vsel %vm167, %v2650, 0.0
    %2655 = vadd.xlane.f32.xlu0 %v2654
    %v2656 = vpop.xlane.xlu0 %2655
    %v2657 = vmul.f32 %v2653, %v1184
    %v2658 = vmul.f32 %v2656, %v1184
    %v2659 = vadd.f32 %v2657, 1e-05
    %v2660 = vadd.f32 %v2658, 1e-05
    %v2661 = vrsqrt.pop %v2659
    %v2662 = vrsqrt.pop %v2660
    %v2663 = vmul.f32 %v2647, %v2661
    %v2664 = vmul.f32 %v2648, %v2662
    %v2666 = vlaneseq
    %v2667 = vshrl.u32 %v2666, 7
    %v2668 = vsub.s32 0, %v2667
    %v2669 = vrot.slane %v2637, %v2668
    %v2671 = vmul.f32 %v2663, %v2669
    %v2672 = vmul.f32 %v2664, %v2669
    %v2674 = vlaneseq
    %v2675 = vshrl.u32 %v2674, 7
    %v2676 = vsub.s32 0, %v2675
    %v2677 = vrot.slane %v2638, %v2676
    %v2679 = vadd.f32 %v2671, %v2677
    %v2680 = vadd.f32 %v2672, %v2677
    %2681 = vst.msk [vmem:[#allocation2] sm:$0xff] %vm167, %v2679
    %2682 = vst.msk [vmem:[#allocation2 + $0x8] sm:$0xff] %vm167, %v2680
    // Predicated region
    $region66: #{transformer_encoder.1} parent=1 // pred_check
      _
    $region67: #{transformer_encoder.1} parent=1 // pred_check_branch
      %2684 = sbr.rel (0) target = $region69
    $region68: #{transformer_encoder.1} parent=1 // pred_region
      %s2686 = ssub.s32 256, 256
      %2687 = vsyncadd [#allocation3], %s2686
      %s2688 = sshll.u32 [#allocation2], 4
      %s2689 = int_to_ptr.vmem [resolvable:$true] %s2688
      %2694 = dma.vmem_to_hbm [thread:$0]  %s2689, 256, %s16, [#allocation3], 128, 128, 8
    $region69: #{transformer_encoder.1} parent=1 // pred_fallthru
      _
    // Predicated region
    $region70: #{transformer_encoder.1} parent=1 // pred_check
      _
    $region71: #{transformer_encoder.1} parent=1 // pred_check_branch
      %2696 = sbr.rel (0) target = $region73
    $region72: #{transformer_encoder.1} parent=1 // pred_region
      %2697 = dma.done [#allocation3], 256
    $region73: #{transformer_encoder.1} parent=1 // pred_fallthru
      _
    %2698 = vsyncpa [#allocation3], 1

</llo_original>
